<compile_context>
chip_gen: v6e
topology: v6e:2x2x1
jax: 0.10.0
libtpu: 0.0.40
codegen_flags: <defaults>
</compile_context>

<pallas_src>
import functools
import numpy as np
import jax
import jax.numpy as jnp
from jax.experimental import pallas as pl
from jax.experimental.pallas import tpu as pltpu


# ----------------------------------------------------------------------------
# Kernel 1: fused two-layer MLP   act2( relu(x @ w1 + b1) @ w2 + b2 )
# ----------------------------------------------------------------------------
def _mlp2_kernel(x_ref, w1_ref, b1_ref, w2_ref, b2_ref, o_ref, *, act2):
    h = jnp.dot(x_ref[...], w1_ref[...], preferred_element_type=jnp.float32) + b1_ref[...]
    h = jnp.maximum(h, 0.0)
    y = jnp.dot(h, w2_ref[...], preferred_element_type=jnp.float32) + b2_ref[...]
    if act2 == "relu":
        y = jnp.maximum(y, 0.0)
    o_ref[...] = y.astype(o_ref.dtype)


def fused_mlp2(x, w1, b1, w2, b2, act2=None):
    """Two chained Linear layers in one kernel; the 256-wide intermediate never
    touches HBM.  Only splits the row axis when each tile still has >=256 rows
    (a 2-wide 'parallel' grid is pure per-step overhead on single-TC chips)."""
    M, K1 = x.shape
    K2 = w1.shape[1]
    N = w2.shape[1]
    tiles = 2 if (M % 2 == 0 and (M // 2) % 8 == 0 and (M // 2) >= 256) else 1
    tm = M // tiles
    return pl.pallas_call(
        functools.partial(_mlp2_kernel, act2=act2),
        out_shape=jax.ShapeDtypeStruct((M, N), x.dtype),
        grid_spec=pltpu.PrefetchScalarGridSpec(
            0,
            grid=(tiles,),
            in_specs=[
                pl.BlockSpec((tm, K1), lambda i: (i, 0)),
                pl.BlockSpec((K1, K2), lambda i: (0, 0)),
                pl.BlockSpec((1, K2), lambda i: (0, 0)),
                pl.BlockSpec((K2, N), lambda i: (0, 0)),
                pl.BlockSpec((1, N), lambda i: (0, 0)),
            ],
            out_specs=pl.BlockSpec((tm, N), lambda i: (i, 0)),
        ),
        compiler_params=pltpu.CompilerParams(dimension_semantics=("parallel",)),
    )(x, w1, b1, w2, b2)


# ----------------------------------------------------------------------------
# Kernel 2: the whole gwgru stack (projection + L layers of GRU+GCN), fused.
# grid = (direction, layer); `cur` carried layer-to-layer in VMEM scratch.
# ----------------------------------------------------------------------------
def _stack_kernel(x_ref, p1w_ref, p1b_ref, p2w_ref, p2b_ref,
                  wr_ref, wz_ref, wn_ref, br_ref, bz_ref, bin_ref, bhn_ref,
                  a1_ref, a2_ref, adp_ref, wm_ref, bm_ref,
                  hid_ref, cur_ref, *, last_rows):
    layer = pl.program_id(1)

    # Layer 0: fused input projection relu(relu(x @ P1 + b1) @ P2 + b2) -> VMEM.
    @pl.when(layer == 0)
    def _():
        xin = x_ref[0]                                      # (TM, 2*input_dim)
        t = jnp.dot(xin, p1w_ref[...], preferred_element_type=jnp.float32) + p1b_ref[...]
        t = jnp.maximum(t, 0.0)
        t = jnp.dot(t, p2w_ref[...], preferred_element_type=jnp.float32) + p2b_ref[...]
        cur_ref[...] = jnp.maximum(t, 0.0)

    x = cur_ref[...].astype(jnp.bfloat16)                   # (TM, RU)

    # GRUCell with zero hidden state (the reference passes the same zero state
    # at every timestep): dot(h, Whh) == 0 and z*h == 0 exactly, so they are
    # dropped.  Gate-separated bf16 weights keep every operand a clean lane tile.
    r = jax.nn.sigmoid(jnp.dot(x, wr_ref[0, 0], preferred_element_type=jnp.float32) + br_ref[0, 0])
    z = jax.nn.sigmoid(jnp.dot(x, wz_ref[0, 0], preferred_element_type=jnp.float32) + bz_ref[0, 0])
    n = jnp.tanh(jnp.dot(x, wn_ref[0, 0], preferred_element_type=jnp.float32)
                 + bin_ref[0, 0] + r * bhn_ref[0, 0])
    h = jnp.tanh((1.0 - z) * n)                             # (TM, H) f32, incl. cell's outer tanh

    # Only the last timestep's hidden goes to HBM (rows are time-major, so the
    # last M rows are t = T-1; for the time-flipped stream that is original t=0,
    # exactly hidden_states[-1] of the reference's reverse cell).
    hid_ref[0, 0] = h[h.shape[0] - last_rows:, :].astype(hid_ref.dtype)

    # GCN diffusion (3 supports, order 2), bf16 on the MXU, f32 accumulation.
    # Supports arrive transposed and block-diagonalised over the T*B slabs, so
    # every nconv is one lane-dense (TM,TM)@(TM,H) matmul; the adaptive
    # adjacency softmax(relu(V1@V2)) is hoisted out of the kernel.
    hb = h.astype(jnp.bfloat16)
    a1 = a1_ref[...]
    a2 = a2_ref[...]
    adp = adp_ref[0, 0]
    p1 = jnp.dot(a1, hb, preferred_element_type=jnp.float32).astype(jnp.bfloat16)
    p2 = jnp.dot(a1, p1, preferred_element_type=jnp.float32).astype(jnp.bfloat16)
    p3 = jnp.dot(a2, hb, preferred_element_type=jnp.float32).astype(jnp.bfloat16)
    p4 = jnp.dot(a2, p3, preferred_element_type=jnp.float32).astype(jnp.bfloat16)
    p5 = jnp.dot(adp, hb, preferred_element_type=jnp.float32).astype(jnp.bfloat16)
    p6 = jnp.dot(adp, p5, preferred_element_type=jnp.float32).astype(jnp.bfloat16)

    # concat-along-features + Linear == ONE (TM, 7H) @ (7H, RU) matmul.
    # Piece order matches torch: [x, A1x, A1^2x, A2x, A2^2x, adp x, adp^2 x].
    pieces = jnp.concatenate([hb, p1, p2, p3, p4, p5, p6], axis=-1)
    y = jnp.dot(pieces, wm_ref[0, 0], preferred_element_type=jnp.float32) + bm_ref[0, 0]
    # TODO(synk): F.dropout(p=0.3, training=True) skipped -> eval-mode (identity) forward.
    cur_ref[...] = jnp.tanh(y)                              # next layer's input, stays in VMEM


def run_stack(x_both, params, a1_blk, a2_blk, adp_blk, M):
    """x_both: (2, T*M, 2*input_dim) forward/reverse raw inputs.
    Returns last-timestep hiddens, shape (2, L, M, H)."""
    D2, TM, F = x_both.shape
    _, L, RU, H = params["w_r"].shape
    c_out = params["w_mlp"].shape[-1]
    P = params["proj1_w"].shape[1]

    wr = params["w_r"].astype(jnp.bfloat16)
    wz = params["w_z"].astype(jnp.bfloat16)
    wn = params["w_n"].astype(jnp.bfloat16)
    wm = params["w_mlp"].astype(jnp.bfloat16)

    return pl.pallas_call(
        functools.partial(_stack_kernel, last_rows=M),
        out_shape=jax.ShapeDtypeStruct((D2, L, M, H), jnp.float32),
        grid_spec=pltpu.PrefetchScalarGridSpec(
            0,
            grid=(D2, L),
            in_specs=[
                pl.BlockSpec((1, TM, F), lambda d, l: (d, 0, 0)),        # raw input (used at l==0)
                pl.BlockSpec((F, P), lambda d, l: (0, 0)),               # proj1_w (shared)
                pl.BlockSpec((1, P), lambda d, l: (0, 0)),               # proj1_b
                pl.BlockSpec((P, RU), lambda d, l: (0, 0)),              # proj2_w
                pl.BlockSpec((1, RU), lambda d, l: (0, 0)),              # proj2_b
                pl.BlockSpec((1, 1, RU, H), lambda d, l: (d, l, 0, 0)),  # w_r
                pl.BlockSpec((1, 1, RU, H), lambda d, l: (d, l, 0, 0)),  # w_z
                pl.BlockSpec((1, 1, RU, H), lambda d, l: (d, l, 0, 0)),  # w_n
                pl.BlockSpec((1, 1, 1, H), lambda d, l: (d, l, 0, 0)),   # b_r
                pl.BlockSpec((1, 1, 1, H), lambda d, l: (d, l, 0, 0)),   # b_z
                pl.BlockSpec((1, 1, 1, H), lambda d, l: (d, l, 0, 0)),   # b_in
                pl.BlockSpec((1, 1, 1, H), lambda d, l: (d, l, 0, 0)),   # b_hn
                pl.BlockSpec((TM, TM), lambda d, l: (0, 0)),             # a1 (shared, stays resident)
                pl.BlockSpec((TM, TM), lambda d, l: (0, 0)),             # a2 (shared, stays resident)
                pl.BlockSpec((1, 1, TM, TM), lambda d, l: (d, l, 0, 0)), # adp per (dir, layer)
                pl.BlockSpec((1, 1, 7 * H, c_out), lambda d, l: (d, l, 0, 0)),  # w_mlp
                pl.BlockSpec((1, 1, 1, c_out), lambda d, l: (d, l, 0, 0)),      # b_mlp
            ],
            out_specs=pl.BlockSpec((1, 1, M, H), lambda d, l: (d, l, 0, 0)),
            scratch_shapes=[pltpu.VMEM((TM, RU), jnp.float32)],          # carried activation
        ),
        compiler_params=pltpu.CompilerParams(
            dimension_semantics=("parallel", "arbitrary")),
    )(x_both, params["proj1_w"], params["proj1_b"], params["proj2_w"], params["proj2_b"],
      wr, wz, wn, params["b_r"], params["b_z"], params["b_in"], params["b_hn"],
      a1_blk, a2_blk, adp_blk, wm, params["b_mlp"])


# ----------------------------------------------------------------------------
# Plain-JAX glue
# ----------------------------------------------------------------------------
def _block_diag(a_t, tb):
    """kron(eye(tb), a_t) along the last two dims (supports leading batch dims)."""
    n = a_t.shape[-1]
    eye = jnp.eye(tb, dtype=a_t.dtype)
    out = jnp.einsum('ij,...kl->...ikjl', eye, a_t)
    return out.reshape(*a_t.shape[:-2], tb * n, tb * n)


def encoder_forward(params, inputs, mask, noise):
    T, B, N, Din = inputs.shape
    M = B * N
    TM = T * M
    TB = T * B
    RU = params["proj2_w"].shape[1]          # static: derived from weight shape
    H = 2 * RU
    L = params["w_r"].shape[1]

    x = inputs + noise                                        # additive N(0, 0.01) noise
    x = jnp.concatenate([x, mask], axis=3).reshape(T, M, 2 * Din)
    # forward + time-reversed inputs, stacked on the (parallel) direction axis.
    x_both = jnp.stack([x, jnp.flip(x, axis=0)]).reshape(2, TM, 2 * Din)

    # fixed supports: transpose + block-diagonalise once, bf16 for the MXU.
    a1_blk = _block_diag(params["adj1"].T, TB).astype(jnp.bfloat16)
    a2_blk = _block_diag(params["adj2"].T, TB).astype(jnp.bfloat16)

    # adaptive adjacency softmax(relu(V1@V2), dim=1) per (direction, layer),
    # hoisted out of the kernel.
    logits = jnp.maximum(jnp.einsum('dlik,dlkj->dlij', params["v1"], params["v2"]), 0.0)
    adp = jax.nn.softmax(logits, axis=-1)
    adp_blk = _block_diag(jnp.swapaxes(adp, -1, -2), TB).astype(jnp.bfloat16)   # (2,L,TM,TM)

    hid = run_stack(x_both, params, a1_blk, a2_blk, adp_blk, M)   # (2, L, M, H)

    # cat(forward, reverse) along features -> (L, M, 2H = 4*RU), dense head.
    # (A (L,M,2H) kernel output with per-direction 64-lane blocks would break
    #  the (8,128)/full-dim BlockSpec rule, so the concat stays in the wrapper.)
    h_cat = jnp.concatenate([hid[0], hid[1]], axis=-1)
    flat = fused_mlp2(h_cat.reshape(L * M, 4 * RU),
                      params["dense1_w"], params["dense1_b"],
                      params["dense2_w"], params["dense2_b"], act2=None)
    return flat.reshape(L, M, H)


# ----------------------------------------------------------------------------
# Deterministic parameter construction (no Python scalars inside the pytree)
# ----------------------------------------------------------------------------
def _uniform(key, shape, fan_in):
    s = 1.0 / np.sqrt(max(fan_in, 1))
    return jax.random.uniform(key, shape, jnp.float32, -s, s)


def init_params(key, input_dim, rnn_unit, num_node, num_layers=2):
    keys = iter(jax.random.split(key, 256))
    RU, H, N, L = rnn_unit, 2 * rnn_unit, num_node, num_layers
    c_in_gcn = 7 * H                            # (order*support_len + 1) * c_in

    def u(shape, fan):
        return _uniform(next(keys), shape, fan)

    adj1 = jax.random.uniform(next(keys), (N, N), jnp.float32)
    adj1 = adj1 / jnp.sum(adj1, axis=1, keepdims=True)
    adj2 = jax.random.uniform(next(keys), (N, N), jnp.float32)
    adj2 = adj2 / jnp.sum(adj2, axis=1, keepdims=True)

    return dict(
        adj1=adj1, adj2=adj2,
        proj1_w=u((2 * input_dim, 256), 2 * input_dim),
        proj1_b=u((1, 256), 2 * input_dim),
        proj2_w=u((256, RU), 256),
        proj2_b=u((1, RU), 256),
        # GRUCell params stacked as (direction=2, layer=L, ...), gate-separated
        # (r, z, n); r/z biases pre-combined (b_ir + b_hr) -- exact because the
        # hidden state is always zero (init distribution differs, math doesn't).
        w_r=u((2, L, RU, H), H), w_z=u((2, L, RU, H), H), w_n=u((2, L, RU, H), H),
        b_r=u((2, L, 1, H), H) + u((2, L, 1, H), H),
        b_z=u((2, L, 1, H), H) + u((2, L, 1, H), H),
        b_in=u((2, L, 1, H), H), b_hn=u((2, L, 1, H), H),
        v1=jax.random.normal(next(keys), (2, L, N, 10), jnp.float32),
        v2=jax.random.normal(next(keys), (2, L, 10, N), jnp.float32),
        w_mlp=u((2, L, c_in_gcn, RU), c_in_gcn),
        b_mlp=u((2, L, 1, RU), c_in_gcn),
        dense1_w=u((4 * RU, 256), 4 * RU),
        dense1_b=u((1, 256), 4 * RU),
        dense2_w=u((256, H), 256),
        dense2_b=u((1, H), 256),
    )


# ----------------------------------------------------------------------------
# Driver
# ----------------------------------------------------------------------------
if __name__ == "__main__":
    T, B, N, D = 8, 2, 16, 4          # time, batch, nodes, input_dim
    RNN_UNIT = 32
    NUM_LAYERS = 2

    root = jax.random.PRNGKey(0)
    k_in, k_mask, k_noise, k_params = jax.random.split(root, 4)

    inputs = jax.random.normal(k_in, (T, B, N, D), jnp.float32)
    mask = (jax.random.uniform(k_mask, (T, B, N, D)) > 0.5).astype(jnp.float32)
    noise = 0.01 * jax.random.normal(k_noise, (T, B, N, D), jnp.float32)

    params = init_params(k_params, D, RNN_UNIT, N, NUM_LAYERS)

    fwd = jax.jit(encoder_forward)
    out = fwd(params, inputs, mask, noise)
    out = jax.block_until_ready(out)

    expected = (NUM_LAYERS, B * N, 2 * RNN_UNIT)
    assert out.shape == expected, (out.shape, expected)
    assert bool(jnp.all(jnp.isfinite(out)))
    print("KERNEL_OK")
</pallas_src>

<mosaic_0001>
module attributes {stable_mosaic.version = 11 : i64} {
  func.func @_stack_kernel(%arg0: i32, %arg1: i32, %arg2: memref<1x256x8xf32, #tpu.memory_space<vmem>>, %arg3: memref<8x256xf32, #tpu.memory_space<vmem>>, %arg4: memref<1x256xf32, #tpu.memory_space<vmem>>, %arg5: memref<256x32xf32, #tpu.memory_space<vmem>>, %arg6: memref<1x32xf32, #tpu.memory_space<vmem>>, %arg7: memref<1x1x32x64xbf16, #tpu.memory_space<vmem>>, %arg8: memref<1x1x32x64xbf16, #tpu.memory_space<vmem>>, %arg9: memref<1x1x32x64xbf16, #tpu.memory_space<vmem>>, %arg10: memref<1x1x1x64xf32, #tpu.memory_space<vmem>>, %arg11: memref<1x1x1x64xf32, #tpu.memory_space<vmem>>, %arg12: memref<1x1x1x64xf32, #tpu.memory_space<vmem>>, %arg13: memref<1x1x1x64xf32, #tpu.memory_space<vmem>>, %arg14: memref<256x256xbf16, #tpu.memory_space<vmem>>, %arg15: memref<256x256xbf16, #tpu.memory_space<vmem>>, %arg16: memref<1x1x256x256xbf16, #tpu.memory_space<vmem>>, %arg17: memref<1x1x448x32xbf16, #tpu.memory_space<vmem>>, %arg18: memref<1x1x1x32xf32, #tpu.memory_space<vmem>>, %arg19: memref<1x1x32x64xf32, #tpu.memory_space<vmem>>, %arg20: memref<256x32xf32, #tpu.memory_space<vmem>>) attributes {dimension_semantics = [#tpu.dimension_semantics<parallel>, #tpu.dimension_semantics<arbitrary>], iteration_bounds = array<i64: 2, 2>, scalar_prefetch = 0 : i64, scratch_operands = 1 : i64, tpu.core_type = #tpu.core_type<tc>, window_params = [{transform_indices = @transform_0, window_bounds = array<i64: 1, 256, 8>}, {pipeline_mode = #tpu.pipeline_mode<synchronous>, transform_indices = @transform_1, window_bounds = array<i64: 8, 256>}, {pipeline_mode = #tpu.pipeline_mode<synchronous>, transform_indices = @transform_2, window_bounds = array<i64: 1, 256>}, {pipeline_mode = #tpu.pipeline_mode<synchronous>, transform_indices = @transform_3, window_bounds = array<i64: 256, 32>}, {pipeline_mode = #tpu.pipeline_mode<synchronous>, transform_indices = @transform_4, window_bounds = array<i64: 1, 32>}, {transform_indices = @transform_5, window_bounds = array<i64: 1, 1, 32, 64>}, {transform_indices = @transform_6, window_bounds = array<i64: 1, 1, 32, 64>}, {transform_indices = @transform_7, window_bounds = array<i64: 1, 1, 32, 64>}, {transform_indices = @transform_8, window_bounds = array<i64: 1, 1, 1, 64>}, {transform_indices = @transform_9, window_bounds = array<i64: 1, 1, 1, 64>}, {transform_indices = @transform_10, window_bounds = array<i64: 1, 1, 1, 64>}, {transform_indices = @transform_11, window_bounds = array<i64: 1, 1, 1, 64>}, {pipeline_mode = #tpu.pipeline_mode<synchronous>, transform_indices = @transform_12, window_bounds = array<i64: 256, 256>}, {pipeline_mode = #tpu.pipeline_mode<synchronous>, transform_indices = @transform_13, window_bounds = array<i64: 256, 256>}, {transform_indices = @transform_14, window_bounds = array<i64: 1, 1, 256, 256>}, {transform_indices = @transform_15, window_bounds = array<i64: 1, 1, 448, 32>}, {transform_indices = @transform_16, window_bounds = array<i64: 1, 1, 1, 32>}, {transform_indices = @transform_17, window_bounds = array<i64: 1, 1, 32, 64>}]} {
    %c0_i32 = arith.constant 0 : i32
    %0 = arith.cmpi eq, %arg1, %c0_i32 : i32
    %1 = arith.extui %0 : i1 to i32
    %c0_i32_0 = arith.constant 0 : i32
    %2 = arith.cmpi ne, %1, %c0_i32_0 : i32
    scf.if %2 {
      %c0_64 = arith.constant 0 : index
      %c0_65 = arith.constant 0 : index
      %c0_66 = arith.constant 0 : index
      %77 = vector.load %arg2[%c0_64, %c0_65, %c0_66] : memref<1x256x8xf32, #tpu.memory_space<vmem>>, vector<1x256x8xf32>
      %78 = vector.shape_cast %77 : vector<1x256x8xf32> to vector<256x8xf32>
      %c0_67 = arith.constant 0 : index
      %c0_68 = arith.constant 0 : index
      %79 = vector.load %arg3[%c0_67, %c0_68] : memref<8x256xf32, #tpu.memory_space<vmem>>, vector<8x256xf32>
      %cst_69 = arith.constant dense<0.000000e+00> : vector<256x256xf32>
      %80 = tpu.matmul %78, %79, %cst_69 {dimension_numbers = #tpu.dot_dimension_numbers<[1], [0], [0], [1], [0, 0, 1, 1], [], []>} : vector<256x8xf32>, vector<8x256xf32>, vector<256x256xf32> -> vector<256x256xf32>
      %c0_70 = arith.constant 0 : index
      %c0_71 = arith.constant 0 : index
      %81 = vector.load %arg4[%c0_70, %c0_71] : memref<1x256xf32, #tpu.memory_space<vmem>>, vector<1x256xf32>
      %82 = vector.broadcast %81 : vector<1x256xf32> to vector<256x256xf32>
      %83 = arith.addf %80, %82 : vector<256x256xf32>
      %cst_72 = arith.constant 0.000000e+00 : f32
      %84 = vector.broadcast %cst_72 : f32 to vector<256x256xf32>
      %85 = arith.maximumf %83, %84 : vector<256x256xf32>
      %c0_73 = arith.constant 0 : index
      %c0_74 = arith.constant 0 : index
      %86 = vector.load %arg5[%c0_73, %c0_74] : memref<256x32xf32, #tpu.memory_space<vmem>>, vector<256x32xf32>
      %cst_75 = arith.constant dense<0.000000e+00> : vector<256x32xf32>
      %87 = tpu.matmul %85, %86, %cst_75 {dimension_numbers = #tpu.dot_dimension_numbers<[1], [0], [0], [1], [0, 0, 1, 1], [], []>} : vector<256x256xf32>, vector<256x32xf32>, vector<256x32xf32> -> vector<256x32xf32>
      %c0_76 = arith.constant 0 : index
      %c0_77 = arith.constant 0 : index
      %88 = vector.load %arg6[%c0_76, %c0_77] : memref<1x32xf32, #tpu.memory_space<vmem>>, vector<1x32xf32>
      %89 = vector.broadcast %88 : vector<1x32xf32> to vector<256x32xf32>
      %90 = arith.addf %87, %89 : vector<256x32xf32>
      %cst_78 = arith.constant 0.000000e+00 : f32
      %91 = vector.broadcast %cst_78 : f32 to vector<256x32xf32>
      %92 = arith.maximumf %90, %91 : vector<256x32xf32>
      %c0_79 = arith.constant 0 : index
      %c0_80 = arith.constant 0 : index
      %93 = vector.load %arg20[%c0_79, %c0_80] : memref<256x32xf32, #tpu.memory_space<vmem>>, vector<256x32xf32>
      tpu.vector_store %arg20[%c0_79, %c0_80], %92 {strides = array<i32>} : memref<256x32xf32, #tpu.memory_space<vmem>>, vector<256x32xf32>,
    } else {
    }
    %c0 = arith.constant 0 : index
    %c0_1 = arith.constant 0 : index
    %3 = vector.load %arg20[%c0, %c0_1] : memref<256x32xf32, #tpu.memory_space<vmem>>, vector<256x32xf32>
    %4 = arith.truncf %3 : vector<256x32xf32> to vector<256x32xbf16>
    %c0_2 = arith.constant 0 : index
    %c0_3 = arith.constant 0 : index
    %c0_4 = arith.constant 0 : index
    %c0_5 = arith.constant 0 : index
    %5 = vector.load %arg7[%c0_2, %c0_3, %c0_4, %c0_5] : memref<1x1x32x64xbf16, #tpu.memory_space<vmem>>, vector<1x1x32x64xbf16>
    %6 = vector.shape_cast %5 : vector<1x1x32x64xbf16> to vector<32x64xbf16>
    %cst = arith.constant dense<0.000000e+00> : vector<256x64xf32>
    %7 = tpu.matmul %4, %6, %cst {dimension_numbers = #tpu.dot_dimension_numbers<[1], [0], [0], [1], [0, 0, 1, 1], [], []>} : vector<256x32xbf16>, vector<32x64xbf16>, vector<256x64xf32> -> vector<256x64xf32>
    %c0_6 = arith.constant 0 : index
    %c0_7 = arith.constant 0 : index
    %c0_8 = arith.constant 0 : index
    %c0_9 = arith.constant 0 : index
    %8 = vector.load %arg10[%c0_6, %c0_7, %c0_8, %c0_9] : memref<1x1x1x64xf32, #tpu.memory_space<vmem>>, vector<1x1x1x64xf32>
    %9 = vector.shape_cast %8 : vector<1x1x1x64xf32> to vector<1x64xf32>
    %10 = vector.broadcast %9 : vector<1x64xf32> to vector<256x64xf32>
    %11 = arith.addf %7, %10 : vector<256x64xf32>
    %12 = arith.negf %11 : vector<256x64xf32>
    %13 = math.exp %12 : vector<256x64xf32>
    %cst_10 = arith.constant 1.000000e+00 : f32
    %14 = vector.broadcast %cst_10 : f32 to vector<256x64xf32>
    %15 = arith.addf %14, %13 : vector<256x64xf32>
    %16 = arith.divf %14, %15 : vector<256x64xf32>
    %c0_11 = arith.constant 0 : index
    %c0_12 = arith.constant 0 : index
    %c0_13 = arith.constant 0 : index
    %c0_14 = arith.constant 0 : index
    %17 = vector.load %arg8[%c0_11, %c0_12, %c0_13, %c0_14] : memref<1x1x32x64xbf16, #tpu.memory_space<vmem>>, vector<1x1x32x64xbf16>
    %18 = vector.shape_cast %17 : vector<1x1x32x64xbf16> to vector<32x64xbf16>
    %cst_15 = arith.constant dense<0.000000e+00> : vector<256x64xf32>
    %19 = tpu.matmul %4, %18, %cst_15 {dimension_numbers = #tpu.dot_dimension_numbers<[1], [0], [0], [1], [0, 0, 1, 1], [], []>} : vector<256x32xbf16>, vector<32x64xbf16>, vector<256x64xf32> -> vector<256x64xf32>
    %c0_16 = arith.constant 0 : index
    %c0_17 = arith.constant 0 : index
    %c0_18 = arith.constant 0 : index
    %c0_19 = arith.constant 0 : index
    %20 = vector.load %arg11[%c0_16, %c0_17, %c0_18, %c0_19] : memref<1x1x1x64xf32, #tpu.memory_space<vmem>>, vector<1x1x1x64xf32>
    %21 = vector.shape_cast %20 : vector<1x1x1x64xf32> to vector<1x64xf32>
    %22 = vector.broadcast %21 : vector<1x64xf32> to vector<256x64xf32>
    %23 = arith.addf %19, %22 : vector<256x64xf32>
    %24 = arith.negf %23 : vector<256x64xf32>
    %25 = math.exp %24 : vector<256x64xf32>
    %cst_20 = arith.constant 1.000000e+00 : f32
    %26 = vector.broadcast %cst_20 : f32 to vector<256x64xf32>
    %27 = arith.addf %26, %25 : vector<256x64xf32>
    %28 = arith.divf %26, %27 : vector<256x64xf32>
    %c0_21 = arith.constant 0 : index
    %c0_22 = arith.constant 0 : index
    %c0_23 = arith.constant 0 : index
    %c0_24 = arith.constant 0 : index
    %29 = vector.load %arg9[%c0_21, %c0_22, %c0_23, %c0_24] : memref<1x1x32x64xbf16, #tpu.memory_space<vmem>>, vector<1x1x32x64xbf16>
    %30 = vector.shape_cast %29 : vector<1x1x32x64xbf16> to vector<32x64xbf16>
    %cst_25 = arith.constant dense<0.000000e+00> : vector<256x64xf32>
    %31 = tpu.matmul %4, %30, %cst_25 {dimension_numbers = #tpu.dot_dimension_numbers<[1], [0], [0], [1], [0, 0, 1, 1], [], []>} : vector<256x32xbf16>, vector<32x64xbf16>, vector<256x64xf32> -> vector<256x64xf32>
    %c0_26 = arith.constant 0 : index
    %c0_27 = arith.constant 0 : index
    %c0_28 = arith.constant 0 : index
    %c0_29 = arith.constant 0 : index
    %32 = vector.load %arg12[%c0_26, %c0_27, %c0_28, %c0_29] : memref<1x1x1x64xf32, #tpu.memory_space<vmem>>, vector<1x1x1x64xf32>
    %33 = vector.shape_cast %32 : vector<1x1x1x64xf32> to vector<1x64xf32>
    %34 = vector.broadcast %33 : vector<1x64xf32> to vector<256x64xf32>
    %35 = arith.addf %31, %34 : vector<256x64xf32>
    %c0_30 = arith.constant 0 : index
    %c0_31 = arith.constant 0 : index
    %c0_32 = arith.constant 0 : index
    %c0_33 = arith.constant 0 : index
    %36 = vector.load %arg13[%c0_30, %c0_31, %c0_32, %c0_33] : memref<1x1x1x64xf32, #tpu.memory_space<vmem>>, vector<1x1x1x64xf32>
    %37 = vector.shape_cast %36 : vector<1x1x1x64xf32> to vector<1x64xf32>
    %38 = vector.broadcast %37 : vector<1x64xf32> to vector<256x64xf32>
    %39 = arith.mulf %16, %38 : vector<256x64xf32>
    %40 = arith.addf %35, %39 : vector<256x64xf32>
    %41 = math.tanh %40 : vector<256x64xf32>
    %cst_34 = arith.constant 1.000000e+00 : f32
    %42 = vector.broadcast %cst_34 : f32 to vector<256x64xf32>
    %43 = arith.subf %42, %28 : vector<256x64xf32>
    %44 = arith.mulf %43, %41 : vector<256x64xf32>
    %45 = math.tanh %44 : vector<256x64xf32>
    %46 = vector.extract_strided_slice %45 {offsets = [224, 0], sizes = [32, 64], strides = [1, 1]} : vector<256x64xf32> to vector<32x64xf32>
    %c0_35 = arith.constant 0 : index
    %c0_36 = arith.constant 0 : index
    %c0_37 = arith.constant 0 : index
    %c0_38 = arith.constant 0 : index
    %47 = vector.load %arg19[%c0_35, %c0_36, %c0_37, %c0_38] : memref<1x1x32x64xf32, #tpu.memory_space<vmem>>, vector<1x1x32x64xf32>
    %48 = vector.shape_cast %47 : vector<1x1x32x64xf32> to vector<32x64xf32>
    %49 = vector.shape_cast %46 : vector<32x64xf32> to vector<1x1x32x64xf32>
    tpu.vector_store %arg19[%c0_35, %c0_36, %c0_37, %c0_38], %49 {strides = array<i32>} : memref<1x1x32x64xf32, #tpu.memory_space<vmem>>, vector<1x1x32x64xf32>,
    %50 = arith.truncf %45 : vector<256x64xf32> to vector<256x64xbf16>
    %c0_39 = arith.constant 0 : index
    %c0_40 = arith.constant 0 : index
    %51 = vector.load %arg14[%c0_39, %c0_40] : memref<256x256xbf16, #tpu.memory_space<vmem>>, vector<256x256xbf16>
    %c0_41 = arith.constant 0 : index
    %c0_42 = arith.constant 0 : index
    %52 = vector.load %arg15[%c0_41, %c0_42] : memref<256x256xbf16, #tpu.memory_space<vmem>>, vector<256x256xbf16>
    %c0_43 = arith.constant 0 : index
    %c0_44 = arith.constant 0 : index
    %c0_45 = arith.constant 0 : index
    %c0_46 = arith.constant 0 : index
    %53 = vector.load %arg16[%c0_43, %c0_44, %c0_45, %c0_46] : memref<1x1x256x256xbf16, #tpu.memory_space<vmem>>, vector<1x1x256x256xbf16>
    %54 = vector.shape_cast %53 : vector<1x1x256x256xbf16> to vector<256x256xbf16>
    %cst_47 = arith.constant dense<0.000000e+00> : vector<256x64xf32>
    %55 = tpu.matmul %51, %50, %cst_47 {dimension_numbers = #tpu.dot_dimension_numbers<[1], [0], [0], [1], [0, 0, 1, 1], [], []>} : vector<256x256xbf16>, vector<256x64xbf16>, vector<256x64xf32> -> vector<256x64xf32>
    %56 = arith.truncf %55 : vector<256x64xf32> to vector<256x64xbf16>
    %cst_48 = arith.constant dense<0.000000e+00> : vector<256x64xf32>
    %57 = tpu.matmul %51, %56, %cst_48 {dimension_numbers = #tpu.dot_dimension_numbers<[1], [0], [0], [1], [0, 0, 1, 1], [], []>} : vector<256x256xbf16>, vector<256x64xbf16>, vector<256x64xf32> -> vector<256x64xf32>
    %58 = arith.truncf %57 : vector<256x64xf32> to vector<256x64xbf16>
    %cst_49 = arith.constant dense<0.000000e+00> : vector<256x64xf32>
    %59 = tpu.matmul %52, %50, %cst_49 {dimension_numbers = #tpu.dot_dimension_numbers<[1], [0], [0], [1], [0, 0, 1, 1], [], []>} : vector<256x256xbf16>, vector<256x64xbf16>, vector<256x64xf32> -> vector<256x64xf32>
    %60 = arith.truncf %59 : vector<256x64xf32> to vector<256x64xbf16>
    %cst_50 = arith.constant dense<0.000000e+00> : vector<256x64xf32>
    %61 = tpu.matmul %52, %60, %cst_50 {dimension_numbers = #tpu.dot_dimension_numbers<[1], [0], [0], [1], [0, 0, 1, 1], [], []>} : vector<256x256xbf16>, vector<256x64xbf16>, vector<256x64xf32> -> vector<256x64xf32>
    %62 = arith.truncf %61 : vector<256x64xf32> to vector<256x64xbf16>
    %cst_51 = arith.constant dense<0.000000e+00> : vector<256x64xf32>
    %63 = tpu.matmul %54, %50, %cst_51 {dimension_numbers = #tpu.dot_dimension_numbers<[1], [0], [0], [1], [0, 0, 1, 1], [], []>} : vector<256x256xbf16>, vector<256x64xbf16>, vector<256x64xf32> -> vector<256x64xf32>
    %64 = arith.truncf %63 : vector<256x64xf32> to vector<256x64xbf16>
    %cst_52 = arith.constant dense<0.000000e+00> : vector<256x64xf32>
    %65 = tpu.matmul %54, %64, %cst_52 {dimension_numbers = #tpu.dot_dimension_numbers<[1], [0], [0], [1], [0, 0, 1, 1], [], []>} : vector<256x256xbf16>, vector<256x64xbf16>, vector<256x64xf32> -> vector<256x64xf32>
    %66 = arith.truncf %65 : vector<256x64xf32> to vector<256x64xbf16>
    %67 = tpu.concatenate %50, %56, %58, %60, %62, %64, %66 in 1 : vector<256x64xbf16>, vector<256x64xbf16>, vector<256x64xbf16>, vector<256x64xbf16>, vector<256x64xbf16>, vector<256x64xbf16>, vector<256x64xbf16> -> vector<256x448xbf16>
    %c0_53 = arith.constant 0 : index
    %c0_54 = arith.constant 0 : index
    %c0_55 = arith.constant 0 : index
    %c0_56 = arith.constant 0 : index
    %68 = vector.load %arg17[%c0_53, %c0_54, %c0_55, %c0_56] : memref<1x1x448x32xbf16, #tpu.memory_space<vmem>>, vector<1x1x448x32xbf16>
    %69 = vector.shape_cast %68 : vector<1x1x448x32xbf16> to vector<448x32xbf16>
    %cst_57 = arith.constant dense<0.000000e+00> : vector<256x32xf32>
    %70 = tpu.matmul %67, %69, %cst_57 {dimension_numbers = #tpu.dot_dimension_numbers<[1], [0], [0], [1], [0, 0, 1, 1], [], []>} : vector<256x448xbf16>, vector<448x32xbf16>, vector<256x32xf32> -> vector<256x32xf32>
    %c0_58 = arith.constant 0 : index
    %c0_59 = arith.constant 0 : index
    %c0_60 = arith.constant 0 : index
    %c0_61 = arith.constant 0 : index
    %71 = vector.load %arg18[%c0_58, %c0_59, %c0_60, %c0_61] : memref<1x1x1x32xf32, #tpu.memory_space<vmem>>, vector<1x1x1x32xf32>
    %72 = vector.shape_cast %71 : vector<1x1x1x32xf32> to vector<1x32xf32>
    %73 = vector.broadcast %72 : vector<1x32xf32> to vector<256x32xf32>
    %74 = arith.addf %70, %73 : vector<256x32xf32>
    %75 = math.tanh %74 : vector<256x32xf32>
    %c0_62 = arith.constant 0 : index
    %c0_63 = arith.constant 0 : index
    %76 = vector.load %arg20[%c0_62, %c0_63] : memref<256x32xf32, #tpu.memory_space<vmem>>, vector<256x32xf32>
    tpu.vector_store %arg20[%c0_62, %c0_63], %75 {strides = array<i32>} : memref<256x32xf32, #tpu.memory_space<vmem>>, vector<256x32xf32>,
    return
  }
  func.func @transform_0(%arg0: i32, %arg1: i32) -> (i32, i32, i32) {
    %c0_i32 = arith.constant 0 : i32
    %c0_i32_0 = arith.constant 0 : i32
    %c0_i32_1 = arith.constant 0 : i32
    return %arg0, %c0_i32, %c0_i32_0 : i32, i32, i32
  }
  func.func @transform_1(%arg0: i32, %arg1: i32) -> (i32, i32) {
    %c0_i32 = arith.constant 0 : i32
    %c0_i32_0 = arith.constant 0 : i32
    %c0_i32_1 = arith.constant 0 : i32
    return %c0_i32, %c0_i32_0 : i32, i32
  }
  func.func @transform_2(%arg0: i32, %arg1: i32) -> (i32, i32) {
    %c0_i32 = arith.constant 0 : i32
    %c0_i32_0 = arith.constant 0 : i32
    %c0_i32_1 = arith.constant 0 : i32
    return %c0_i32, %c0_i32_0 : i32, i32
  }
  func.func @transform_3(%arg0: i32, %arg1: i32) -> (i32, i32) {
    %c0_i32 = arith.constant 0 : i32
    %c0_i32_0 = arith.constant 0 : i32
    %c0_i32_1 = arith.constant 0 : i32
    return %c0_i32, %c0_i32_0 : i32, i32
  }
  func.func @transform_4(%arg0: i32, %arg1: i32) -> (i32, i32) {
    %c0_i32 = arith.constant 0 : i32
    %c0_i32_0 = arith.constant 0 : i32
    %c0_i32_1 = arith.constant 0 : i32
    return %c0_i32, %c0_i32_0 : i32, i32
  }
  func.func @transform_5(%arg0: i32, %arg1: i32) -> (i32, i32, i32, i32) {
    %c0_i32 = arith.constant 0 : i32
    %c0_i32_0 = arith.constant 0 : i32
    %c0_i32_1 = arith.constant 0 : i32
    return %arg0, %arg1, %c0_i32, %c0_i32_0 : i32, i32, i32, i32
  }
  func.func @transform_6(%arg0: i32, %arg1: i32) -> (i32, i32, i32, i32) {
    %c0_i32 = arith.constant 0 : i32
    %c0_i32_0 = arith.constant 0 : i32
    %c0_i32_1 = arith.constant 0 : i32
    return %arg0, %arg1, %c0_i32, %c0_i32_0 : i32, i32, i32, i32
  }
  func.func @transform_7(%arg0: i32, %arg1: i32) -> (i32, i32, i32, i32) {
    %c0_i32 = arith.constant 0 : i32
    %c0_i32_0 = arith.constant 0 : i32
    %c0_i32_1 = arith.constant 0 : i32
    return %arg0, %arg1, %c0_i32, %c0_i32_0 : i32, i32, i32, i32
  }
  func.func @transform_8(%arg0: i32, %arg1: i32) -> (i32, i32, i32, i32) {
    %c0_i32 = arith.constant 0 : i32
    %c0_i32_0 = arith.constant 0 : i32
    %c0_i32_1 = arith.constant 0 : i32
    return %arg0, %arg1, %c0_i32, %c0_i32_0 : i32, i32, i32, i32
  }
  func.func @transform_9(%arg0: i32, %arg1: i32) -> (i32, i32, i32, i32) {
    %c0_i32 = arith.constant 0 : i32
    %c0_i32_0 = arith.constant 0 : i32
    %c0_i32_1 = arith.constant 0 : i32
    return %arg0, %arg1, %c0_i32, %c0_i32_0 : i32, i32, i32, i32
  }
  func.func @transform_10(%arg0: i32, %arg1: i32) -> (i32, i32, i32, i32) {
    %c0_i32 = arith.constant 0 : i32
    %c0_i32_0 = arith.constant 0 : i32
    %c0_i32_1 = arith.constant 0 : i32
    return %arg0, %arg1, %c0_i32, %c0_i32_0 : i32, i32, i32, i32
  }
  func.func @transform_11(%arg0: i32, %arg1: i32) -> (i32, i32, i32, i32) {
    %c0_i32 = arith.constant 0 : i32
    %c0_i32_0 = arith.constant 0 : i32
    %c0_i32_1 = arith.constant 0 : i32
    return %arg0, %arg1, %c0_i32, %c0_i32_0 : i32, i32, i32, i32
  }
  func.func @transform_12(%arg0: i32, %arg1: i32) -> (i32, i32) {
    %c0_i32 = arith.constant 0 : i32
    %c0_i32_0 = arith.constant 0 : i32
    %c0_i32_1 = arith.constant 0 : i32
    return %c0_i32, %c0_i32_0 : i32, i32
  }
  func.func @transform_13(%arg0: i32, %arg1: i32) -> (i32, i32) {
    %c0_i32 = arith.constant 0 : i32
    %c0_i32_0 = arith.constant 0 : i32
    %c0_i32_1 = arith.constant 0 : i32
    return %c0_i32, %c0_i32_0 : i32, i32
  }
  func.func @transform_14(%arg0: i32, %arg1: i32) -> (i32, i32, i32, i32) {
    %c0_i32 = arith.constant 0 : i32
    %c0_i32_0 = arith.constant 0 : i32
    %c0_i32_1 = arith.constant 0 : i32
    return %arg0, %arg1, %c0_i32, %c0_i32_0 : i32, i32, i32, i32
  }
  func.func @transform_15(%arg0: i32, %arg1: i32) -> (i32, i32, i32, i32) {
    %c0_i32 = arith.constant 0 : i32
    %c0_i32_0 = arith.constant 0 : i32
    %c0_i32_1 = arith.constant 0 : i32
    return %arg0, %arg1, %c0_i32, %c0_i32_0 : i32, i32, i32, i32
  }
  func.func @transform_16(%arg0: i32, %arg1: i32) -> (i32, i32, i32, i32) {
    %c0_i32 = arith.constant 0 : i32
    %c0_i32_0 = arith.constant 0 : i32
    %c0_i32_1 = arith.constant 0 : i32
    return %arg0, %arg1, %c0_i32, %c0_i32_0 : i32, i32, i32, i32
  }
  func.func @transform_17(%arg0: i32, %arg1: i32) -> (i32, i32, i32, i32) {
    %c0_i32 = arith.constant 0 : i32
    %c0_i32_0 = arith.constant 0 : i32
    %c0_i32_1 = arith.constant 0 : i32
    return %arg0, %arg1, %c0_i32, %c0_i32_0 : i32, i32, i32, i32
  }
}

module attributes {stable_mosaic.version = 11 : i64} {
  func.func @_mlp2_kernel(%arg0: i32, %arg1: memref<64x128xf32, #tpu.memory_space<vmem>>, %arg2: memref<128x256xf32, #tpu.memory_space<vmem>>, %arg3: memref<1x256xf32, #tpu.memory_space<vmem>>, %arg4: memref<256x64xf32, #tpu.memory_space<vmem>>, %arg5: memref<1x64xf32, #tpu.memory_space<vmem>>, %arg6: memref<64x64xf32, #tpu.memory_space<vmem>>) attributes {dimension_semantics = [#tpu.dimension_semantics<parallel>], iteration_bounds = array<i64: 1>, scalar_prefetch = 0 : i64, scratch_operands = 0 : i64, tpu.core_type = #tpu.core_type<tc>, window_params = [{transform_indices = @transform_0, window_bounds = array<i64: 64, 128>}, {pipeline_mode = #tpu.pipeline_mode<synchronous>, transform_indices = @transform_1, window_bounds = array<i64: 128, 256>}, {pipeline_mode = #tpu.pipeline_mode<synchronous>, transform_indices = @transform_2, window_bounds = array<i64: 1, 256>}, {pipeline_mode = #tpu.pipeline_mode<synchronous>, transform_indices = @transform_3, window_bounds = array<i64: 256, 64>}, {pipeline_mode = #tpu.pipeline_mode<synchronous>, transform_indices = @transform_4, window_bounds = array<i64: 1, 64>}, {transform_indices = @transform_5, window_bounds = array<i64: 64, 64>}]} {
    %c0 = arith.constant 0 : index
    %c0_0 = arith.constant 0 : index
    %0 = vector.load %arg1[%c0, %c0_0] : memref<64x128xf32, #tpu.memory_space<vmem>>, vector<64x128xf32>
    %c0_1 = arith.constant 0 : index
    %c0_2 = arith.constant 0 : index
    %1 = vector.load %arg2[%c0_1, %c0_2] : memref<128x256xf32, #tpu.memory_space<vmem>>, vector<128x256xf32>
    %cst = arith.constant dense<0.000000e+00> : vector<64x256xf32>
    %2 = tpu.matmul %0, %1, %cst {dimension_numbers = #tpu.dot_dimension_numbers<[1], [0], [0], [1], [0, 0, 1, 1], [], []>} : vector<64x128xf32>, vector<128x256xf32>, vector<64x256xf32> -> vector<64x256xf32>
    %c0_3 = arith.constant 0 : index
    %c0_4 = arith.constant 0 : index
    %3 = vector.load %arg3[%c0_3, %c0_4] : memref<1x256xf32, #tpu.memory_space<vmem>>, vector<1x256xf32>
    %4 = vector.broadcast %3 : vector<1x256xf32> to vector<64x256xf32>
    %5 = arith.addf %2, %4 : vector<64x256xf32>
    %cst_5 = arith.constant 0.000000e+00 : f32
    %6 = vector.broadcast %cst_5 : f32 to vector<64x256xf32>
    %7 = arith.maximumf %5, %6 : vector<64x256xf32>
    %c0_6 = arith.constant 0 : index
    %c0_7 = arith.constant 0 : index
    %8 = vector.load %arg4[%c0_6, %c0_7] : memref<256x64xf32, #tpu.memory_space<vmem>>, vector<256x64xf32>
    %cst_8 = arith.constant dense<0.000000e+00> : vector<64x64xf32>
    %9 = tpu.matmul %7, %8, %cst_8 {dimension_numbers = #tpu.dot_dimension_numbers<[1], [0], [0], [1], [0, 0, 1, 1], [], []>} : vector<64x256xf32>, vector<256x64xf32>, vector<64x64xf32> -> vector<64x64xf32>
    %c0_9 = arith.constant 0 : index
    %c0_10 = arith.constant 0 : index
    %10 = vector.load %arg5[%c0_9, %c0_10] : memref<1x64xf32, #tpu.memory_space<vmem>>, vector<1x64xf32>
    %11 = vector.broadcast %10 : vector<1x64xf32> to vector<64x64xf32>
    %12 = arith.addf %9, %11 : vector<64x64xf32>
    %c0_11 = arith.constant 0 : index
    %c0_12 = arith.constant 0 : index
    %13 = vector.load %arg6[%c0_11, %c0_12] : memref<64x64xf32, #tpu.memory_space<vmem>>, vector<64x64xf32>
    tpu.vector_store %arg6[%c0_11, %c0_12], %12 {strides = array<i32>} : memref<64x64xf32, #tpu.memory_space<vmem>>, vector<64x64xf32>,
    return
  }
  func.func @transform_0(%arg0: i32) -> (i32, i32) {
    %c0_i32 = arith.constant 0 : i32
    %c0_i32_0 = arith.constant 0 : i32
    return %arg0, %c0_i32 : i32, i32
  }
  func.func @transform_1(%arg0: i32) -> (i32, i32) {
    %c0_i32 = arith.constant 0 : i32
    %c0_i32_0 = arith.constant 0 : i32
    %c0_i32_1 = arith.constant 0 : i32
    return %c0_i32, %c0_i32_0 : i32, i32
  }
  func.func @transform_2(%arg0: i32) -> (i32, i32) {
    %c0_i32 = arith.constant 0 : i32
    %c0_i32_0 = arith.constant 0 : i32
    %c0_i32_1 = arith.constant 0 : i32
    return %c0_i32, %c0_i32_0 : i32, i32
  }
  func.func @transform_3(%arg0: i32) -> (i32, i32) {
    %c0_i32 = arith.constant 0 : i32
    %c0_i32_0 = arith.constant 0 : i32
    %c0_i32_1 = arith.constant 0 : i32
    return %c0_i32, %c0_i32_0 : i32, i32
  }
  func.func @transform_4(%arg0: i32) -> (i32, i32) {
    %c0_i32 = arith.constant 0 : i32
    %c0_i32_0 = arith.constant 0 : i32
    %c0_i32_1 = arith.constant 0 : i32
    return %c0_i32, %c0_i32_0 : i32, i32
  }
  func.func @transform_5(%arg0: i32) -> (i32, i32) {
    %c0_i32 = arith.constant 0 : i32
    %c0_i32_0 = arith.constant 0 : i32
    return %arg0, %c0_i32 : i32, i32
  }
}

</mosaic_0001>

<llo_original>
// kernel: encoder_forward.2
$region0: #{encoder_forward.2}
  #allocation0 [shape = 'u32[]', space=smem, size = 0x4, offset = 0x4, fixed_abs, tag = 'smem constant byte address 0x4 - core index']
  #allocation1 [shape = 'u32[144,128]{1,0:T(1,128)}', space=vmem, size = 0x12000, scoped, tag = 'internal scratch']
  #allocation2 [shape = 'f32[256,32]{1,0:T(8,128)}', space=vmem, size = 0x20000, scoped, tag = 'scratch operand']
  %s0 = inlined_call_operand.vmem [shape: f32[2,256,8], index: 0, kind: input, shape index: {}]
  %s1 = inlined_call_operand.vmem [shape: f32[8,256], index: 1, kind: input, shape index: {}]
  %s2 = inlined_call_operand.vmem [shape: f32[1,256], index: 2, kind: input, shape index: {}]
  %s3 = inlined_call_operand.vmem [shape: f32[256,32], index: 3, kind: input, shape index: {}]
  %s4 = inlined_call_operand.vmem [shape: f32[1,32], index: 4, kind: input, shape index: {}]
  %s5 = inlined_call_operand.vmem [shape: bf16[2,2,32,64], index: 5, kind: input, shape index: {}]
  %s6 = inlined_call_operand.vmem [shape: bf16[2,2,32,64], index: 6, kind: input, shape index: {}]
  %s7 = inlined_call_operand.vmem [shape: bf16[2,2,32,64], index: 7, kind: input, shape index: {}]
  %s8 = inlined_call_operand.vmem [shape: f32[2,2,1,64], index: 8, kind: input, shape index: {}]
  %s9 = inlined_call_operand.vmem [shape: f32[2,2,1,64], index: 9, kind: input, shape index: {}]
  %s10 = inlined_call_operand.vmem [shape: f32[2,2,1,64], index: 10, kind: input, shape index: {}]
  %s11 = inlined_call_operand.vmem [shape: f32[2,2,1,64], index: 11, kind: input, shape index: {}]
  %s12 = inlined_call_operand.vmem [shape: bf16[256,256], index: 12, kind: input, shape index: {}]
  %s13 = inlined_call_operand.vmem [shape: bf16[256,256], index: 13, kind: input, shape index: {}]
  %s14 = inlined_call_operand.vmem [shape: bf16[2,2,256,256], index: 14, kind: input, shape index: {}]
  %s15 = inlined_call_operand.vmem [shape: bf16[2,2,448,32], index: 15, kind: input, shape index: {}]
  %s16 = inlined_call_operand.vmem [shape: f32[2,2,1,32], index: 16, kind: input, shape index: {}]
  %s17 = inlined_call_operand.vmem [shape: f32[2,2,32,64], index: 17, kind: output, shape index: {}]
  %s18 = sld [smem:[#allocation0]]
  $region105: #{encoder_forward.2} parent=0
    _
  %s20 = ssub.s32 1, %s18
  %s21 = scalar_select 0, %s20, %s18
  loop: start=0, step=1, limit=6
  $region2: #{encoder_forward.2} parent=0 // loop_pre_header
    _
  $region3: #{encoder_forward.2} parent=0 // loop_header
    %s23 = sphi 0, %s27
    %p24 = scmp.ge.s32.totalorder %s23, 6
    %s30 = sphi 0, %s42
    %s31 = sphi 0, %s38
    %s32 = sphi 0, %s30
    %s33 = sphi 0, %s31
    %s34 = sphi 0, %s32
    %s35 = sphi 0, %s33
    %s45 = sphi 0, %s47
    %s48 = sphi 0, %s45
    %s49 = sphi 0, %s48
    %s65 = sphi 0, %s49
    %s69 = sphi 0, %s69
    %s71 = sphi 0, %s69
    %s72 = sphi 0, %s71
    %s86 = sphi 0, %s72
    %s90 = sphi 0, %s90
    %s92 = sphi 0, %s90
    %s93 = sphi 0, %s92
    %s107 = sphi 0, %s93
    %s111 = sphi 0, %s111
    %s113 = sphi 0, %s111
    %s114 = sphi 0, %s113
    %s128 = sphi 0, %s114
    %s132 = sphi 0, %s132
    %s134 = sphi 0, %s132
    %s135 = sphi 0, %s134
    %s149 = sphi 0, %s135
    %s157 = sphi 0, %s159
    %s160 = sphi 0, %s157
    %s161 = sphi 0, %s160
    %s177 = sphi 0, %s161
    %s185 = sphi 0, %s187
    %s188 = sphi 0, %s185
    %s189 = sphi 0, %s188
    %s205 = sphi 0, %s189
    %s213 = sphi 0, %s215
    %s216 = sphi 0, %s213
    %s217 = sphi 0, %s216
    %s233 = sphi 0, %s217
    %s241 = sphi 0, %s243
    %s244 = sphi 0, %s241
    %s245 = sphi 0, %s244
    %s261 = sphi 0, %s245
    %s269 = sphi 0, %s271
    %s272 = sphi 0, %s269
    %s273 = sphi 0, %s272
    %s289 = sphi 0, %s273
    %s297 = sphi 0, %s299
    %s300 = sphi 0, %s297
    %s301 = sphi 0, %s300
    %s317 = sphi 0, %s301
    %s325 = sphi 0, %s327
    %s328 = sphi 0, %s325
    %s329 = sphi 0, %s328
    %s345 = sphi 0, %s329
    %s349 = sphi 0, %s349
    %s351 = sphi 0, %s349
    %s352 = sphi 0, %s351
    %s366 = sphi 0, %s352
    %s370 = sphi 0, %s370
    %s372 = sphi 0, %s370
    %s373 = sphi 0, %s372
    %s387 = sphi 0, %s373
    %s395 = sphi 0, %s397
    %s398 = sphi 0, %s395
    %s399 = sphi 0, %s398
    %s415 = sphi 0, %s399
    %s423 = sphi 0, %s425
    %s426 = sphi 0, %s423
    %s427 = sphi 0, %s426
    %s443 = sphi 0, %s427
    %s451 = sphi 0, %s453
    %s454 = sphi 0, %s451
    %s455 = sphi 0, %s454
    %s471 = sphi 0, %s455
    %s479 = sphi 0, %s481
    %s482 = sphi 0, %s479
    %s483 = sphi 0, %s482
    %s499 = sphi 0, %s483
  $region4: #{encoder_forward.2} parent=0 // loop_header_branch
    %26 = sbr.rel (%p24) target = $region8
  $region5: #{encoder_forward.2} parent=0 // loop_body
    %s28 = ssub.s32 %s23, 1
    %s29 = ssub.s32 %s23, 2
    %s36 = sadd.s32 1, %s31
    %p37 = scmp.ge.s32.totalorder %s36, 2
    %s38 = scalar_select %p37, 0, %s36
    %s39 = sadd.s32 1, %s30
    %s40 = scalar_select %p37, %s39, %s30
    %p41 = scmp.ge.s32.totalorder %s40, 2
    %s42 = scalar_select %p41, 0, %s40
    %s43 = ssub.s32 %s30, %s42
    %p44 = scmp.eq.s32.totalorder %s43, 0
    %s46 = sadd.s32 %s45, 1
    %s47 = scalar_select %p44, %s45, %s46
    %p50 = pneg %p44
    %p51 = scmp.eq.s32.totalorder %s23, 3
    %p52 = por %p50, %p51
    %p53 = scmp.ne.s32.totalorder %s45, %s48
    %p54 = scmp.eq.s32.totalorder %s23, 0
    %p55 = por %p53, %p54
    %p56 = scmp.ne.s32.totalorder %s45, %s48
    %p57 = scmp.eq.s32.totalorder %s28, 3
    %p58 = por %p56, %p57
    %p59 = scmp.ne.s32.totalorder %s48, %s49
    %p60 = scmp.eq.s32.totalorder %s28, 0
    %p61 = por %p59, %p60
    %p62 = scmp.ne.s32.totalorder %s48, %s49
    %p63 = scmp.eq.s32.totalorder %s29, 3
    %p64 = por %p62, %p63
    %p66 = scmp.ne.s32.totalorder %s49, %s65
    %p67 = scmp.eq.s32.totalorder %s29, 0
    %p68 = por %p66, %p67
    %s70 = sadd.s32 %s69, 1
    %p73 = scmp.eq.s32.totalorder %s23, 3
    %p74 = scmp.ne.s32.totalorder %s69, %s71
    %p75 = scmp.eq.s32.totalorder %s23, 0
    %p76 = por %p74, %p75
    %p77 = scmp.ne.s32.totalorder %s69, %s71
    %p78 = scmp.eq.s32.totalorder %s28, 3
    %p79 = por %p77, %p78
    %p80 = scmp.ne.s32.totalorder %s71, %s72
    %p81 = scmp.eq.s32.totalorder %s28, 0
    %p82 = por %p80, %p81
    %p83 = scmp.ne.s32.totalorder %s71, %s72
    %p84 = scmp.eq.s32.totalorder %s29, 3
    %p85 = por %p83, %p84
    %p87 = scmp.ne.s32.totalorder %s72, %s86
    %p88 = scmp.eq.s32.totalorder %s29, 0
    %p89 = por %p87, %p88
    %s91 = sadd.s32 %s90, 1
    %p94 = scmp.eq.s32.totalorder %s23, 3
    %p95 = scmp.ne.s32.totalorder %s90, %s92
    %p96 = scmp.eq.s32.totalorder %s23, 0
    %p97 = por %p95, %p96
    %p98 = scmp.ne.s32.totalorder %s90, %s92
    %p99 = scmp.eq.s32.totalorder %s28, 3
    %p100 = por %p98, %p99
    %p101 = scmp.ne.s32.totalorder %s92, %s93
    %p102 = scmp.eq.s32.totalorder %s28, 0
    %p103 = por %p101, %p102
    %p104 = scmp.ne.s32.totalorder %s92, %s93
    %p105 = scmp.eq.s32.totalorder %s29, 3
    %p106 = por %p104, %p105
    %p108 = scmp.ne.s32.totalorder %s93, %s107
    %p109 = scmp.eq.s32.totalorder %s29, 0
    %p110 = por %p108, %p109
    %s112 = sadd.s32 %s111, 1
    %p115 = scmp.eq.s32.totalorder %s23, 3
    %p116 = scmp.ne.s32.totalorder %s111, %s113
    %p117 = scmp.eq.s32.totalorder %s23, 0
    %p118 = por %p116, %p117
    %p119 = scmp.ne.s32.totalorder %s111, %s113
    %p120 = scmp.eq.s32.totalorder %s28, 3
    %p121 = por %p119, %p120
    %p122 = scmp.ne.s32.totalorder %s113, %s114
    %p123 = scmp.eq.s32.totalorder %s28, 0
    %p124 = por %p122, %p123
    %p125 = scmp.ne.s32.totalorder %s113, %s114
    %p126 = scmp.eq.s32.totalorder %s29, 3
    %p127 = por %p125, %p126
    %p129 = scmp.ne.s32.totalorder %s114, %s128
    %p130 = scmp.eq.s32.totalorder %s29, 0
    %p131 = por %p129, %p130
    %s133 = sadd.s32 %s132, 1
    %p136 = scmp.eq.s32.totalorder %s23, 3
    %p137 = scmp.ne.s32.totalorder %s132, %s134
    %p138 = scmp.eq.s32.totalorder %s23, 0
    %p139 = por %p137, %p138
    %p140 = scmp.ne.s32.totalorder %s132, %s134
    %p141 = scmp.eq.s32.totalorder %s28, 3
    %p142 = por %p140, %p141
    %p143 = scmp.ne.s32.totalorder %s134, %s135
    %p144 = scmp.eq.s32.totalorder %s28, 0
    %p145 = por %p143, %p144
    %p146 = scmp.ne.s32.totalorder %s134, %s135
    %p147 = scmp.eq.s32.totalorder %s29, 3
    %p148 = por %p146, %p147
    %p150 = scmp.ne.s32.totalorder %s135, %s149
    %p151 = scmp.eq.s32.totalorder %s29, 0
    %p152 = por %p150, %p151
    %s153 = ssub.s32 %s30, %s42
    %s154 = ssub.s32 %s31, %s38
    %s155 = sor.u32 %s153, %s154
    %p156 = scmp.eq.s32.totalorder %s155, 0
    %s158 = sadd.s32 %s157, 1
    %s159 = scalar_select %p156, %s157, %s158
    %p162 = pneg %p156
    %p163 = scmp.eq.s32.totalorder %s23, 3
    %p164 = por %p162, %p163
    %p165 = scmp.ne.s32.totalorder %s157, %s160
    %p166 = scmp.eq.s32.totalorder %s23, 0
    %p167 = por %p165, %p166
    %p168 = scmp.ne.s32.totalorder %s157, %s160
    %p169 = scmp.eq.s32.totalorder %s28, 3
    %p170 = por %p168, %p169
    %p171 = scmp.ne.s32.totalorder %s160, %s161
    %p172 = scmp.eq.s32.totalorder %s28, 0
    %p173 = por %p171, %p172
    %p174 = scmp.ne.s32.totalorder %s160, %s161
    %p175 = scmp.eq.s32.totalorder %s29, 3
    %p176 = por %p174, %p175
    %p178 = scmp.ne.s32.totalorder %s161, %s177
    %p179 = scmp.eq.s32.totalorder %s29, 0
    %p180 = por %p178, %p179
    %s181 = ssub.s32 %s30, %s42
    %s182 = ssub.s32 %s31, %s38
    %s183 = sor.u32 %s181, %s182
    %p184 = scmp.eq.s32.totalorder %s183, 0
    %s186 = sadd.s32 %s185, 1
    %s187 = scalar_select %p184, %s185, %s186
    %p190 = pneg %p184
    %p191 = scmp.eq.s32.totalorder %s23, 3
    %p192 = por %p190, %p191
    %p193 = scmp.ne.s32.totalorder %s185, %s188
    %p194 = scmp.eq.s32.totalorder %s23, 0
    %p195 = por %p193, %p194
    %p196 = scmp.ne.s32.totalorder %s185, %s188
    %p197 = scmp.eq.s32.totalorder %s28, 3
    %p198 = por %p196, %p197
    %p199 = scmp.ne.s32.totalorder %s188, %s189
    %p200 = scmp.eq.s32.totalorder %s28, 0
    %p201 = por %p199, %p200
    %p202 = scmp.ne.s32.totalorder %s188, %s189
    %p203 = scmp.eq.s32.totalorder %s29, 3
    %p204 = por %p202, %p203
    %p206 = scmp.ne.s32.totalorder %s189, %s205
    %p207 = scmp.eq.s32.totalorder %s29, 0
    %p208 = por %p206, %p207
    %s209 = ssub.s32 %s30, %s42
    %s210 = ssub.s32 %s31, %s38
    %s211 = sor.u32 %s209, %s210
    %p212 = scmp.eq.s32.totalorder %s211, 0
    %s214 = sadd.s32 %s213, 1
    %s215 = scalar_select %p212, %s213, %s214
    %p218 = pneg %p212
    %p219 = scmp.eq.s32.totalorder %s23, 3
    %p220 = por %p218, %p219
    %p221 = scmp.ne.s32.totalorder %s213, %s216
    %p222 = scmp.eq.s32.totalorder %s23, 0
    %p223 = por %p221, %p222
    %p224 = scmp.ne.s32.totalorder %s213, %s216
    %p225 = scmp.eq.s32.totalorder %s28, 3
    %p226 = por %p224, %p225
    %p227 = scmp.ne.s32.totalorder %s216, %s217
    %p228 = scmp.eq.s32.totalorder %s28, 0
    %p229 = por %p227, %p228
    %p230 = scmp.ne.s32.totalorder %s216, %s217
    %p231 = scmp.eq.s32.totalorder %s29, 3
    %p232 = por %p230, %p231
    %p234 = scmp.ne.s32.totalorder %s217, %s233
    %p235 = scmp.eq.s32.totalorder %s29, 0
    %p236 = por %p234, %p235
    %s237 = ssub.s32 %s30, %s42
    %s238 = ssub.s32 %s31, %s38
    %s239 = sor.u32 %s237, %s238
    %p240 = scmp.eq.s32.totalorder %s239, 0
    %s242 = sadd.s32 %s241, 1
    %s243 = scalar_select %p240, %s241, %s242
    %p246 = pneg %p240
    %p247 = scmp.eq.s32.totalorder %s23, 3
    %p248 = por %p246, %p247
    %p249 = scmp.ne.s32.totalorder %s241, %s244
    %p250 = scmp.eq.s32.totalorder %s23, 0
    %p251 = por %p249, %p250
    %p252 = scmp.ne.s32.totalorder %s241, %s244
    %p253 = scmp.eq.s32.totalorder %s28, 3
    %p254 = por %p252, %p253
    %p255 = scmp.ne.s32.totalorder %s244, %s245
    %p256 = scmp.eq.s32.totalorder %s28, 0
    %p257 = por %p255, %p256
    %p258 = scmp.ne.s32.totalorder %s244, %s245
    %p259 = scmp.eq.s32.totalorder %s29, 3
    %p260 = por %p258, %p259
    %p262 = scmp.ne.s32.totalorder %s245, %s261
    %p263 = scmp.eq.s32.totalorder %s29, 0
    %p264 = por %p262, %p263
    %s265 = ssub.s32 %s30, %s42
    %s266 = ssub.s32 %s31, %s38
    %s267 = sor.u32 %s265, %s266
    %p268 = scmp.eq.s32.totalorder %s267, 0
    %s270 = sadd.s32 %s269, 1
    %s271 = scalar_select %p268, %s269, %s270
    %p274 = pneg %p268
    %p275 = scmp.eq.s32.totalorder %s23, 3
    %p276 = por %p274, %p275
    %p277 = scmp.ne.s32.totalorder %s269, %s272
    %p278 = scmp.eq.s32.totalorder %s23, 0
    %p279 = por %p277, %p278
    %p280 = scmp.ne.s32.totalorder %s269, %s272
    %p281 = scmp.eq.s32.totalorder %s28, 3
    %p282 = por %p280, %p281
    %p283 = scmp.ne.s32.totalorder %s272, %s273
    %p284 = scmp.eq.s32.totalorder %s28, 0
    %p285 = por %p283, %p284
    %p286 = scmp.ne.s32.totalorder %s272, %s273
    %p287 = scmp.eq.s32.totalorder %s29, 3
    %p288 = por %p286, %p287
    %p290 = scmp.ne.s32.totalorder %s273, %s289
    %p291 = scmp.eq.s32.totalorder %s29, 0
    %p292 = por %p290, %p291
    %s293 = ssub.s32 %s30, %s42
    %s294 = ssub.s32 %s31, %s38
    %s295 = sor.u32 %s293, %s294
    %p296 = scmp.eq.s32.totalorder %s295, 0
    %s298 = sadd.s32 %s297, 1
    %s299 = scalar_select %p296, %s297, %s298
    %p302 = pneg %p296
    %p303 = scmp.eq.s32.totalorder %s23, 3
    %p304 = por %p302, %p303
    %p305 = scmp.ne.s32.totalorder %s297, %s300
    %p306 = scmp.eq.s32.totalorder %s23, 0
    %p307 = por %p305, %p306
    %p308 = scmp.ne.s32.totalorder %s297, %s300
    %p309 = scmp.eq.s32.totalorder %s28, 3
    %p310 = por %p308, %p309
    %p311 = scmp.ne.s32.totalorder %s300, %s301
    %p312 = scmp.eq.s32.totalorder %s28, 0
    %p313 = por %p311, %p312
    %p314 = scmp.ne.s32.totalorder %s300, %s301
    %p315 = scmp.eq.s32.totalorder %s29, 3
    %p316 = por %p314, %p315
    %p318 = scmp.ne.s32.totalorder %s301, %s317
    %p319 = scmp.eq.s32.totalorder %s29, 0
    %p320 = por %p318, %p319
    %s321 = ssub.s32 %s30, %s42
    %s322 = ssub.s32 %s31, %s38
    %s323 = sor.u32 %s321, %s322
    %p324 = scmp.eq.s32.totalorder %s323, 0
    %s326 = sadd.s32 %s325, 1
    %s327 = scalar_select %p324, %s325, %s326
    %p330 = pneg %p324
    %p331 = scmp.eq.s32.totalorder %s23, 3
    %p332 = por %p330, %p331
    %p333 = scmp.ne.s32.totalorder %s325, %s328
    %p334 = scmp.eq.s32.totalorder %s23, 0
    %p335 = por %p333, %p334
    %p336 = scmp.ne.s32.totalorder %s325, %s328
    %p337 = scmp.eq.s32.totalorder %s28, 3
    %p338 = por %p336, %p337
    %p339 = scmp.ne.s32.totalorder %s328, %s329
    %p340 = scmp.eq.s32.totalorder %s28, 0
    %p341 = por %p339, %p340
    %p342 = scmp.ne.s32.totalorder %s328, %s329
    %p343 = scmp.eq.s32.totalorder %s29, 3
    %p344 = por %p342, %p343
    %p346 = scmp.ne.s32.totalorder %s329, %s345
    %p347 = scmp.eq.s32.totalorder %s29, 0
    %p348 = por %p346, %p347
    %s350 = sadd.s32 %s349, 1
    %p353 = scmp.eq.s32.totalorder %s23, 3
    %p354 = scmp.ne.s32.totalorder %s349, %s351
    %p355 = scmp.eq.s32.totalorder %s23, 0
    %p356 = por %p354, %p355
    %p357 = scmp.ne.s32.totalorder %s349, %s351
    %p358 = scmp.eq.s32.totalorder %s28, 3
    %p359 = por %p357, %p358
    %p360 = scmp.ne.s32.totalorder %s351, %s352
    %p361 = scmp.eq.s32.totalorder %s28, 0
    %p362 = por %p360, %p361
    %p363 = scmp.ne.s32.totalorder %s351, %s352
    %p364 = scmp.eq.s32.totalorder %s29, 3
    %p365 = por %p363, %p364
    %p367 = scmp.ne.s32.totalorder %s352, %s366
    %p368 = scmp.eq.s32.totalorder %s29, 0
    %p369 = por %p367, %p368
    %s371 = sadd.s32 %s370, 1
    %p374 = scmp.eq.s32.totalorder %s23, 3
    %p375 = scmp.ne.s32.totalorder %s370, %s372
    %p376 = scmp.eq.s32.totalorder %s23, 0
    %p377 = por %p375, %p376
    %p378 = scmp.ne.s32.totalorder %s370, %s372
    %p379 = scmp.eq.s32.totalorder %s28, 3
    %p380 = por %p378, %p379
    %p381 = scmp.ne.s32.totalorder %s372, %s373
    %p382 = scmp.eq.s32.totalorder %s28, 0
    %p383 = por %p381, %p382
    %p384 = scmp.ne.s32.totalorder %s372, %s373
    %p385 = scmp.eq.s32.totalorder %s29, 3
    %p386 = por %p384, %p385
    %p388 = scmp.ne.s32.totalorder %s373, %s387
    %p389 = scmp.eq.s32.totalorder %s29, 0
    %p390 = por %p388, %p389
    %s391 = ssub.s32 %s30, %s42
    %s392 = ssub.s32 %s31, %s38
    %s393 = sor.u32 %s391, %s392
    %p394 = scmp.eq.s32.totalorder %s393, 0
    %s396 = sadd.s32 %s395, 1
    %s397 = scalar_select %p394, %s395, %s396
    %p400 = pneg %p394
    %p401 = scmp.eq.s32.totalorder %s23, 3
    %p402 = por %p400, %p401
    %p403 = scmp.ne.s32.totalorder %s395, %s398
    %p404 = scmp.eq.s32.totalorder %s23, 0
    %p405 = por %p403, %p404
    %p406 = scmp.ne.s32.totalorder %s395, %s398
    %p407 = scmp.eq.s32.totalorder %s28, 3
    %p408 = por %p406, %p407
    %p409 = scmp.ne.s32.totalorder %s398, %s399
    %p410 = scmp.eq.s32.totalorder %s28, 0
    %p411 = por %p409, %p410
    %p412 = scmp.ne.s32.totalorder %s398, %s399
    %p413 = scmp.eq.s32.totalorder %s29, 3
    %p414 = por %p412, %p413
    %p416 = scmp.ne.s32.totalorder %s399, %s415
    %p417 = scmp.eq.s32.totalorder %s29, 0
    %p418 = por %p416, %p417
    %s419 = ssub.s32 %s30, %s42
    %s420 = ssub.s32 %s31, %s38
    %s421 = sor.u32 %s419, %s420
    %p422 = scmp.eq.s32.totalorder %s421, 0
    %s424 = sadd.s32 %s423, 1
    %s425 = scalar_select %p422, %s423, %s424
    %p428 = pneg %p422
    %p429 = scmp.eq.s32.totalorder %s23, 3
    %p430 = por %p428, %p429
    %p431 = scmp.ne.s32.totalorder %s423, %s426
    %p432 = scmp.eq.s32.totalorder %s23, 0
    %p433 = por %p431, %p432
    %p434 = scmp.ne.s32.totalorder %s423, %s426
    %p435 = scmp.eq.s32.totalorder %s28, 3
    %p436 = por %p434, %p435
    %p437 = scmp.ne.s32.totalorder %s426, %s427
    %p438 = scmp.eq.s32.totalorder %s28, 0
    %p439 = por %p437, %p438
    %p440 = scmp.ne.s32.totalorder %s426, %s427
    %p441 = scmp.eq.s32.totalorder %s29, 3
    %p442 = por %p440, %p441
    %p444 = scmp.ne.s32.totalorder %s427, %s443
    %p445 = scmp.eq.s32.totalorder %s29, 0
    %p446 = por %p444, %p445
    %s447 = ssub.s32 %s30, %s42
    %s448 = ssub.s32 %s31, %s38
    %s449 = sor.u32 %s447, %s448
    %p450 = scmp.eq.s32.totalorder %s449, 0
    %s452 = sadd.s32 %s451, 1
    %s453 = scalar_select %p450, %s451, %s452
    %p456 = pneg %p450
    %p457 = scmp.eq.s32.totalorder %s23, 3
    %p458 = por %p456, %p457
    %p459 = scmp.ne.s32.totalorder %s451, %s454
    %p460 = scmp.eq.s32.totalorder %s23, 0
    %p461 = por %p459, %p460
    %p462 = scmp.ne.s32.totalorder %s451, %s454
    %p463 = scmp.eq.s32.totalorder %s28, 3
    %p464 = por %p462, %p463
    %p465 = scmp.ne.s32.totalorder %s454, %s455
    %p466 = scmp.eq.s32.totalorder %s28, 0
    %p467 = por %p465, %p466
    %p468 = scmp.ne.s32.totalorder %s454, %s455
    %p469 = scmp.eq.s32.totalorder %s29, 3
    %p470 = por %p468, %p469
    %p472 = scmp.ne.s32.totalorder %s455, %s471
    %p473 = scmp.eq.s32.totalorder %s29, 0
    %p474 = por %p472, %p473
    %s475 = ssub.s32 %s30, %s42
    %s476 = ssub.s32 %s31, %s38
    %s477 = sor.u32 %s475, %s476
    %p478 = scmp.eq.s32.totalorder %s477, 0
    %s480 = sadd.s32 %s479, 1
    %s481 = scalar_select %p478, %s479, %s480
    %p484 = pneg %p478
    %p485 = scmp.eq.s32.totalorder %s23, 3
    %p486 = por %p484, %p485
    %p487 = scmp.ne.s32.totalorder %s479, %s482
    %p488 = scmp.eq.s32.totalorder %s23, 0
    %p489 = por %p487, %p488
    %p490 = scmp.ne.s32.totalorder %s479, %s482
    %p491 = scmp.eq.s32.totalorder %s28, 3
    %p492 = por %p490, %p491
    %p493 = scmp.ne.s32.totalorder %s482, %s483
    %p494 = scmp.eq.s32.totalorder %s28, 0
    %p495 = por %p493, %p494
    %p496 = scmp.ne.s32.totalorder %s482, %s483
    %p497 = scmp.eq.s32.totalorder %s29, 3
    %p498 = por %p496, %p497
    %p500 = scmp.ne.s32.totalorder %s483, %s499
    %p501 = scmp.eq.s32.totalorder %s29, 0
    %p502 = por %p500, %p501
    %p503 = scmp.le.s32.totalorder 1, %s23
    %p504 = scmp.lt.s32.totalorder %s23, 5
    %p505 = pnand %p503, %p504
    %p506 = pneg %p505
    // Predicated region
    $region9: #{encoder_forward.2} parent=5 // pred_check
      _
    $region10: #{encoder_forward.2} parent=5 // pred_check_branch
      %508 = sbr.rel (%p505) target = $region12
    $region11: #{encoder_forward.2} parent=5 // pred_region
      %s509 = ssub.s32 %s23, 1
      // Predicated region
      $region13: #{encoder_forward.2} parent=11 // pred_check
        %p510 = pneg %p82
      $region14: #{encoder_forward.2} parent=11 // pred_check_branch
        %512 = sbr.rel (%p510) target = $region16
      $region15: #{encoder_forward.2} parent=11 // pred_region
        _
      $region16: #{encoder_forward.2} parent=11 // pred_fallthru
        _
      // Predicated region
      $region17: #{encoder_forward.2} parent=11 // pred_check
        %p513 = pneg %p103
      $region18: #{encoder_forward.2} parent=11 // pred_check_branch
        %515 = sbr.rel (%p513) target = $region20
      $region19: #{encoder_forward.2} parent=11 // pred_region
        _
      $region20: #{encoder_forward.2} parent=11 // pred_fallthru
        _
      // Predicated region
      $region21: #{encoder_forward.2} parent=11 // pred_check
        %p516 = pneg %p124
      $region22: #{encoder_forward.2} parent=11 // pred_check_branch
        %518 = sbr.rel (%p516) target = $region24
      $region23: #{encoder_forward.2} parent=11 // pred_region
        _
      $region24: #{encoder_forward.2} parent=11 // pred_fallthru
        _
      // Predicated region
      $region25: #{encoder_forward.2} parent=11 // pred_check
        %p519 = pneg %p145
      $region26: #{encoder_forward.2} parent=11 // pred_check_branch
        %521 = sbr.rel (%p519) target = $region28
      $region27: #{encoder_forward.2} parent=11 // pred_region
        _
      $region28: #{encoder_forward.2} parent=11 // pred_fallthru
        _
      // Predicated region
      $region29: #{encoder_forward.2} parent=11 // pred_check
        %p522 = pneg %p362
      $region30: #{encoder_forward.2} parent=11 // pred_check_branch
        %524 = sbr.rel (%p522) target = $region32
      $region31: #{encoder_forward.2} parent=11 // pred_region
        _
      $region32: #{encoder_forward.2} parent=11 // pred_fallthru
        _
      // Predicated region
      $region33: #{encoder_forward.2} parent=11 // pred_check
        %p525 = pneg %p383
      $region34: #{encoder_forward.2} parent=11 // pred_check_branch
        %527 = sbr.rel (%p525) target = $region36
      $region35: #{encoder_forward.2} parent=11 // pred_region
        _
      $region36: #{encoder_forward.2} parent=11 // pred_fallthru
        _
    $region12: #{encoder_forward.2} parent=5 // pred_fallthru
      _
    %p528 = scmp.lt.s32.totalorder %s23, 4
    // Predicated region
    $region37: #{encoder_forward.2} parent=5 // pred_check
      %p529 = pneg %p528
    $region38: #{encoder_forward.2} parent=5 // pred_check_branch
      %531 = sbr.rel (%p529) target = $region40
    $region39: #{encoder_forward.2} parent=5 // pred_region
      // Predicated region
      $region41: #{encoder_forward.2} parent=39 // pred_check
        %p532 = pneg %p55
      $region42: #{encoder_forward.2} parent=39 // pred_check_branch
        %534 = sbr.rel (%p532) target = $region44
      $region43: #{encoder_forward.2} parent=39 // pred_region
        %p535 = scmp.lt.s32.totalorder %s30, 1
        %s536 = scalar_select %p535, %s30, 1
        %s537 = smul.addr %s536, 32
        %s538 = smul.addr %s537, 8
        %s539 = scalar_lea.vmem %s0, %s538
      $region44: #{encoder_forward.2} parent=39 // pred_fallthru
        _
      // Predicated region
      $region45: #{encoder_forward.2} parent=39 // pred_check
        %p540 = pneg %p167
      $region46: #{encoder_forward.2} parent=39 // pred_check_branch
        %542 = sbr.rel (%p540) target = $region48
      $region47: #{encoder_forward.2} parent=39 // pred_region
        %p543 = scmp.lt.s32.totalorder %s30, 1
        %s544 = scalar_select %p543, %s30, 1
        %p545 = scmp.lt.s32.totalorder %s31, 1
        %s546 = scalar_select %p545, %s31, 1
        %s547 = smul.addr %s546, 4
        %s548 = smul.addr %s544, 8
        %s549 = sadd.s32 %s547, %s548
        %s550 = smul.addr %s549, 4
        %s551 = scalar_lea.vmem %s5, %s550
      $region48: #{encoder_forward.2} parent=39 // pred_fallthru
        _
      // Predicated region
      $region49: #{encoder_forward.2} parent=39 // pred_check
        %p552 = pneg %p195
      $region50: #{encoder_forward.2} parent=39 // pred_check_branch
        %554 = sbr.rel (%p552) target = $region52
      $region51: #{encoder_forward.2} parent=39 // pred_region
        %p555 = scmp.lt.s32.totalorder %s30, 1
        %s556 = scalar_select %p555, %s30, 1
        %p557 = scmp.lt.s32.totalorder %s31, 1
        %s558 = scalar_select %p557, %s31, 1
        %s559 = smul.addr %s558, 4
        %s560 = smul.addr %s556, 8
        %s561 = sadd.s32 %s559, %s560
        %s562 = smul.addr %s561, 4
        %s563 = scalar_lea.vmem %s6, %s562
      $region52: #{encoder_forward.2} parent=39 // pred_fallthru
        _
      // Predicated region
      $region53: #{encoder_forward.2} parent=39 // pred_check
        %p564 = pneg %p223
      $region54: #{encoder_forward.2} parent=39 // pred_check_branch
        %566 = sbr.rel (%p564) target = $region56
      $region55: #{encoder_forward.2} parent=39 // pred_region
        %p567 = scmp.lt.s32.totalorder %s30, 1
        %s568 = scalar_select %p567, %s30, 1
        %p569 = scmp.lt.s32.totalorder %s31, 1
        %s570 = scalar_select %p569, %s31, 1
        %s571 = smul.addr %s570, 4
        %s572 = smul.addr %s568, 8
        %s573 = sadd.s32 %s571, %s572
        %s574 = smul.addr %s573, 4
        %s575 = scalar_lea.vmem %s7, %s574
      $region56: #{encoder_forward.2} parent=39 // pred_fallthru
        _
      // Predicated region
      $region57: #{encoder_forward.2} parent=39 // pred_check
        %p576 = pneg %p251
      $region58: #{encoder_forward.2} parent=39 // pred_check_branch
        %578 = sbr.rel (%p576) target = $region60
      $region59: #{encoder_forward.2} parent=39 // pred_region
        %p579 = scmp.lt.s32.totalorder %s30, 1
        %s580 = scalar_select %p579, %s30, 1
        %p581 = scmp.lt.s32.totalorder %s31, 1
        %s582 = scalar_select %p581, %s31, 1
        %s583 = smul.addr %s580, 2
        %s584 = sadd.s32 %s582, %s583
        %s585 = scalar_lea.vmem %s8, %s584
      $region60: #{encoder_forward.2} parent=39 // pred_fallthru
        _
      // Predicated region
      $region61: #{encoder_forward.2} parent=39 // pred_check
        %p586 = pneg %p279
      $region62: #{encoder_forward.2} parent=39 // pred_check_branch
        %588 = sbr.rel (%p586) target = $region64
      $region63: #{encoder_forward.2} parent=39 // pred_region
        %p589 = scmp.lt.s32.totalorder %s30, 1
        %s590 = scalar_select %p589, %s30, 1
        %p591 = scmp.lt.s32.totalorder %s31, 1
        %s592 = scalar_select %p591, %s31, 1
        %s593 = smul.addr %s590, 2
        %s594 = sadd.s32 %s592, %s593
        %s595 = scalar_lea.vmem %s9, %s594
      $region64: #{encoder_forward.2} parent=39 // pred_fallthru
        _
      // Predicated region
      $region65: #{encoder_forward.2} parent=39 // pred_check
        %p596 = pneg %p307
      $region66: #{encoder_forward.2} parent=39 // pred_check_branch
        %598 = sbr.rel (%p596) target = $region68
      $region67: #{encoder_forward.2} parent=39 // pred_region
        %p599 = scmp.lt.s32.totalorder %s30, 1
        %s600 = scalar_select %p599, %s30, 1
        %p601 = scmp.lt.s32.totalorder %s31, 1
        %s602 = scalar_select %p601, %s31, 1
        %s603 = smul.addr %s600, 2
        %s604 = sadd.s32 %s602, %s603
        %s605 = scalar_lea.vmem %s10, %s604
      $region68: #{encoder_forward.2} parent=39 // pred_fallthru
        _
      // Predicated region
      $region69: #{encoder_forward.2} parent=39 // pred_check
        %p606 = pneg %p335
      $region70: #{encoder_forward.2} parent=39 // pred_check_branch
        %608 = sbr.rel (%p606) target = $region72
      $region71: #{encoder_forward.2} parent=39 // pred_region
        %p609 = scmp.lt.s32.totalorder %s30, 1
        %s610 = scalar_select %p609, %s30, 1
        %p611 = scmp.lt.s32.totalorder %s31, 1
        %s612 = scalar_select %p611, %s31, 1
        %s613 = smul.addr %s610, 2
        %s614 = sadd.s32 %s612, %s613
        %s615 = scalar_lea.vmem %s11, %s614
      $region72: #{encoder_forward.2} parent=39 // pred_fallthru
        _
      // Predicated region
      $region73: #{encoder_forward.2} parent=39 // pred_check
        %p616 = pneg %p405
      $region74: #{encoder_forward.2} parent=39 // pred_check_branch
        %618 = sbr.rel (%p616) target = $region76
      $region75: #{encoder_forward.2} parent=39 // pred_region
        %p619 = scmp.lt.s32.totalorder %s30, 1
        %s620 = scalar_select %p619, %s30, 1
        %p621 = scmp.lt.s32.totalorder %s31, 1
        %s622 = scalar_select %p621, %s31, 1
        %s623 = smul.addr %s622, 64
        %s624 = smul.addr %s620, 128
        %s625 = sadd.s32 %s623, %s624
        %s626 = smul.addr %s625, 4
        %s627 = scalar_lea.vmem %s14, %s626
      $region76: #{encoder_forward.2} parent=39 // pred_fallthru
        _
      // Predicated region
      $region77: #{encoder_forward.2} parent=39 // pred_check
        %p628 = pneg %p433
      $region78: #{encoder_forward.2} parent=39 // pred_check_branch
        %630 = sbr.rel (%p628) target = $region80
      $region79: #{encoder_forward.2} parent=39 // pred_region
        %p631 = scmp.lt.s32.totalorder %s30, 1
        %s632 = scalar_select %p631, %s30, 1
        %p633 = scmp.lt.s32.totalorder %s31, 1
        %s634 = scalar_select %p633, %s31, 1
        %s635 = smul.addr %s634, 56
        %s636 = smul.addr %s632, 112
        %s637 = sadd.s32 %s635, %s636
        %s638 = smul.addr %s637, 4
        %s639 = scalar_lea.vmem %s15, %s638
      $region80: #{encoder_forward.2} parent=39 // pred_fallthru
        _
      // Predicated region
      $region81: #{encoder_forward.2} parent=39 // pred_check
        %p640 = pneg %p461
      $region82: #{encoder_forward.2} parent=39 // pred_check_branch
        %642 = sbr.rel (%p640) target = $region84
      $region83: #{encoder_forward.2} parent=39 // pred_region
        %p643 = scmp.lt.s32.totalorder %s30, 1
        %s644 = scalar_select %p643, %s30, 1
        %p645 = scmp.lt.s32.totalorder %s31, 1
        %s646 = scalar_select %p645, %s31, 1
        %s647 = smul.addr %s644, 2
        %s648 = sadd.s32 %s646, %s647
        %s649 = scalar_lea.vmem %s16, %s648
      $region84: #{encoder_forward.2} parent=39 // pred_fallthru
        _
    $region40: #{encoder_forward.2} parent=5 // pred_fallthru
      _
    %p650 = scmp.le.s32.totalorder 1, %s23
    %p651 = scmp.lt.s32.totalorder %s23, 5
    %p652 = pnand %p650, %p651
    %p653 = pneg %p652
    // Predicated region
    $region85: #{encoder_forward.2} parent=5 // pred_check
      _
    $region86: #{encoder_forward.2} parent=5 // pred_check_branch
      %655 = sbr.rel (%p652) target = $region88
    $region87: #{encoder_forward.2} parent=5 // pred_region
      %s656 = ssub.s32 %s23, 1
      %p657 = scmp.lt.s32.totalorder %s32, 1
      %s658 = scalar_select %p657, %s32, 1
      %s659 = smul.addr %s658, 32
      %s660 = smul.addr %s659, 8
      %s661 = scalar_lea.vmem %s0, %s660
      %p662 = pneg %p61
      %p663 = pneg %p58
      %p664 = pneg %p82
      %p665 = pneg %p79
      %p666 = pneg %p103
      %p667 = pneg %p100
      %p668 = pneg %p124
      %p669 = pneg %p121
      %p670 = pneg %p145
      %p671 = pneg %p142
      %p672 = scmp.lt.s32.totalorder %s32, 1
      %s673 = scalar_select %p672, %s32, 1
      %p674 = scmp.lt.s32.totalorder %s33, 1
      %s675 = scalar_select %p674, %s33, 1
      %s676 = smul.addr %s675, 4
      %s677 = smul.addr %s673, 8
      %s678 = sadd.s32 %s676, %s677
      %s679 = smul.addr %s678, 4
      %s680 = scalar_lea.vmem %s5, %s679
      %p681 = pneg %p173
      %p682 = pneg %p170
      %p683 = scmp.lt.s32.totalorder %s32, 1
      %s684 = scalar_select %p683, %s32, 1
      %p685 = scmp.lt.s32.totalorder %s33, 1
      %s686 = scalar_select %p685, %s33, 1
      %s687 = smul.addr %s686, 4
      %s688 = smul.addr %s684, 8
      %s689 = sadd.s32 %s687, %s688
      %s690 = smul.addr %s689, 4
      %s691 = scalar_lea.vmem %s6, %s690
      %p692 = pneg %p201
      %p693 = pneg %p198
      %p694 = scmp.lt.s32.totalorder %s32, 1
      %s695 = scalar_select %p694, %s32, 1
      %p696 = scmp.lt.s32.totalorder %s33, 1
      %s697 = scalar_select %p696, %s33, 1
      %s698 = smul.addr %s697, 4
      %s699 = smul.addr %s695, 8
      %s700 = sadd.s32 %s698, %s699
      %s701 = smul.addr %s700, 4
      %s702 = scalar_lea.vmem %s7, %s701
      %p703 = pneg %p229
      %p704 = pneg %p226
      %p705 = scmp.lt.s32.totalorder %s32, 1
      %s706 = scalar_select %p705, %s32, 1
      %p707 = scmp.lt.s32.totalorder %s33, 1
      %s708 = scalar_select %p707, %s33, 1
      %s709 = smul.addr %s706, 2
      %s710 = sadd.s32 %s708, %s709
      %s711 = scalar_lea.vmem %s8, %s710
      %p712 = pneg %p257
      %p713 = pneg %p254
      %p714 = scmp.lt.s32.totalorder %s32, 1
      %s715 = scalar_select %p714, %s32, 1
      %p716 = scmp.lt.s32.totalorder %s33, 1
      %s717 = scalar_select %p716, %s33, 1
      %s718 = smul.addr %s715, 2
      %s719 = sadd.s32 %s717, %s718
      %s720 = scalar_lea.vmem %s9, %s719
      %p721 = pneg %p285
      %p722 = pneg %p282
      %p723 = scmp.lt.s32.totalorder %s32, 1
      %s724 = scalar_select %p723, %s32, 1
      %p725 = scmp.lt.s32.totalorder %s33, 1
      %s726 = scalar_select %p725, %s33, 1
      %s727 = smul.addr %s724, 2
      %s728 = sadd.s32 %s726, %s727
      %s729 = scalar_lea.vmem %s10, %s728
      %p730 = pneg %p313
      %p731 = pneg %p310
      %p732 = scmp.lt.s32.totalorder %s32, 1
      %s733 = scalar_select %p732, %s32, 1
      %p734 = scmp.lt.s32.totalorder %s33, 1
      %s735 = scalar_select %p734, %s33, 1
      %s736 = smul.addr %s733, 2
      %s737 = sadd.s32 %s735, %s736
      %s738 = scalar_lea.vmem %s11, %s737
      %p739 = pneg %p341
      %p740 = pneg %p338
      %p741 = pneg %p362
      %p742 = pneg %p359
      %p743 = pneg %p383
      %p744 = pneg %p380
      %p745 = scmp.lt.s32.totalorder %s32, 1
      %s746 = scalar_select %p745, %s32, 1
      %p747 = scmp.lt.s32.totalorder %s33, 1
      %s748 = scalar_select %p747, %s33, 1
      %s749 = smul.addr %s748, 64
      %s750 = smul.addr %s746, 128
      %s751 = sadd.s32 %s749, %s750
      %s752 = smul.addr %s751, 4
      %s753 = scalar_lea.vmem %s14, %s752
      %p754 = pneg %p411
      %p755 = pneg %p408
      %p756 = scmp.lt.s32.totalorder %s32, 1
      %s757 = scalar_select %p756, %s32, 1
      %p758 = scmp.lt.s32.totalorder %s33, 1
      %s759 = scalar_select %p758, %s33, 1
      %s760 = smul.addr %s759, 56
      %s761 = smul.addr %s757, 112
      %s762 = sadd.s32 %s760, %s761
      %s763 = smul.addr %s762, 4
      %s764 = scalar_lea.vmem %s15, %s763
      %p765 = pneg %p439
      %p766 = pneg %p436
      %p767 = scmp.lt.s32.totalorder %s32, 1
      %s768 = scalar_select %p767, %s32, 1
      %p769 = scmp.lt.s32.totalorder %s33, 1
      %s770 = scalar_select %p769, %s33, 1
      %s771 = smul.addr %s768, 2
      %s772 = sadd.s32 %s770, %s771
      %s773 = scalar_lea.vmem %s16, %s772
      %p774 = pneg %p467
      %p775 = pneg %p464
      %p776 = pneg %p495
      %p777 = pneg %p492
      %p778 = scmp.lt.s32.totalorder %s32, 1
      %s779 = scalar_select %p778, %s32, 1
      %p780 = scmp.lt.s32.totalorder %s33, 1
      %s781 = scalar_select %p780, %s33, 1
      %s782 = smul.addr %s781, 4
      %s783 = smul.addr %s779, 8
      %s784 = sadd.s32 %s782, %s783
      %s785 = smul.addr %s784, 8
      %s786 = scalar_lea.vmem %s17, %s785
      %p787 = scmp.lt.s32.totalorder %s32, 1
      %s788 = scalar_select %p787, %s32, 1
      %s789 = smul.addr %s788, 32
      %s790 = smul.addr %s789, 8
      %s791 = scalar_lea.vmem %s0, %s790
      %p792 = scmp.lt.s32.totalorder %s32, 1
      %s793 = scalar_select %p792, %s32, 1
      %p794 = scmp.lt.s32.totalorder %s33, 1
      %s795 = scalar_select %p794, %s33, 1
      %s796 = smul.addr %s795, 4
      %s797 = smul.addr %s793, 8
      %s798 = sadd.s32 %s796, %s797
      %s799 = smul.addr %s798, 4
      %s800 = scalar_lea.vmem %s5, %s799
      %p801 = scmp.lt.s32.totalorder %s32, 1
      %s802 = scalar_select %p801, %s32, 1
      %p803 = scmp.lt.s32.totalorder %s33, 1
      %s804 = scalar_select %p803, %s33, 1
      %s805 = smul.addr %s804, 4
      %s806 = smul.addr %s802, 8
      %s807 = sadd.s32 %s805, %s806
      %s808 = smul.addr %s807, 4
      %s809 = scalar_lea.vmem %s6, %s808
      %p810 = scmp.lt.s32.totalorder %s32, 1
      %s811 = scalar_select %p810, %s32, 1
      %p812 = scmp.lt.s32.totalorder %s33, 1
      %s813 = scalar_select %p812, %s33, 1
      %s814 = smul.addr %s813, 4
      %s815 = smul.addr %s811, 8
      %s816 = sadd.s32 %s814, %s815
      %s817 = smul.addr %s816, 4
      %s818 = scalar_lea.vmem %s7, %s817
      %p819 = scmp.lt.s32.totalorder %s32, 1
      %s820 = scalar_select %p819, %s32, 1
      %p821 = scmp.lt.s32.totalorder %s33, 1
      %s822 = scalar_select %p821, %s33, 1
      %s823 = smul.addr %s820, 2
      %s824 = sadd.s32 %s822, %s823
      %s825 = scalar_lea.vmem %s8, %s824
      %p826 = scmp.lt.s32.totalorder %s32, 1
      %s827 = scalar_select %p826, %s32, 1
      %p828 = scmp.lt.s32.totalorder %s33, 1
      %s829 = scalar_select %p828, %s33, 1
      %s830 = smul.addr %s827, 2
      %s831 = sadd.s32 %s829, %s830
      %s832 = scalar_lea.vmem %s9, %s831
      %p833 = scmp.lt.s32.totalorder %s32, 1
      %s834 = scalar_select %p833, %s32, 1
      %p835 = scmp.lt.s32.totalorder %s33, 1
      %s836 = scalar_select %p835, %s33, 1
      %s837 = smul.addr %s834, 2
      %s838 = sadd.s32 %s836, %s837
      %s839 = scalar_lea.vmem %s10, %s838
      %p840 = scmp.lt.s32.totalorder %s32, 1
      %s841 = scalar_select %p840, %s32, 1
      %p842 = scmp.lt.s32.totalorder %s33, 1
      %s843 = scalar_select %p842, %s33, 1
      %s844 = smul.addr %s841, 2
      %s845 = sadd.s32 %s843, %s844
      %s846 = scalar_lea.vmem %s11, %s845
      %p847 = scmp.lt.s32.totalorder %s32, 1
      %s848 = scalar_select %p847, %s32, 1
      %p849 = scmp.lt.s32.totalorder %s33, 1
      %s850 = scalar_select %p849, %s33, 1
      %s851 = smul.addr %s850, 64
      %s852 = smul.addr %s848, 128
      %s853 = sadd.s32 %s851, %s852
      %s854 = smul.addr %s853, 4
      %s855 = scalar_lea.vmem %s14, %s854
      %p856 = scmp.lt.s32.totalorder %s32, 1
      %s857 = scalar_select %p856, %s32, 1
      %p858 = scmp.lt.s32.totalorder %s33, 1
      %s859 = scalar_select %p858, %s33, 1
      %s860 = smul.addr %s859, 56
      %s861 = smul.addr %s857, 112
      %s862 = sadd.s32 %s860, %s861
      %s863 = smul.addr %s862, 4
      %s864 = scalar_lea.vmem %s15, %s863
      %p865 = scmp.lt.s32.totalorder %s32, 1
      %s866 = scalar_select %p865, %s32, 1
      %p867 = scmp.lt.s32.totalorder %s33, 1
      %s868 = scalar_select %p867, %s33, 1
      %s869 = smul.addr %s866, 2
      %s870 = sadd.s32 %s868, %s869
      %s871 = scalar_lea.vmem %s16, %s870
      %p872 = scmp.lt.s32.totalorder %s32, 1
      %s873 = scalar_select %p872, %s32, 1
      %p874 = scmp.lt.s32.totalorder %s33, 1
      %s875 = scalar_select %p874, %s33, 1
      %s876 = smul.addr %s875, 4
      %s877 = smul.addr %s873, 8
      %s878 = sadd.s32 %s876, %s877
      %s879 = smul.addr %s878, 8
      %s880 = scalar_lea.vmem %s17, %s879
      %p882 = scmp.eq.s32.totalorder %s33, 0
      // Predicated region
      $region89: #{encoder_forward.2} parent=87 // pred_check
        %p883 = pneg %p882
      $region90: #{encoder_forward.2} parent=87 // pred_check_branch
        %885 = sbr.rel (%p883) target = $region92
      $region91: #{encoder_forward.2} parent=87 // pred_region
        %v886 = vld [vmem:[%s791] sm:$0xff]
        %v887 = vld [vmem:[%s791 + $0x8] sm:$0xff]
        %v888 = vld [vmem:[%s791 + $0x10] sm:$0xff]
        %v889 = vld [vmem:[%s791 + $0x18] sm:$0xff]
        %v890 = vld [vmem:[%s791 + $0x20] sm:$0xff]
        %v891 = vld [vmem:[%s791 + $0x28] sm:$0xff]
        %v892 = vld [vmem:[%s791 + $0x30] sm:$0xff]
        %v893 = vld [vmem:[%s791 + $0x38] sm:$0xff]
        %v894 = vld [vmem:[%s791 + $0x40] sm:$0xff]
        %v895 = vld [vmem:[%s791 + $0x48] sm:$0xff]
        %v896 = vld [vmem:[%s791 + $0x50] sm:$0xff]
        %v897 = vld [vmem:[%s791 + $0x58] sm:$0xff]
        %v898 = vld [vmem:[%s791 + $0x60] sm:$0xff]
        %v899 = vld [vmem:[%s791 + $0x68] sm:$0xff]
        %v900 = vld [vmem:[%s791 + $0x70] sm:$0xff]
        %v901 = vld [vmem:[%s791 + $0x78] sm:$0xff]
        %v902 = vld [vmem:[%s791 + $0x80] sm:$0xff]
        %v903 = vld [vmem:[%s791 + $0x88] sm:$0xff]
        %v904 = vld [vmem:[%s791 + $0x90] sm:$0xff]
        %v905 = vld [vmem:[%s791 + $0x98] sm:$0xff]
        %v906 = vld [vmem:[%s791 + $0xa0] sm:$0xff]
        %v907 = vld [vmem:[%s791 + $0xa8] sm:$0xff]
        %v908 = vld [vmem:[%s791 + $0xb0] sm:$0xff]
        %v909 = vld [vmem:[%s791 + $0xb8] sm:$0xff]
        %v910 = vld [vmem:[%s791 + $0xc0] sm:$0xff]
        %v911 = vld [vmem:[%s791 + $0xc8] sm:$0xff]
        %v912 = vld [vmem:[%s791 + $0xd0] sm:$0xff]
        %v913 = vld [vmem:[%s791 + $0xd8] sm:$0xff]
        %v914 = vld [vmem:[%s791 + $0xe0] sm:$0xff]
        %v915 = vld [vmem:[%s791 + $0xe8] sm:$0xff]
        %v916 = vld [vmem:[%s791 + $0xf0] sm:$0xff]
        %v917 = vld [vmem:[%s791 + $0xf8] sm:$0xff]
        %v918 = vld [vmem:[%s1] sm:$0xff]
        %v919 = vld [vmem:[%s1 + $0x8] sm:$0xff]
        %v920 = vld [vmem:[%s2] sm:$0x3]
        %v922 = vlaneseq
        %v923 = vshrl.u32 %v922, 7
        %v924 = vsub.s32 0, %v923
        %v925 = vrot.slane %v920, %v924
        %v926 = vlaneseq
        %v927 = vshrl.u32 %v926, 7
        %v928 = vsub.s32 1, %v927
        %v929 = vrot.slane %v920, %v928
        %vm932 = vcmask 64512
        %v934 = vsel %vm932, %v886, 0
        %v937 = vsel %vm932, %v887, 0
        %v940 = vsel %vm932, %v888, 0
        %v943 = vsel %vm932, %v889, 0
        %v946 = vsel %vm932, %v890, 0
        %v949 = vsel %vm932, %v891, 0
        %v952 = vsel %vm932, %v892, 0
        %v955 = vsel %vm932, %v893, 0
        %v958 = vsel %vm932, %v894, 0
        %v961 = vsel %vm932, %v895, 0
        %v964 = vsel %vm932, %v896, 0
        %v967 = vsel %vm932, %v897, 0
        %v970 = vsel %vm932, %v898, 0
        %v973 = vsel %vm932, %v899, 0
        %v976 = vsel %vm932, %v900, 0
        %v979 = vsel %vm932, %v901, 0
        %v982 = vsel %vm932, %v902, 0
        %v985 = vsel %vm932, %v903, 0
        %v988 = vsel %vm932, %v904, 0
        %v991 = vsel %vm932, %v905, 0
        %v994 = vsel %vm932, %v906, 0
        %v997 = vsel %vm932, %v907, 0
        %v1000 = vsel %vm932, %v908, 0
        %v1003 = vsel %vm932, %v909, 0
        %v1006 = vsel %vm932, %v910, 0
        %v1009 = vsel %vm932, %v911, 0
        %v1012 = vsel %vm932, %v912, 0
        %v1015 = vsel %vm932, %v913, 0
        %v1018 = vsel %vm932, %v914, 0
        %v1021 = vsel %vm932, %v915, 0
        %v1024 = vsel %vm932, %v916, 0
        %v1027 = vsel %vm932, %v917, 0
        %1029 = vmatprep.subr.mxu0 0.0
        %1030 = vmatpush1.msra.mxu0 0.0
        %1031 = vmatprep.subr.mxu0 0.0
        %1032 = vmatpush1.msra.mxu0 0.0
        %1033 = vmatprep.subr.mxu0 0.0
        %1034 = vmatpush1.msra.mxu0 0.0
        %1035 = vmatprep.subr.mxu0 0.0
        %1036 = vmatpush1.msra.mxu0 0.0
        %1037 = vmatprep.subr.mxu0 0.0
        %1038 = vmatpush1.msra.mxu0 0.0
        %1039 = vmatprep.subr.mxu0 0.0
        %1040 = vmatpush1.msra.mxu0 0.0
        %1041 = vmatprep.subr.mxu0 0.0
        %1042 = vmatpush1.msra.mxu0 0.0
        %1043 = vmatprep.subr.mxu0 0.0
        %1044 = vmatpush1.msra.mxu0 0.0
        %1045 = vmatprep.subr.mxu0 0.0
        %1046 = vmatpush1.msra.mxu0 0.0
        %1047 = vmatprep.subr.mxu0 0.0
        %1048 = vmatpush1.msra.mxu0 0.0
        %1049 = vmatprep.subr.mxu0 0.0
        %1050 = vmatpush1.msra.mxu0 0.0
        %1051 = vmatprep.subr.mxu0 0.0
        %1052 = vmatpush1.msra.mxu0 0.0
        %1053 = vmatprep.subr.mxu0 0.0
        %1054 = vmatpush1.msra.mxu0 0.0
        %1055 = vmatprep.subr.mxu0 0.0
        %1056 = vmatpush1.msra.mxu0 0.0
        %1057 = vmatprep.subr.mxu0 0.0
        %1058 = vmatpush1.msra.mxu0 0.0
        %1059 = vmatprep.subr.mxu0 %v919
        %1060 = vmatpush1.msra.mxu0 %v918
        %1061 = vmatprep.subr.mxu0 0.0
        %1062 = vmatpush2.msra.mxu0 0.0
        %1063 = vmatprep.subr.mxu0 0.0
        %1064 = vmatpush2.msra.mxu0 0.0
        %1065 = vmatprep.subr.mxu0 0.0
        %1066 = vmatpush2.msra.mxu0 0.0
        %1067 = vmatprep.subr.mxu0 0.0
        %1068 = vmatpush2.msra.mxu0 0.0
        %1069 = vmatprep.subr.mxu0 0.0
        %1070 = vmatpush2.msra.mxu0 0.0
        %1071 = vmatprep.subr.mxu0 0.0
        %1072 = vmatpush2.msra.mxu0 0.0
        %1073 = vmatprep.subr.mxu0 0.0
        %1074 = vmatpush2.msra.mxu0 0.0
        %1075 = vmatprep.subr.mxu0 0.0
        %1076 = vmatpush2.msra.mxu0 0.0
        %1077 = vmatprep.subr.mxu0 0.0
        %1078 = vmatpush2.msra.mxu0 0.0
        %1079 = vmatprep.subr.mxu0 0.0
        %1080 = vmatpush2.msra.mxu0 0.0
        %1081 = vmatprep.subr.mxu0 0.0
        %1082 = vmatpush2.msra.mxu0 0.0
        %1083 = vmatprep.subr.mxu0 0.0
        %1084 = vmatpush2.msra.mxu0 0.0
        %1085 = vmatprep.subr.mxu0 0.0
        %1086 = vmatpush2.msra.mxu0 0.0
        %1087 = vmatprep.subr.mxu0 0.0
        %1088 = vmatpush2.msra.mxu0 0.0
        %1089 = vmatprep.subr.mxu0 0.0
        %1090 = vmatpush2.msra.mxu0 0.0
        %1091 = vmatprep.subr.mxu0 0.0
        %1092 = vmatpush2.msra.mxu0 0.0
        %1093 = vmatprep.mubr.f32.mxu0 0.0
        %1094 = vmatmul.mubr.f32.gmra.mxu0 %v934
        %v1095 = vpop.f32.mrf.mxu0
        %v1096 = vadd.f32 %v925, %v1095
        %v1097 = vpop.f32.mrf.mxu0
        %v1098 = vadd.f32 %v929, %v1097
        %1099 = vmatprep.mubr.f32.mxu0 0.0
        %1100 = vmatmul.mubr.f32.gmra.mxu0 %v937
        %v1101 = vpop.f32.mrf.mxu0
        %v1102 = vadd.f32 %v925, %v1101
        %v1103 = vpop.f32.mrf.mxu0
        %v1104 = vadd.f32 %v929, %v1103
        %1105 = vmatprep.mubr.f32.mxu0 0.0
        %1106 = vmatmul.mubr.f32.gmra.mxu0 %v940
        %v1107 = vpop.f32.mrf.mxu0
        %v1108 = vadd.f32 %v925, %v1107
        %v1109 = vpop.f32.mrf.mxu0
        %v1110 = vadd.f32 %v929, %v1109
        %1111 = vmatprep.mubr.f32.mxu0 0.0
        %1112 = vmatmul.mubr.f32.gmra.mxu0 %v943
        %v1113 = vpop.f32.mrf.mxu0
        %v1114 = vadd.f32 %v925, %v1113
        %v1115 = vpop.f32.mrf.mxu0
        %v1116 = vadd.f32 %v929, %v1115
        %1117 = vmatprep.mubr.f32.mxu0 0.0
        %1118 = vmatmul.mubr.f32.gmra.mxu0 %v946
        %v1119 = vpop.f32.mrf.mxu0
        %v1120 = vadd.f32 %v925, %v1119
        %v1121 = vpop.f32.mrf.mxu0
        %v1122 = vadd.f32 %v929, %v1121
        %1123 = vmatprep.mubr.f32.mxu0 0.0
        %1124 = vmatmul.mubr.f32.gmra.mxu0 %v949
        %v1125 = vpop.f32.mrf.mxu0
        %v1126 = vadd.f32 %v925, %v1125
        %v1127 = vpop.f32.mrf.mxu0
        %v1128 = vadd.f32 %v929, %v1127
        %1129 = vmatprep.mubr.f32.mxu0 0.0
        %1130 = vmatmul.mubr.f32.gmra.mxu0 %v952
        %v1131 = vpop.f32.mrf.mxu0
        %v1132 = vadd.f32 %v925, %v1131
        %v1133 = vpop.f32.mrf.mxu0
        %v1134 = vadd.f32 %v929, %v1133
        %1135 = vmatprep.mubr.f32.mxu0 0.0
        %1136 = vmatmul.mubr.f32.gmra.mxu0 %v955
        %v1137 = vpop.f32.mrf.mxu0
        %v1138 = vadd.f32 %v925, %v1137
        %v1139 = vpop.f32.mrf.mxu0
        %v1140 = vadd.f32 %v929, %v1139
        %1141 = vmatprep.mubr.f32.mxu0 0.0
        %1142 = vmatmul.mubr.f32.gmra.mxu0 %v958
        %v1143 = vpop.f32.mrf.mxu0
        %v1144 = vadd.f32 %v925, %v1143
        %v1145 = vpop.f32.mrf.mxu0
        %v1146 = vadd.f32 %v929, %v1145
        %1147 = vmatprep.mubr.f32.mxu0 0.0
        %1148 = vmatmul.mubr.f32.gmra.mxu0 %v961
        %v1149 = vpop.f32.mrf.mxu0
        %v1150 = vadd.f32 %v925, %v1149
        %v1151 = vpop.f32.mrf.mxu0
        %v1152 = vadd.f32 %v929, %v1151
        %1153 = vmatprep.mubr.f32.mxu0 0.0
        %1154 = vmatmul.mubr.f32.gmra.mxu0 %v964
        %v1155 = vpop.f32.mrf.mxu0
        %v1156 = vadd.f32 %v925, %v1155
        %v1157 = vpop.f32.mrf.mxu0
        %v1158 = vadd.f32 %v929, %v1157
        %1159 = vmatprep.mubr.f32.mxu0 0.0
        %1160 = vmatmul.mubr.f32.gmra.mxu0 %v967
        %v1161 = vpop.f32.mrf.mxu0
        %v1162 = vadd.f32 %v925, %v1161
        %v1163 = vpop.f32.mrf.mxu0
        %v1164 = vadd.f32 %v929, %v1163
        %1165 = vmatprep.mubr.f32.mxu0 0.0
        %1166 = vmatmul.mubr.f32.gmra.mxu0 %v970
        %v1167 = vpop.f32.mrf.mxu0
        %v1168 = vadd.f32 %v925, %v1167
        %v1169 = vpop.f32.mrf.mxu0
        %v1170 = vadd.f32 %v929, %v1169
        %1171 = vmatprep.mubr.f32.mxu0 0.0
        %1172 = vmatmul.mubr.f32.gmra.mxu0 %v973
        %v1173 = vpop.f32.mrf.mxu0
        %v1174 = vadd.f32 %v925, %v1173
        %v1175 = vpop.f32.mrf.mxu0
        %v1176 = vadd.f32 %v929, %v1175
        %1177 = vmatprep.mubr.f32.mxu0 0.0
        %1178 = vmatmul.mubr.f32.gmra.mxu0 %v976
        %v1179 = vpop.f32.mrf.mxu0
        %v1180 = vadd.f32 %v925, %v1179
        %v1181 = vpop.f32.mrf.mxu0
        %v1182 = vadd.f32 %v929, %v1181
        %1183 = vmatprep.mubr.f32.mxu0 0.0
        %1184 = vmatmul.mubr.f32.gmra.mxu0 %v979
        %v1185 = vpop.f32.mrf.mxu0
        %v1186 = vadd.f32 %v925, %v1185
        %v1187 = vpop.f32.mrf.mxu0
        %v1188 = vadd.f32 %v929, %v1187
        %1189 = vmatprep.mubr.f32.mxu0 0.0
        %1190 = vmatmul.mubr.f32.gmra.mxu0 %v982
        %v1191 = vpop.f32.mrf.mxu0
        %v1192 = vadd.f32 %v925, %v1191
        %v1193 = vpop.f32.mrf.mxu0
        %v1194 = vadd.f32 %v929, %v1193
        %1195 = vmatprep.mubr.f32.mxu0 0.0
        %1196 = vmatmul.mubr.f32.gmra.mxu0 %v985
        %v1197 = vpop.f32.mrf.mxu0
        %v1198 = vadd.f32 %v925, %v1197
        %v1199 = vpop.f32.mrf.mxu0
        %v1200 = vadd.f32 %v929, %v1199
        %1201 = vmatprep.mubr.f32.mxu0 0.0
        %1202 = vmatmul.mubr.f32.gmra.mxu0 %v988
        %v1203 = vpop.f32.mrf.mxu0
        %v1204 = vadd.f32 %v925, %v1203
        %v1205 = vpop.f32.mrf.mxu0
        %v1206 = vadd.f32 %v929, %v1205
        %1207 = vmatprep.mubr.f32.mxu0 0.0
        %1208 = vmatmul.mubr.f32.gmra.mxu0 %v991
        %v1209 = vpop.f32.mrf.mxu0
        %v1210 = vadd.f32 %v925, %v1209
        %v1211 = vpop.f32.mrf.mxu0
        %v1212 = vadd.f32 %v929, %v1211
        %1213 = vmatprep.mubr.f32.mxu0 0.0
        %1214 = vmatmul.mubr.f32.gmra.mxu0 %v994
        %v1215 = vpop.f32.mrf.mxu0
        %v1216 = vadd.f32 %v925, %v1215
        %v1217 = vpop.f32.mrf.mxu0
        %v1218 = vadd.f32 %v929, %v1217
        %1219 = vmatprep.mubr.f32.mxu0 0.0
        %1220 = vmatmul.mubr.f32.gmra.mxu0 %v997
        %v1221 = vpop.f32.mrf.mxu0
        %v1222 = vadd.f32 %v925, %v1221
        %v1223 = vpop.f32.mrf.mxu0
        %v1224 = vadd.f32 %v929, %v1223
        %1225 = vmatprep.mubr.f32.mxu0 0.0
        %1226 = vmatmul.mubr.f32.gmra.mxu0 %v1000
        %v1227 = vpop.f32.mrf.mxu0
        %v1228 = vadd.f32 %v925, %v1227
        %v1229 = vpop.f32.mrf.mxu0
        %v1230 = vadd.f32 %v929, %v1229
        %1231 = vmatprep.mubr.f32.mxu0 0.0
        %1232 = vmatmul.mubr.f32.gmra.mxu0 %v1003
        %v1233 = vpop.f32.mrf.mxu0
        %v1234 = vadd.f32 %v925, %v1233
        %v1235 = vpop.f32.mrf.mxu0
        %v1236 = vadd.f32 %v929, %v1235
        %1237 = vmatprep.mubr.f32.mxu0 0.0
        %1238 = vmatmul.mubr.f32.gmra.mxu0 %v1006
        %v1239 = vpop.f32.mrf.mxu0
        %v1240 = vadd.f32 %v925, %v1239
        %v1241 = vpop.f32.mrf.mxu0
        %v1242 = vadd.f32 %v929, %v1241
        %1243 = vmatprep.mubr.f32.mxu0 0.0
        %1244 = vmatmul.mubr.f32.gmra.mxu0 %v1009
        %v1245 = vpop.f32.mrf.mxu0
        %v1246 = vadd.f32 %v925, %v1245
        %v1247 = vpop.f32.mrf.mxu0
        %v1248 = vadd.f32 %v929, %v1247
        %1249 = vmatprep.mubr.f32.mxu0 0.0
        %1250 = vmatmul.mubr.f32.gmra.mxu0 %v1012
        %v1251 = vpop.f32.mrf.mxu0
        %v1252 = vadd.f32 %v925, %v1251
        %v1253 = vpop.f32.mrf.mxu0
        %v1254 = vadd.f32 %v929, %v1253
        %1255 = vmatprep.mubr.f32.mxu0 0.0
        %1256 = vmatmul.mubr.f32.gmra.mxu0 %v1015
        %v1257 = vpop.f32.mrf.mxu0
        %v1258 = vadd.f32 %v925, %v1257
        %v1259 = vpop.f32.mrf.mxu0
        %v1260 = vadd.f32 %v929, %v1259
        %1261 = vmatprep.mubr.f32.mxu0 0.0
        %1262 = vmatmul.mubr.f32.gmra.mxu0 %v1018
        %v1263 = vpop.f32.mrf.mxu0
        %v1264 = vadd.f32 %v925, %v1263
        %v1265 = vpop.f32.mrf.mxu0
        %v1266 = vadd.f32 %v929, %v1265
        %1267 = vmatprep.mubr.f32.mxu0 0.0
        %1268 = vmatmul.mubr.f32.gmra.mxu0 %v1021
        %v1269 = vpop.f32.mrf.mxu0
        %v1270 = vadd.f32 %v925, %v1269
        %v1271 = vpop.f32.mrf.mxu0
        %v1272 = vadd.f32 %v929, %v1271
        %1273 = vmatprep.mubr.f32.mxu0 0.0
        %1274 = vmatmul.mubr.f32.gmra.mxu0 %v1024
        %v1275 = vpop.f32.mrf.mxu0
        %v1276 = vadd.f32 %v925, %v1275
        %v1277 = vpop.f32.mrf.mxu0
        %v1278 = vadd.f32 %v929, %v1277
        %1279 = vmatprep.mubr.f32.mxu0 0.0
        %1280 = vmatmul.mubr.f32.gmra.mxu0 %v1027
        %v1281 = vpop.f32.mrf.mxu0
        %v1282 = vadd.f32 %v925, %v1281
        %v1283 = vpop.f32.mrf.mxu0
        %v1284 = vadd.f32 %v929, %v1283
        %1285 = vdwg.mxu0
        %v1286 = vmax.f32 %v1096, 0.0
        %v1287 = vmax.f32 %v1098, 0.0
        %v1288 = vmax.f32 %v1102, 0.0
        %v1289 = vmax.f32 %v1104, 0.0
        %v1290 = vmax.f32 %v1108, 0.0
        %v1291 = vmax.f32 %v1110, 0.0
        %v1292 = vmax.f32 %v1114, 0.0
        %v1293 = vmax.f32 %v1116, 0.0
        %v1294 = vmax.f32 %v1120, 0.0
        %v1295 = vmax.f32 %v1122, 0.0
        %v1296 = vmax.f32 %v1126, 0.0
        %v1297 = vmax.f32 %v1128, 0.0
        %v1298 = vmax.f32 %v1132, 0.0
        %v1299 = vmax.f32 %v1134, 0.0
        %v1300 = vmax.f32 %v1138, 0.0
        %v1301 = vmax.f32 %v1140, 0.0
        %v1302 = vmax.f32 %v1144, 0.0
        %v1303 = vmax.f32 %v1146, 0.0
        %v1304 = vmax.f32 %v1150, 0.0
        %v1305 = vmax.f32 %v1152, 0.0
        %v1306 = vmax.f32 %v1156, 0.0
        %v1307 = vmax.f32 %v1158, 0.0
        %v1308 = vmax.f32 %v1162, 0.0
        %v1309 = vmax.f32 %v1164, 0.0
        %v1310 = vmax.f32 %v1168, 0.0
        %v1311 = vmax.f32 %v1170, 0.0
        %v1312 = vmax.f32 %v1174, 0.0
        %v1313 = vmax.f32 %v1176, 0.0
        %v1314 = vmax.f32 %v1180, 0.0
        %v1315 = vmax.f32 %v1182, 0.0
        %v1316 = vmax.f32 %v1186, 0.0
        %v1317 = vmax.f32 %v1188, 0.0
        %v1318 = vmax.f32 %v1192, 0.0
        %v1319 = vmax.f32 %v1194, 0.0
        %v1320 = vmax.f32 %v1198, 0.0
        %v1321 = vmax.f32 %v1200, 0.0
        %v1322 = vmax.f32 %v1204, 0.0
        %v1323 = vmax.f32 %v1206, 0.0
        %v1324 = vmax.f32 %v1210, 0.0
        %v1325 = vmax.f32 %v1212, 0.0
        %v1326 = vmax.f32 %v1216, 0.0
        %v1327 = vmax.f32 %v1218, 0.0
        %v1328 = vmax.f32 %v1222, 0.0
        %v1329 = vmax.f32 %v1224, 0.0
        %v1330 = vmax.f32 %v1228, 0.0
        %v1331 = vmax.f32 %v1230, 0.0
        %v1332 = vmax.f32 %v1234, 0.0
        %v1333 = vmax.f32 %v1236, 0.0
        %v1334 = vmax.f32 %v1240, 0.0
        %v1335 = vmax.f32 %v1242, 0.0
        %v1336 = vmax.f32 %v1246, 0.0
        %v1337 = vmax.f32 %v1248, 0.0
        %v1338 = vmax.f32 %v1252, 0.0
        %v1339 = vmax.f32 %v1254, 0.0
        %v1340 = vmax.f32 %v1258, 0.0
        %v1341 = vmax.f32 %v1260, 0.0
        %v1342 = vmax.f32 %v1264, 0.0
        %v1343 = vmax.f32 %v1266, 0.0
        %v1344 = vmax.f32 %v1270, 0.0
        %v1345 = vmax.f32 %v1272, 0.0
        %v1346 = vmax.f32 %v1276, 0.0
        %v1347 = vmax.f32 %v1278, 0.0
        %v1348 = vmax.f32 %v1282, 0.0
        %v1349 = vmax.f32 %v1284, 0.0
        %v1350 = vld [vmem:[%s3] sm:$0xff]
        %v1351 = vld [vmem:[%s3 + $0x8] sm:$0xff]
        %v1352 = vld [vmem:[%s3 + $0x10] sm:$0xff]
        %v1353 = vld [vmem:[%s3 + $0x18] sm:$0xff]
        %v1354 = vld [vmem:[%s3 + $0x20] sm:$0xff]
        %v1355 = vld [vmem:[%s3 + $0x28] sm:$0xff]
        %v1356 = vld [vmem:[%s3 + $0x30] sm:$0xff]
        %v1357 = vld [vmem:[%s3 + $0x38] sm:$0xff]
        %v1358 = vld [vmem:[%s3 + $0x40] sm:$0xff]
        %v1359 = vld [vmem:[%s3 + $0x48] sm:$0xff]
        %v1360 = vld [vmem:[%s3 + $0x50] sm:$0xff]
        %v1361 = vld [vmem:[%s3 + $0x58] sm:$0xff]
        %v1362 = vld [vmem:[%s3 + $0x60] sm:$0xff]
        %v1363 = vld [vmem:[%s3 + $0x68] sm:$0xff]
        %v1364 = vld [vmem:[%s3 + $0x70] sm:$0xff]
        %v1365 = vld [vmem:[%s3 + $0x78] sm:$0xff]
        %v1366 = vld [vmem:[%s3 + $0x80] sm:$0xff]
        %v1367 = vld [vmem:[%s3 + $0x88] sm:$0xff]
        %v1368 = vld [vmem:[%s3 + $0x90] sm:$0xff]
        %v1369 = vld [vmem:[%s3 + $0x98] sm:$0xff]
        %v1370 = vld [vmem:[%s3 + $0xa0] sm:$0xff]
        %v1371 = vld [vmem:[%s3 + $0xa8] sm:$0xff]
        %v1372 = vld [vmem:[%s3 + $0xb0] sm:$0xff]
        %v1373 = vld [vmem:[%s3 + $0xb8] sm:$0xff]
        %v1374 = vld [vmem:[%s3 + $0xc0] sm:$0xff]
        %v1375 = vld [vmem:[%s3 + $0xc8] sm:$0xff]
        %v1376 = vld [vmem:[%s3 + $0xd0] sm:$0xff]
        %v1377 = vld [vmem:[%s3 + $0xd8] sm:$0xff]
        %v1378 = vld [vmem:[%s3 + $0xe0] sm:$0xff]
        %v1379 = vld [vmem:[%s3 + $0xe8] sm:$0xff]
        %v1380 = vld [vmem:[%s3 + $0xf0] sm:$0xff]
        %v1381 = vld [vmem:[%s3 + $0xf8] sm:$0xff]
        %v1382 = vld [vmem:[%s4] sm:$0x1]
        %v1384 = vlaneseq
        %v1385 = vshrl.u32 %v1384, 7
        %v1386 = vsub.s32 0, %v1385
        %v1387 = vrot.slane %v1382, %v1386
        %1389 = vmatprep.subr.mxu0 0.0
        %1390 = vmatpush1.msra.mxu0 %v1365
        %1391 = vmatprep.subr.mxu0 0.0
        %1392 = vmatpush1.msra.mxu0 %v1364
        %1393 = vmatprep.subr.mxu0 0.0
        %1394 = vmatpush1.msra.mxu0 %v1363
        %1395 = vmatprep.subr.mxu0 0.0
        %1396 = vmatpush1.msra.mxu0 %v1362
        %1397 = vmatprep.subr.mxu0 0.0
        %1398 = vmatpush1.msra.mxu0 %v1361
        %1399 = vmatprep.subr.mxu0 0.0
        %1400 = vmatpush1.msra.mxu0 %v1360
        %1401 = vmatprep.subr.mxu0 0.0
        %1402 = vmatpush1.msra.mxu0 %v1359
        %1403 = vmatprep.subr.mxu0 0.0
        %1404 = vmatpush1.msra.mxu0 %v1358
        %1405 = vmatprep.subr.mxu0 0.0
        %1406 = vmatpush1.msra.mxu0 %v1357
        %1407 = vmatprep.subr.mxu0 0.0
        %1408 = vmatpush1.msra.mxu0 %v1356
        %1409 = vmatprep.subr.mxu0 0.0
        %1410 = vmatpush1.msra.mxu0 %v1355
        %1411 = vmatprep.subr.mxu0 0.0
        %1412 = vmatpush1.msra.mxu0 %v1354
        %1413 = vmatprep.subr.mxu0 0.0
        %1414 = vmatpush1.msra.mxu0 %v1353
        %1415 = vmatprep.subr.mxu0 0.0
        %1416 = vmatpush1.msra.mxu0 %v1352
        %1417 = vmatprep.subr.mxu0 0.0
        %1418 = vmatpush1.msra.mxu0 %v1351
        %1419 = vmatprep.subr.mxu0 0.0
        %1420 = vmatpush1.msra.mxu0 %v1350
        %1421 = vmatprep.subr.mxu0 0.0
        %1422 = vmatpush2.msra.mxu0 %v1381
        %1423 = vmatprep.subr.mxu0 0.0
        %1424 = vmatpush2.msra.mxu0 %v1380
        %1425 = vmatprep.subr.mxu0 0.0
        %1426 = vmatpush2.msra.mxu0 %v1379
        %1427 = vmatprep.subr.mxu0 0.0
        %1428 = vmatpush2.msra.mxu0 %v1378
        %1429 = vmatprep.subr.mxu0 0.0
        %1430 = vmatpush2.msra.mxu0 %v1377
        %1431 = vmatprep.subr.mxu0 0.0
        %1432 = vmatpush2.msra.mxu0 %v1376
        %1433 = vmatprep.subr.mxu0 0.0
        %1434 = vmatpush2.msra.mxu0 %v1375
        %1435 = vmatprep.subr.mxu0 0.0
        %1436 = vmatpush2.msra.mxu0 %v1374
        %1437 = vmatprep.subr.mxu0 0.0
        %1438 = vmatpush2.msra.mxu0 %v1373
        %1439 = vmatprep.subr.mxu0 0.0
        %1440 = vmatpush2.msra.mxu0 %v1372
        %1441 = vmatprep.subr.mxu0 0.0
        %1442 = vmatpush2.msra.mxu0 %v1371
        %1443 = vmatprep.subr.mxu0 0.0
        %1444 = vmatpush2.msra.mxu0 %v1370
        %1445 = vmatprep.subr.mxu0 0.0
        %1446 = vmatpush2.msra.mxu0 %v1369
        %1447 = vmatprep.subr.mxu0 0.0
        %1448 = vmatpush2.msra.mxu0 %v1368
        %1449 = vmatprep.subr.mxu0 0.0
        %1450 = vmatpush2.msra.mxu0 %v1367
        %1451 = vmatprep.subr.mxu0 0.0
        %1452 = vmatpush2.msra.mxu0 %v1366
        %1453 = vmatprep.mubr.f32.mxu0 %v1287
        %1454 = vmatmul.mubr.f32.gmra.mxu0 %v1286
        %v1455 = vpop.f32.mrf.mxu0
        %v1456 = vadd.f32 %v1387, %v1455
        %v1457 = vpop.f32.mrf.mxu0
        %1458 = vmatprep.mubr.f32.mxu0 %v1289
        %1459 = vmatmul.mubr.f32.gmra.mxu0 %v1288
        %v1460 = vpop.f32.mrf.mxu0
        %v1461 = vadd.f32 %v1387, %v1460
        %v1462 = vpop.f32.mrf.mxu0
        %1463 = vmatprep.mubr.f32.mxu0 %v1291
        %1464 = vmatmul.mubr.f32.gmra.mxu0 %v1290
        %v1465 = vpop.f32.mrf.mxu0
        %v1466 = vadd.f32 %v1387, %v1465
        %v1467 = vpop.f32.mrf.mxu0
        %1468 = vmatprep.mubr.f32.mxu0 %v1293
        %1469 = vmatmul.mubr.f32.gmra.mxu0 %v1292
        %v1470 = vpop.f32.mrf.mxu0
        %v1471 = vadd.f32 %v1387, %v1470
        %v1472 = vpop.f32.mrf.mxu0
        %1473 = vmatprep.mubr.f32.mxu0 %v1295
        %1474 = vmatmul.mubr.f32.gmra.mxu0 %v1294
        %v1475 = vpop.f32.mrf.mxu0
        %v1476 = vadd.f32 %v1387, %v1475
        %v1477 = vpop.f32.mrf.mxu0
        %1478 = vmatprep.mubr.f32.mxu0 %v1297
        %1479 = vmatmul.mubr.f32.gmra.mxu0 %v1296
        %v1480 = vpop.f32.mrf.mxu0
        %v1481 = vadd.f32 %v1387, %v1480
        %v1482 = vpop.f32.mrf.mxu0
        %1483 = vmatprep.mubr.f32.mxu0 %v1299
        %1484 = vmatmul.mubr.f32.gmra.mxu0 %v1298
        %v1485 = vpop.f32.mrf.mxu0
        %v1486 = vadd.f32 %v1387, %v1485
        %v1487 = vpop.f32.mrf.mxu0
        %1488 = vmatprep.mubr.f32.mxu0 %v1301
        %1489 = vmatmul.mubr.f32.gmra.mxu0 %v1300
        %v1490 = vpop.f32.mrf.mxu0
        %v1491 = vadd.f32 %v1387, %v1490
        %v1492 = vpop.f32.mrf.mxu0
        %1493 = vmatprep.mubr.f32.mxu0 %v1303
        %1494 = vmatmul.mubr.f32.gmra.mxu0 %v1302
        %v1495 = vpop.f32.mrf.mxu0
        %v1496 = vadd.f32 %v1387, %v1495
        %v1497 = vpop.f32.mrf.mxu0
        %1498 = vmatprep.mubr.f32.mxu0 %v1305
        %1499 = vmatmul.mubr.f32.gmra.mxu0 %v1304
        %v1500 = vpop.f32.mrf.mxu0
        %v1501 = vadd.f32 %v1387, %v1500
        %v1502 = vpop.f32.mrf.mxu0
        %1503 = vmatprep.mubr.f32.mxu0 %v1307
        %1504 = vmatmul.mubr.f32.gmra.mxu0 %v1306
        %v1505 = vpop.f32.mrf.mxu0
        %v1506 = vadd.f32 %v1387, %v1505
        %v1507 = vpop.f32.mrf.mxu0
        %1508 = vmatprep.mubr.f32.mxu0 %v1309
        %1509 = vmatmul.mubr.f32.gmra.mxu0 %v1308
        %v1510 = vpop.f32.mrf.mxu0
        %v1511 = vadd.f32 %v1387, %v1510
        %v1512 = vpop.f32.mrf.mxu0
        %1513 = vmatprep.mubr.f32.mxu0 %v1311
        %1514 = vmatmul.mubr.f32.gmra.mxu0 %v1310
        %v1515 = vpop.f32.mrf.mxu0
        %v1516 = vadd.f32 %v1387, %v1515
        %v1517 = vpop.f32.mrf.mxu0
        %1518 = vmatprep.mubr.f32.mxu0 %v1313
        %1519 = vmatmul.mubr.f32.gmra.mxu0 %v1312
        %v1520 = vpop.f32.mrf.mxu0
        %v1521 = vadd.f32 %v1387, %v1520
        %v1522 = vpop.f32.mrf.mxu0
        %1523 = vmatprep.mubr.f32.mxu0 %v1315
        %1524 = vmatmul.mubr.f32.gmra.mxu0 %v1314
        %v1525 = vpop.f32.mrf.mxu0
        %v1526 = vadd.f32 %v1387, %v1525
        %v1527 = vpop.f32.mrf.mxu0
        %1528 = vmatprep.mubr.f32.mxu0 %v1317
        %1529 = vmatmul.mubr.f32.gmra.mxu0 %v1316
        %v1530 = vpop.f32.mrf.mxu0
        %v1531 = vadd.f32 %v1387, %v1530
        %v1532 = vpop.f32.mrf.mxu0
        %1533 = vmatprep.mubr.f32.mxu0 %v1319
        %1534 = vmatmul.mubr.f32.gmra.mxu0 %v1318
        %v1535 = vpop.f32.mrf.mxu0
        %v1536 = vadd.f32 %v1387, %v1535
        %v1537 = vpop.f32.mrf.mxu0
        %1538 = vmatprep.mubr.f32.mxu0 %v1321
        %1539 = vmatmul.mubr.f32.gmra.mxu0 %v1320
        %v1540 = vpop.f32.mrf.mxu0
        %v1541 = vadd.f32 %v1387, %v1540
        %v1542 = vpop.f32.mrf.mxu0
        %1543 = vmatprep.mubr.f32.mxu0 %v1323
        %1544 = vmatmul.mubr.f32.gmra.mxu0 %v1322
        %v1545 = vpop.f32.mrf.mxu0
        %v1546 = vadd.f32 %v1387, %v1545
        %v1547 = vpop.f32.mrf.mxu0
        %1548 = vmatprep.mubr.f32.mxu0 %v1325
        %1549 = vmatmul.mubr.f32.gmra.mxu0 %v1324
        %v1550 = vpop.f32.mrf.mxu0
        %v1551 = vadd.f32 %v1387, %v1550
        %v1552 = vpop.f32.mrf.mxu0
        %1553 = vmatprep.mubr.f32.mxu0 %v1327
        %1554 = vmatmul.mubr.f32.gmra.mxu0 %v1326
        %v1555 = vpop.f32.mrf.mxu0
        %v1556 = vadd.f32 %v1387, %v1555
        %v1557 = vpop.f32.mrf.mxu0
        %1558 = vmatprep.mubr.f32.mxu0 %v1329
        %1559 = vmatmul.mubr.f32.gmra.mxu0 %v1328
        %v1560 = vpop.f32.mrf.mxu0
        %v1561 = vadd.f32 %v1387, %v1560
        %v1562 = vpop.f32.mrf.mxu0
        %1563 = vmatprep.mubr.f32.mxu0 %v1331
        %1564 = vmatmul.mubr.f32.gmra.mxu0 %v1330
        %v1565 = vpop.f32.mrf.mxu0
        %v1566 = vadd.f32 %v1387, %v1565
        %v1567 = vpop.f32.mrf.mxu0
        %1568 = vmatprep.mubr.f32.mxu0 %v1333
        %1569 = vmatmul.mubr.f32.gmra.mxu0 %v1332
        %v1570 = vpop.f32.mrf.mxu0
        %v1571 = vadd.f32 %v1387, %v1570
        %v1572 = vpop.f32.mrf.mxu0
        %1573 = vmatprep.mubr.f32.mxu0 %v1335
        %1574 = vmatmul.mubr.f32.gmra.mxu0 %v1334
        %v1575 = vpop.f32.mrf.mxu0
        %v1576 = vadd.f32 %v1387, %v1575
        %v1577 = vpop.f32.mrf.mxu0
        %1578 = vmatprep.mubr.f32.mxu0 %v1337
        %1579 = vmatmul.mubr.f32.gmra.mxu0 %v1336
        %v1580 = vpop.f32.mrf.mxu0
        %v1581 = vadd.f32 %v1387, %v1580
        %v1582 = vpop.f32.mrf.mxu0
        %1583 = vmatprep.mubr.f32.mxu0 %v1339
        %1584 = vmatmul.mubr.f32.gmra.mxu0 %v1338
        %v1585 = vpop.f32.mrf.mxu0
        %v1586 = vadd.f32 %v1387, %v1585
        %v1587 = vpop.f32.mrf.mxu0
        %1588 = vmatprep.mubr.f32.mxu0 %v1341
        %1589 = vmatmul.mubr.f32.gmra.mxu0 %v1340
        %v1590 = vpop.f32.mrf.mxu0
        %v1591 = vadd.f32 %v1387, %v1590
        %v1592 = vpop.f32.mrf.mxu0
        %1593 = vmatprep.mubr.f32.mxu0 %v1343
        %1594 = vmatmul.mubr.f32.gmra.mxu0 %v1342
        %v1595 = vpop.f32.mrf.mxu0
        %v1596 = vadd.f32 %v1387, %v1595
        %v1597 = vpop.f32.mrf.mxu0
        %1598 = vmatprep.mubr.f32.mxu0 %v1345
        %1599 = vmatmul.mubr.f32.gmra.mxu0 %v1344
        %v1600 = vpop.f32.mrf.mxu0
        %v1601 = vadd.f32 %v1387, %v1600
        %v1602 = vpop.f32.mrf.mxu0
        %1603 = vmatprep.mubr.f32.mxu0 %v1347
        %1604 = vmatmul.mubr.f32.gmra.mxu0 %v1346
        %v1605 = vpop.f32.mrf.mxu0
        %v1606 = vadd.f32 %v1387, %v1605
        %v1607 = vpop.f32.mrf.mxu0
        %1608 = vmatprep.mubr.f32.mxu0 %v1349
        %1609 = vmatmul.mubr.f32.gmra.mxu0 %v1348
        %v1610 = vpop.f32.mrf.mxu0
        %v1611 = vadd.f32 %v1387, %v1610
        %v1612 = vpop.f32.mrf.mxu0
        %1613 = vdwg.mxu0
        %v1614 = vmax.f32 %v1456, 0.0
        %v1615 = vmax.f32 %v1461, 0.0
        %v1616 = vmax.f32 %v1466, 0.0
        %v1617 = vmax.f32 %v1471, 0.0
        %v1618 = vmax.f32 %v1476, 0.0
        %v1619 = vmax.f32 %v1481, 0.0
        %v1620 = vmax.f32 %v1486, 0.0
        %v1621 = vmax.f32 %v1491, 0.0
        %v1622 = vmax.f32 %v1496, 0.0
        %v1623 = vmax.f32 %v1501, 0.0
        %v1624 = vmax.f32 %v1506, 0.0
        %v1625 = vmax.f32 %v1511, 0.0
        %v1626 = vmax.f32 %v1516, 0.0
        %v1627 = vmax.f32 %v1521, 0.0
        %v1628 = vmax.f32 %v1526, 0.0
        %v1629 = vmax.f32 %v1531, 0.0
        %v1630 = vmax.f32 %v1536, 0.0
        %v1631 = vmax.f32 %v1541, 0.0
        %v1632 = vmax.f32 %v1546, 0.0
        %v1633 = vmax.f32 %v1551, 0.0
        %v1634 = vmax.f32 %v1556, 0.0
        %v1635 = vmax.f32 %v1561, 0.0
        %v1636 = vmax.f32 %v1566, 0.0
        %v1637 = vmax.f32 %v1571, 0.0
        %v1638 = vmax.f32 %v1576, 0.0
        %v1639 = vmax.f32 %v1581, 0.0
        %v1640 = vmax.f32 %v1586, 0.0
        %v1641 = vmax.f32 %v1591, 0.0
        %v1642 = vmax.f32 %v1596, 0.0
        %v1643 = vmax.f32 %v1601, 0.0
        %v1644 = vmax.f32 %v1606, 0.0
        %v1645 = vmax.f32 %v1611, 0.0
        %vm1646 = vcmask 261120
        %1647 = vst.msk [vmem:[#allocation2] sm:$0xff] %vm1646, %v1614
        %1648 = vst.msk [vmem:[#allocation2 + $0x8] sm:$0xff] %vm1646, %v1615
        %1649 = vst.msk [vmem:[#allocation2 + $0x10] sm:$0xff] %vm1646, %v1616
        %1650 = vst.msk [vmem:[#allocation2 + $0x18] sm:$0xff] %vm1646, %v1617
        %1651 = vst.msk [vmem:[#allocation2 + $0x20] sm:$0xff] %vm1646, %v1618
        %1652 = vst.msk [vmem:[#allocation2 + $0x28] sm:$0xff] %vm1646, %v1619
        %1653 = vst.msk [vmem:[#allocation2 + $0x30] sm:$0xff] %vm1646, %v1620
        %1654 = vst.msk [vmem:[#allocation2 + $0x38] sm:$0xff] %vm1646, %v1621
        %1655 = vst.msk [vmem:[#allocation2 + $0x40] sm:$0xff] %vm1646, %v1622
        %1656 = vst.msk [vmem:[#allocation2 + $0x48] sm:$0xff] %vm1646, %v1623
        %1657 = vst.msk [vmem:[#allocation2 + $0x50] sm:$0xff] %vm1646, %v1624
        %1658 = vst.msk [vmem:[#allocation2 + $0x58] sm:$0xff] %vm1646, %v1625
        %1659 = vst.msk [vmem:[#allocation2 + $0x60] sm:$0xff] %vm1646, %v1626
        %1660 = vst.msk [vmem:[#allocation2 + $0x68] sm:$0xff] %vm1646, %v1627
        %1661 = vst.msk [vmem:[#allocation2 + $0x70] sm:$0xff] %vm1646, %v1628
        %1662 = vst.msk [vmem:[#allocation2 + $0x78] sm:$0xff] %vm1646, %v1629
        %1663 = vst.msk [vmem:[#allocation2 + $0x80] sm:$0xff] %vm1646, %v1630
        %1664 = vst.msk [vmem:[#allocation2 + $0x88] sm:$0xff] %vm1646, %v1631
        %1665 = vst.msk [vmem:[#allocation2 + $0x90] sm:$0xff] %vm1646, %v1632
        %1666 = vst.msk [vmem:[#allocation2 + $0x98] sm:$0xff] %vm1646, %v1633
        %1667 = vst.msk [vmem:[#allocation2 + $0xa0] sm:$0xff] %vm1646, %v1634
        %1668 = vst.msk [vmem:[#allocation2 + $0xa8] sm:$0xff] %vm1646, %v1635
        %1669 = vst.msk [vmem:[#allocation2 + $0xb0] sm:$0xff] %vm1646, %v1636
        %1670 = vst.msk [vmem:[#allocation2 + $0xb8] sm:$0xff] %vm1646, %v1637
        %1671 = vst.msk [vmem:[#allocation2 + $0xc0] sm:$0xff] %vm1646, %v1638
        %1672 = vst.msk [vmem:[#allocation2 + $0xc8] sm:$0xff] %vm1646, %v1639
        %1673 = vst.msk [vmem:[#allocation2 + $0xd0] sm:$0xff] %vm1646, %v1640
        %1674 = vst.msk [vmem:[#allocation2 + $0xd8] sm:$0xff] %vm1646, %v1641
        %1675 = vst.msk [vmem:[#allocation2 + $0xe0] sm:$0xff] %vm1646, %v1642
        %1676 = vst.msk [vmem:[#allocation2 + $0xe8] sm:$0xff] %vm1646, %v1643
        %1677 = vst.msk [vmem:[#allocation2 + $0xf0] sm:$0xff] %vm1646, %v1644
        %1678 = vst.msk [vmem:[#allocation2 + $0xf8] sm:$0xff] %vm1646, %v1645
      $region92: #{encoder_forward.2} parent=87 // pred_fallthru
        _
      %v1679 = vld [vmem:[#allocation2] sm:$0xff]
      %v1680 = vld [vmem:[#allocation2 + $0x8] sm:$0xff]
      %v1681 = vld [vmem:[#allocation2 + $0x10] sm:$0xff]
      %v1682 = vld [vmem:[#allocation2 + $0x18] sm:$0xff]
      %v1683 = vld [vmem:[#allocation2 + $0x20] sm:$0xff]
      %v1684 = vld [vmem:[#allocation2 + $0x28] sm:$0xff]
      %v1685 = vld [vmem:[#allocation2 + $0x30] sm:$0xff]
      %v1686 = vld [vmem:[#allocation2 + $0x38] sm:$0xff]
      %v1687 = vld [vmem:[#allocation2 + $0x40] sm:$0xff]
      %v1688 = vld [vmem:[#allocation2 + $0x48] sm:$0xff]
      %v1689 = vld [vmem:[#allocation2 + $0x50] sm:$0xff]
      %v1690 = vld [vmem:[#allocation2 + $0x58] sm:$0xff]
      %v1691 = vld [vmem:[#allocation2 + $0x60] sm:$0xff]
      %v1692 = vld [vmem:[#allocation2 + $0x68] sm:$0xff]
      %v1693 = vld [vmem:[#allocation2 + $0x70] sm:$0xff]
      %v1694 = vld [vmem:[#allocation2 + $0x78] sm:$0xff]
      %v1695 = vld [vmem:[#allocation2 + $0x80] sm:$0xff]
      %v1696 = vld [vmem:[#allocation2 + $0x88] sm:$0xff]
      %v1697 = vld [vmem:[#allocation2 + $0x90] sm:$0xff]
      %v1698 = vld [vmem:[#allocation2 + $0x98] sm:$0xff]
      %v1699 = vld [vmem:[#allocation2 + $0xa0] sm:$0xff]
      %v1700 = vld [vmem:[#allocation2 + $0xa8] sm:$0xff]
      %v1701 = vld [vmem:[#allocation2 + $0xb0] sm:$0xff]
      %v1702 = vld [vmem:[#allocation2 + $0xb8] sm:$0xff]
      %v1703 = vld [vmem:[#allocation2 + $0xc0] sm:$0xff]
      %v1704 = vld [vmem:[#allocation2 + $0xc8] sm:$0xff]
      %v1705 = vld [vmem:[#allocation2 + $0xd0] sm:$0xff]
      %v1706 = vld [vmem:[#allocation2 + $0xd8] sm:$0xff]
      %v1707 = vld [vmem:[#allocation2 + $0xe0] sm:$0xff]
      %v1708 = vld [vmem:[#allocation2 + $0xe8] sm:$0xff]
      %v1709 = vld [vmem:[#allocation2 + $0xf0] sm:$0xff]
      %v1710 = vld [vmem:[#allocation2 + $0xf8] sm:$0xff]
      %v1711 = vpack.c.bf16 %v1680, %v1679
      %v1712 = vpack.c.bf16 %v1682, %v1681
      %v1713 = vpack.c.bf16 %v1684, %v1683
      %v1714 = vpack.c.bf16 %v1686, %v1685
      %v1715 = vpack.c.bf16 %v1688, %v1687
      %v1716 = vpack.c.bf16 %v1690, %v1689
      %v1717 = vpack.c.bf16 %v1692, %v1691
      %v1718 = vpack.c.bf16 %v1694, %v1693
      %v1719 = vpack.c.bf16 %v1696, %v1695
      %v1720 = vpack.c.bf16 %v1698, %v1697
      %v1721 = vpack.c.bf16 %v1700, %v1699
      %v1722 = vpack.c.bf16 %v1702, %v1701
      %v1723 = vpack.c.bf16 %v1704, %v1703
      %v1724 = vpack.c.bf16 %v1706, %v1705
      %v1725 = vpack.c.bf16 %v1708, %v1707
      %v1726 = vpack.c.bf16 %v1710, %v1709
      %v1727 = vld [vmem:[%s800] sm:$0xf]
      %v1728 = vld [vmem:[%s800 + $0x4] sm:$0xf]
      %v1729 = vld [vmem:[%s800 + $0x8] sm:$0xf]
      %v1730 = vld [vmem:[%s800 + $0xc] sm:$0xf]
      %v1731 = vld [vmem:[%s825] sm:$0x1]
      %v1733 = vlaneseq
      %v1734 = vshrl.u32 %v1733, 7
      %v1735 = vsub.s32 0, %v1734
      %v1736 = vrot.slane %v1731, %v1735
      %v1742 = vunpack.c.l.b16 %v1727
      %v1743 = vunpack.c.l.b16 %v1728
      %v1744 = vunpack.c.l.b16 %v1729
      %v1745 = vunpack.c.l.b16 %v1730
      %v1746 = vpack.c.b16 %v1743, %v1742
      %v1747 = vpack.c.b16 %v1745, %v1744
      %vm1750 = vcmask 261120
      %v1752 = vsel %vm1750, %v1711, 0
      %v1755 = vsel %vm1750, %v1712, 0
      %v1758 = vsel %vm1750, %v1713, 0
      %v1761 = vsel %vm1750, %v1714, 0
      %v1764 = vsel %vm1750, %v1715, 0
      %v1767 = vsel %vm1750, %v1716, 0
      %v1770 = vsel %vm1750, %v1717, 0
      %v1773 = vsel %vm1750, %v1718, 0
      %v1776 = vsel %vm1750, %v1719, 0
      %v1779 = vsel %vm1750, %v1720, 0
      %v1782 = vsel %vm1750, %v1721, 0
      %v1785 = vsel %vm1750, %v1722, 0
      %v1788 = vsel %vm1750, %v1723, 0
      %v1791 = vsel %vm1750, %v1724, 0
      %v1794 = vsel %vm1750, %v1725, 0
      %v1797 = vsel %vm1750, %v1726, 0
      %1799 = vmatprep.subr.bf16.mxu0 0
      %1800 = vmatpush1.bf16.msra.mxu0 0
      %1801 = vmatprep.subr.bf16.mxu0 0
      %1802 = vmatpush1.bf16.msra.mxu0 0
      %1803 = vmatprep.subr.bf16.mxu0 0
      %1804 = vmatpush1.bf16.msra.mxu0 0
      %1805 = vmatprep.subr.bf16.mxu0 0
      %1806 = vmatpush1.bf16.msra.mxu0 0
      %1807 = vmatprep.subr.bf16.mxu0 0
      %1808 = vmatpush1.bf16.msra.mxu0 0
      %1809 = vmatprep.subr.bf16.mxu0 0
      %1810 = vmatpush1.bf16.msra.mxu0 0
      %1811 = vmatprep.subr.bf16.mxu0 0
      %1812 = vmatpush1.bf16.msra.mxu0 %v1747
      %1813 = vmatprep.subr.bf16.mxu0 0
      %1814 = vmatpush1.bf16.msra.mxu0 %v1746
      %1815 = vmatprep.subr.bf16.mxu0 0
      %1816 = vmatpush2.bf16.msra.mxu0 0
      %1817 = vmatprep.subr.bf16.mxu0 0
      %1818 = vmatpush2.bf16.msra.mxu0 0
      %1819 = vmatprep.subr.bf16.mxu0 0
      %1820 = vmatpush2.bf16.msra.mxu0 0
      %1821 = vmatprep.subr.bf16.mxu0 0
      %1822 = vmatpush2.bf16.msra.mxu0 0
      %1823 = vmatprep.subr.bf16.mxu0 0
      %1824 = vmatpush2.bf16.msra.mxu0 0
      %1825 = vmatprep.subr.bf16.mxu0 0
      %1826 = vmatpush2.bf16.msra.mxu0 0
      %1827 = vmatprep.subr.bf16.mxu0 0
      %1828 = vmatpush2.bf16.msra.mxu0 0
      %1829 = vmatprep.subr.bf16.mxu0 0
      %1830 = vmatpush2.bf16.msra.mxu0 0
      %1831 = vmatprep.mubr.bf16.mxu0 0
      %1832 = vmatmul.mubr.bf16.gmra.mxu0 %v1752
      %v1833 = vpop.f32.mrf.mxu0
      %v1834 = vadd.f32 %v1736, %v1833
      %v1835 = vpop.f32.mrf.mxu0
      %v1836 = vpop.f32.mrf.mxu0
      %v1837 = vadd.f32 %v1736, %v1836
      %v1838 = vpop.f32.mrf.mxu0
      %1839 = vmatprep.mubr.bf16.mxu0 0
      %1840 = vmatmul.mubr.bf16.gmra.mxu0 %v1755
      %v1841 = vpop.f32.mrf.mxu0
      %v1842 = vadd.f32 %v1736, %v1841
      %v1843 = vpop.f32.mrf.mxu0
      %v1844 = vpop.f32.mrf.mxu0
      %v1845 = vadd.f32 %v1736, %v1844
      %v1846 = vpop.f32.mrf.mxu0
      %1847 = vmatprep.mubr.bf16.mxu0 0
      %1848 = vmatmul.mubr.bf16.gmra.mxu0 %v1758
      %v1849 = vpop.f32.mrf.mxu0
      %v1850 = vadd.f32 %v1736, %v1849
      %v1851 = vpop.f32.mrf.mxu0
      %v1852 = vpop.f32.mrf.mxu0
      %v1853 = vadd.f32 %v1736, %v1852
      %v1854 = vpop.f32.mrf.mxu0
      %1855 = vmatprep.mubr.bf16.mxu0 0
      %1856 = vmatmul.mubr.bf16.gmra.mxu0 %v1761
      %v1857 = vpop.f32.mrf.mxu0
      %v1858 = vadd.f32 %v1736, %v1857
      %v1859 = vpop.f32.mrf.mxu0
      %v1860 = vpop.f32.mrf.mxu0
      %v1861 = vadd.f32 %v1736, %v1860
      %v1862 = vpop.f32.mrf.mxu0
      %1863 = vmatprep.mubr.bf16.mxu0 0
      %1864 = vmatmul.mubr.bf16.gmra.mxu0 %v1764
      %v1865 = vpop.f32.mrf.mxu0
      %v1866 = vadd.f32 %v1736, %v1865
      %v1867 = vpop.f32.mrf.mxu0
      %v1868 = vpop.f32.mrf.mxu0
      %v1869 = vadd.f32 %v1736, %v1868
      %v1870 = vpop.f32.mrf.mxu0
      %1871 = vmatprep.mubr.bf16.mxu0 0
      %1872 = vmatmul.mubr.bf16.gmra.mxu0 %v1767
      %v1873 = vpop.f32.mrf.mxu0
      %v1874 = vadd.f32 %v1736, %v1873
      %v1875 = vpop.f32.mrf.mxu0
      %v1876 = vpop.f32.mrf.mxu0
      %v1877 = vadd.f32 %v1736, %v1876
      %v1878 = vpop.f32.mrf.mxu0
      %1879 = vmatprep.mubr.bf16.mxu0 0
      %1880 = vmatmul.mubr.bf16.gmra.mxu0 %v1770
      %v1881 = vpop.f32.mrf.mxu0
      %v1882 = vadd.f32 %v1736, %v1881
      %v1883 = vpop.f32.mrf.mxu0
      %v1884 = vpop.f32.mrf.mxu0
      %v1885 = vadd.f32 %v1736, %v1884
      %v1886 = vpop.f32.mrf.mxu0
      %1887 = vmatprep.mubr.bf16.mxu0 0
      %1888 = vmatmul.mubr.bf16.gmra.mxu0 %v1773
      %v1889 = vpop.f32.mrf.mxu0
      %v1890 = vadd.f32 %v1736, %v1889
      %v1891 = vpop.f32.mrf.mxu0
      %v1892 = vpop.f32.mrf.mxu0
      %v1893 = vadd.f32 %v1736, %v1892
      %v1894 = vpop.f32.mrf.mxu0
      %1895 = vmatprep.mubr.bf16.mxu0 0
      %1896 = vmatmul.mubr.bf16.gmra.mxu0 %v1776
      %v1897 = vpop.f32.mrf.mxu0
      %v1898 = vadd.f32 %v1736, %v1897
      %v1899 = vpop.f32.mrf.mxu0
      %v1900 = vpop.f32.mrf.mxu0
      %v1901 = vadd.f32 %v1736, %v1900
      %v1902 = vpop.f32.mrf.mxu0
      %1903 = vmatprep.mubr.bf16.mxu0 0
      %1904 = vmatmul.mubr.bf16.gmra.mxu0 %v1779
      %v1905 = vpop.f32.mrf.mxu0
      %v1906 = vadd.f32 %v1736, %v1905
      %v1907 = vpop.f32.mrf.mxu0
      %v1908 = vpop.f32.mrf.mxu0
      %v1909 = vadd.f32 %v1736, %v1908
      %v1910 = vpop.f32.mrf.mxu0
      %1911 = vmatprep.mubr.bf16.mxu0 0
      %1912 = vmatmul.mubr.bf16.gmra.mxu0 %v1782
      %v1913 = vpop.f32.mrf.mxu0
      %v1914 = vadd.f32 %v1736, %v1913
      %v1915 = vpop.f32.mrf.mxu0
      %v1916 = vpop.f32.mrf.mxu0
      %v1917 = vadd.f32 %v1736, %v1916
      %v1918 = vpop.f32.mrf.mxu0
      %1919 = vmatprep.mubr.bf16.mxu0 0
      %1920 = vmatmul.mubr.bf16.gmra.mxu0 %v1785
      %v1921 = vpop.f32.mrf.mxu0
      %v1922 = vadd.f32 %v1736, %v1921
      %v1923 = vpop.f32.mrf.mxu0
      %v1924 = vpop.f32.mrf.mxu0
      %v1925 = vadd.f32 %v1736, %v1924
      %v1926 = vpop.f32.mrf.mxu0
      %1927 = vmatprep.mubr.bf16.mxu0 0
      %1928 = vmatmul.mubr.bf16.gmra.mxu0 %v1788
      %v1929 = vpop.f32.mrf.mxu0
      %v1930 = vadd.f32 %v1736, %v1929
      %v1931 = vpop.f32.mrf.mxu0
      %v1932 = vpop.f32.mrf.mxu0
      %v1933 = vadd.f32 %v1736, %v1932
      %v1934 = vpop.f32.mrf.mxu0
      %1935 = vmatprep.mubr.bf16.mxu0 0
      %1936 = vmatmul.mubr.bf16.gmra.mxu0 %v1791
      %v1937 = vpop.f32.mrf.mxu0
      %v1938 = vadd.f32 %v1736, %v1937
      %v1939 = vpop.f32.mrf.mxu0
      %v1940 = vpop.f32.mrf.mxu0
      %v1941 = vadd.f32 %v1736, %v1940
      %v1942 = vpop.f32.mrf.mxu0
      %1943 = vmatprep.mubr.bf16.mxu0 0
      %1944 = vmatmul.mubr.bf16.gmra.mxu0 %v1794
      %v1945 = vpop.f32.mrf.mxu0
      %v1946 = vadd.f32 %v1736, %v1945
      %v1947 = vpop.f32.mrf.mxu0
      %v1948 = vpop.f32.mrf.mxu0
      %v1949 = vadd.f32 %v1736, %v1948
      %v1950 = vpop.f32.mrf.mxu0
      %1951 = vmatprep.mubr.bf16.mxu0 0
      %1952 = vmatmul.mubr.bf16.gmra.mxu0 %v1797
      %v1953 = vpop.f32.mrf.mxu0
      %v1954 = vadd.f32 %v1736, %v1953
      %v1955 = vpop.f32.mrf.mxu0
      %v1956 = vpop.f32.mrf.mxu0
      %v1957 = vadd.f32 %v1736, %v1956
      %v1958 = vpop.f32.mrf.mxu0
      %1959 = vdwg.mxu0
      %v1960 = vxor.u32 %v1834, 2147483648
      %v1961 = vxor.u32 %v1837, 2147483648
      %v1962 = vxor.u32 %v1842, 2147483648
      %v1963 = vxor.u32 %v1845, 2147483648
      %v1964 = vxor.u32 %v1850, 2147483648
      %v1965 = vxor.u32 %v1853, 2147483648
      %v1966 = vxor.u32 %v1858, 2147483648
      %v1967 = vxor.u32 %v1861, 2147483648
      %v1968 = vxor.u32 %v1866, 2147483648
      %v1969 = vxor.u32 %v1869, 2147483648
      %v1970 = vxor.u32 %v1874, 2147483648
      %v1971 = vxor.u32 %v1877, 2147483648
      %v1972 = vxor.u32 %v1882, 2147483648
      %v1973 = vxor.u32 %v1885, 2147483648
      %v1974 = vxor.u32 %v1890, 2147483648
      %v1975 = vxor.u32 %v1893, 2147483648
      %v1976 = vxor.u32 %v1898, 2147483648
      %v1977 = vxor.u32 %v1901, 2147483648
      %v1978 = vxor.u32 %v1906, 2147483648
      %v1979 = vxor.u32 %v1909, 2147483648
      %v1980 = vxor.u32 %v1914, 2147483648
      %v1981 = vxor.u32 %v1917, 2147483648
      %v1982 = vxor.u32 %v1922, 2147483648
      %v1983 = vxor.u32 %v1925, 2147483648
      %v1984 = vxor.u32 %v1930, 2147483648
      %v1985 = vxor.u32 %v1933, 2147483648
      %v1986 = vxor.u32 %v1938, 2147483648
      %v1987 = vxor.u32 %v1941, 2147483648
      %v1988 = vxor.u32 %v1946, 2147483648
      %v1989 = vxor.u32 %v1949, 2147483648
      %v1990 = vxor.u32 %v1954, 2147483648
      %v1991 = vxor.u32 %v1957, 2147483648
      %v1992 = vmul.f32 %v1960, 1.442695
      %v1993 = vpow.pop %v1992
      %v1994 = vmul.f32 %v1961, 1.442695
      %v1995 = vpow.pop %v1994
      %v1996 = vmul.f32 %v1962, 1.442695
      %v1997 = vpow.pop %v1996
      %v1998 = vmul.f32 %v1963, 1.442695
      %v1999 = vpow.pop %v1998
      %v2000 = vmul.f32 %v1964, 1.442695
      %v2001 = vpow.pop %v2000
      %v2002 = vmul.f32 %v1965, 1.442695
      %v2003 = vpow.pop %v2002
      %v2004 = vmul.f32 %v1966, 1.442695
      %v2005 = vpow.pop %v2004
      %v2006 = vmul.f32 %v1967, 1.442695
      %v2007 = vpow.pop %v2006
      %v2008 = vmul.f32 %v1968, 1.442695
      %v2009 = vpow.pop %v2008
      %v2010 = vmul.f32 %v1969, 1.442695
      %v2011 = vpow.pop %v2010
      %v2012 = vmul.f32 %v1970, 1.442695
      %v2013 = vpow.pop %v2012
      %v2014 = vmul.f32 %v1971, 1.442695
      %v2015 = vpow.pop %v2014
      %v2016 = vmul.f32 %v1972, 1.442695
      %v2017 = vpow.pop %v2016
      %v2018 = vmul.f32 %v1973, 1.442695
      %v2019 = vpow.pop %v2018
      %v2020 = vmul.f32 %v1974, 1.442695
      %v2021 = vpow.pop %v2020
      %v2022 = vmul.f32 %v1975, 1.442695
      %v2023 = vpow.pop %v2022
      %v2024 = vmul.f32 %v1976, 1.442695
      %v2025 = vpow.pop %v2024
      %v2026 = vmul.f32 %v1977, 1.442695
      %v2027 = vpow.pop %v2026
      %v2028 = vmul.f32 %v1978, 1.442695
      %v2029 = vpow.pop %v2028
      %v2030 = vmul.f32 %v1979, 1.442695
      %v2031 = vpow.pop %v2030
      %v2032 = vmul.f32 %v1980, 1.442695
      %v2033 = vpow.pop %v2032
      %v2034 = vmul.f32 %v1981, 1.442695
      %v2035 = vpow.pop %v2034
      %v2036 = vmul.f32 %v1982, 1.442695
      %v2037 = vpow.pop %v2036
      %v2038 = vmul.f32 %v1983, 1.442695
      %v2039 = vpow.pop %v2038
      %v2040 = vmul.f32 %v1984, 1.442695
      %v2041 = vpow.pop %v2040
      %v2042 = vmul.f32 %v1985, 1.442695
      %v2043 = vpow.pop %v2042
      %v2044 = vmul.f32 %v1986, 1.442695
      %v2045 = vpow.pop %v2044
      %v2046 = vmul.f32 %v1987, 1.442695
      %v2047 = vpow.pop %v2046
      %v2048 = vmul.f32 %v1988, 1.442695
      %v2049 = vpow.pop %v2048
      %v2050 = vmul.f32 %v1989, 1.442695
      %v2051 = vpow.pop %v2050
      %v2052 = vmul.f32 %v1990, 1.442695
      %v2053 = vpow.pop %v2052
      %v2054 = vmul.f32 %v1991, 1.442695
      %v2055 = vpow.pop %v2054
      %v2056 = vadd.f32 %v1993, 1.0
      %v2057 = vadd.f32 %v1995, 1.0
      %v2058 = vadd.f32 %v1997, 1.0
      %v2059 = vadd.f32 %v1999, 1.0
      %v2060 = vadd.f32 %v2001, 1.0
      %v2061 = vadd.f32 %v2003, 1.0
      %v2062 = vadd.f32 %v2005, 1.0
      %v2063 = vadd.f32 %v2007, 1.0
      %v2064 = vadd.f32 %v2009, 1.0
      %v2065 = vadd.f32 %v2011, 1.0
      %v2066 = vadd.f32 %v2013, 1.0
      %v2067 = vadd.f32 %v2015, 1.0
      %v2068 = vadd.f32 %v2017, 1.0
      %v2069 = vadd.f32 %v2019, 1.0
      %v2070 = vadd.f32 %v2021, 1.0
      %v2071 = vadd.f32 %v2023, 1.0
      %v2072 = vadd.f32 %v2025, 1.0
      %v2073 = vadd.f32 %v2027, 1.0
      %v2074 = vadd.f32 %v2029, 1.0
      %v2075 = vadd.f32 %v2031, 1.0
      %v2076 = vadd.f32 %v2033, 1.0
      %v2077 = vadd.f32 %v2035, 1.0
      %v2078 = vadd.f32 %v2037, 1.0
      %v2079 = vadd.f32 %v2039, 1.0
      %v2080 = vadd.f32 %v2041, 1.0
      %v2081 = vadd.f32 %v2043, 1.0
      %v2082 = vadd.f32 %v2045, 1.0
      %v2083 = vadd.f32 %v2047, 1.0
      %v2084 = vadd.f32 %v2049, 1.0
      %v2085 = vadd.f32 %v2051, 1.0
      %v2086 = vadd.f32 %v2053, 1.0
      %v2087 = vadd.f32 %v2055, 1.0
      %v2088 = vrcp.pop %v2056
      %v2089 = vmul.f32 1.0, %v2088
      %v2090 = vrcp.pop %v2057
      %v2091 = vmul.f32 1.0, %v2090
      %v2092 = vrcp.pop %v2058
      %v2093 = vmul.f32 1.0, %v2092
      %v2094 = vrcp.pop %v2059
      %v2095 = vmul.f32 1.0, %v2094
      %v2096 = vrcp.pop %v2060
      %v2097 = vmul.f32 1.0, %v2096
      %v2098 = vrcp.pop %v2061
      %v2099 = vmul.f32 1.0, %v2098
      %v2100 = vrcp.pop %v2062
      %v2101 = vmul.f32 1.0, %v2100
      %v2102 = vrcp.pop %v2063
      %v2103 = vmul.f32 1.0, %v2102
      %v2104 = vrcp.pop %v2064
      %v2105 = vmul.f32 1.0, %v2104
      %v2106 = vrcp.pop %v2065
      %v2107 = vmul.f32 1.0, %v2106
      %v2108 = vrcp.pop %v2066
      %v2109 = vmul.f32 1.0, %v2108
      %v2110 = vrcp.pop %v2067
      %v2111 = vmul.f32 1.0, %v2110
      %v2112 = vrcp.pop %v2068
      %v2113 = vmul.f32 1.0, %v2112
      %v2114 = vrcp.pop %v2069
      %v2115 = vmul.f32 1.0, %v2114
      %v2116 = vrcp.pop %v2070
      %v2117 = vmul.f32 1.0, %v2116
      %v2118 = vrcp.pop %v2071
      %v2119 = vmul.f32 1.0, %v2118
      %v2120 = vrcp.pop %v2072
      %v2121 = vmul.f32 1.0, %v2120
      %v2122 = vrcp.pop %v2073
      %v2123 = vmul.f32 1.0, %v2122
      %v2124 = vrcp.pop %v2074
      %v2125 = vmul.f32 1.0, %v2124
      %v2126 = vrcp.pop %v2075
      %v2127 = vmul.f32 1.0, %v2126
      %v2128 = vrcp.pop %v2076
      %v2129 = vmul.f32 1.0, %v2128
      %v2130 = vrcp.pop %v2077
      %v2131 = vmul.f32 1.0, %v2130
      %v2132 = vrcp.pop %v2078
      %v2133 = vmul.f32 1.0, %v2132
      %v2134 = vrcp.pop %v2079
      %v2135 = vmul.f32 1.0, %v2134
      %v2136 = vrcp.pop %v2080
      %v2137 = vmul.f32 1.0, %v2136
      %v2138 = vrcp.pop %v2081
      %v2139 = vmul.f32 1.0, %v2138
      %v2140 = vrcp.pop %v2082
      %v2141 = vmul.f32 1.0, %v2140
      %v2142 = vrcp.pop %v2083
      %v2143 = vmul.f32 1.0, %v2142
      %v2144 = vrcp.pop %v2084
      %v2145 = vmul.f32 1.0, %v2144
      %v2146 = vrcp.pop %v2085
      %v2147 = vmul.f32 1.0, %v2146
      %v2148 = vrcp.pop %v2086
      %v2149 = vmul.f32 1.0, %v2148
      %v2150 = vrcp.pop %v2087
      %v2151 = vmul.f32 1.0, %v2150
      %v2152 = vld [vmem:[%s809] sm:$0xf]
      %v2153 = vld [vmem:[%s809 + $0x4] sm:$0xf]
      %v2154 = vld [vmem:[%s809 + $0x8] sm:$0xf]
      %v2155 = vld [vmem:[%s809 + $0xc] sm:$0xf]
      %v2156 = vld [vmem:[%s832] sm:$0x1]
      %v2158 = vlaneseq
      %v2159 = vshrl.u32 %v2158, 7
      %v2160 = vsub.s32 0, %v2159
      %v2161 = vrot.slane %v2156, %v2160
      %v2167 = vunpack.c.l.b16 %v2152
      %v2168 = vunpack.c.l.b16 %v2153
      %v2169 = vunpack.c.l.b16 %v2154
      %v2170 = vunpack.c.l.b16 %v2155
      %v2171 = vpack.c.b16 %v2168, %v2167
      %v2172 = vpack.c.b16 %v2170, %v2169
      %2175 = vmatprep.subr.bf16.mxu0 0
      %2176 = vmatpush1.bf16.msra.mxu0 0
      %2177 = vmatprep.subr.bf16.mxu0 0
      %2178 = vmatpush1.bf16.msra.mxu0 0
      %2179 = vmatprep.subr.bf16.mxu0 0
      %2180 = vmatpush1.bf16.msra.mxu0 0
      %2181 = vmatprep.subr.bf16.mxu0 0
      %2182 = vmatpush1.bf16.msra.mxu0 0
      %2183 = vmatprep.subr.bf16.mxu0 0
      %2184 = vmatpush1.bf16.msra.mxu0 0
      %2185 = vmatprep.subr.bf16.mxu0 0
      %2186 = vmatpush1.bf16.msra.mxu0 0
      %2187 = vmatprep.subr.bf16.mxu0 0
      %2188 = vmatpush1.bf16.msra.mxu0 %v2172
      %2189 = vmatprep.subr.bf16.mxu0 0
      %2190 = vmatpush1.bf16.msra.mxu0 %v2171
      %2191 = vmatprep.subr.bf16.mxu0 0
      %2192 = vmatpush2.bf16.msra.mxu0 0
      %2193 = vmatprep.subr.bf16.mxu0 0
      %2194 = vmatpush2.bf16.msra.mxu0 0
      %2195 = vmatprep.subr.bf16.mxu0 0
      %2196 = vmatpush2.bf16.msra.mxu0 0
      %2197 = vmatprep.subr.bf16.mxu0 0
      %2198 = vmatpush2.bf16.msra.mxu0 0
      %2199 = vmatprep.subr.bf16.mxu0 0
      %2200 = vmatpush2.bf16.msra.mxu0 0
      %2201 = vmatprep.subr.bf16.mxu0 0
      %2202 = vmatpush2.bf16.msra.mxu0 0
      %2203 = vmatprep.subr.bf16.mxu0 0
      %2204 = vmatpush2.bf16.msra.mxu0 0
      %2205 = vmatprep.subr.bf16.mxu0 0
      %2206 = vmatpush2.bf16.msra.mxu0 0
      %2207 = vmatprep.mubr.bf16.mxu0 0
      %2208 = vmatmul.mubr.bf16.gmra.mxu0 %v1752
      %v2209 = vpop.f32.mrf.mxu0
      %v2210 = vadd.f32 %v2161, %v2209
      %v2211 = vpop.f32.mrf.mxu0
      %v2212 = vpop.f32.mrf.mxu0
      %v2213 = vadd.f32 %v2161, %v2212
      %v2214 = vpop.f32.mrf.mxu0
      %2215 = vmatprep.mubr.bf16.mxu0 0
      %2216 = vmatmul.mubr.bf16.gmra.mxu0 %v1755
      %v2217 = vpop.f32.mrf.mxu0
      %v2218 = vadd.f32 %v2161, %v2217
      %v2219 = vpop.f32.mrf.mxu0
      %v2220 = vpop.f32.mrf.mxu0
      %v2221 = vadd.f32 %v2161, %v2220
      %v2222 = vpop.f32.mrf.mxu0
      %2223 = vmatprep.mubr.bf16.mxu0 0
      %2224 = vmatmul.mubr.bf16.gmra.mxu0 %v1758
      %v2225 = vpop.f32.mrf.mxu0
      %v2226 = vadd.f32 %v2161, %v2225
      %v2227 = vpop.f32.mrf.mxu0
      %v2228 = vpop.f32.mrf.mxu0
      %v2229 = vadd.f32 %v2161, %v2228
      %v2230 = vpop.f32.mrf.mxu0
      %2231 = vmatprep.mubr.bf16.mxu0 0
      %2232 = vmatmul.mubr.bf16.gmra.mxu0 %v1761
      %v2233 = vpop.f32.mrf.mxu0
      %v2234 = vadd.f32 %v2161, %v2233
      %v2235 = vpop.f32.mrf.mxu0
      %v2236 = vpop.f32.mrf.mxu0
      %v2237 = vadd.f32 %v2161, %v2236
      %v2238 = vpop.f32.mrf.mxu0
      %2239 = vmatprep.mubr.bf16.mxu0 0
      %2240 = vmatmul.mubr.bf16.gmra.mxu0 %v1764
      %v2241 = vpop.f32.mrf.mxu0
      %v2242 = vadd.f32 %v2161, %v2241
      %v2243 = vpop.f32.mrf.mxu0
      %v2244 = vpop.f32.mrf.mxu0
      %v2245 = vadd.f32 %v2161, %v2244
      %v2246 = vpop.f32.mrf.mxu0
      %2247 = vmatprep.mubr.bf16.mxu0 0
      %2248 = vmatmul.mubr.bf16.gmra.mxu0 %v1767
      %v2249 = vpop.f32.mrf.mxu0
      %v2250 = vadd.f32 %v2161, %v2249
      %v2251 = vpop.f32.mrf.mxu0
      %v2252 = vpop.f32.mrf.mxu0
      %v2253 = vadd.f32 %v2161, %v2252
      %v2254 = vpop.f32.mrf.mxu0
      %2255 = vmatprep.mubr.bf16.mxu0 0
      %2256 = vmatmul.mubr.bf16.gmra.mxu0 %v1770
      %v2257 = vpop.f32.mrf.mxu0
      %v2258 = vadd.f32 %v2161, %v2257
      %v2259 = vpop.f32.mrf.mxu0
      %v2260 = vpop.f32.mrf.mxu0
      %v2261 = vadd.f32 %v2161, %v2260
      %v2262 = vpop.f32.mrf.mxu0
      %2263 = vmatprep.mubr.bf16.mxu0 0
      %2264 = vmatmul.mubr.bf16.gmra.mxu0 %v1773
      %v2265 = vpop.f32.mrf.mxu0
      %v2266 = vadd.f32 %v2161, %v2265
      %v2267 = vpop.f32.mrf.mxu0
      %v2268 = vpop.f32.mrf.mxu0
      %v2269 = vadd.f32 %v2161, %v2268
      %v2270 = vpop.f32.mrf.mxu0
      %2271 = vmatprep.mubr.bf16.mxu0 0
      %2272 = vmatmul.mubr.bf16.gmra.mxu0 %v1776
      %v2273 = vpop.f32.mrf.mxu0
      %v2274 = vadd.f32 %v2161, %v2273
      %v2275 = vpop.f32.mrf.mxu0
      %v2276 = vpop.f32.mrf.mxu0
      %v2277 = vadd.f32 %v2161, %v2276
      %v2278 = vpop.f32.mrf.mxu0
      %2279 = vmatprep.mubr.bf16.mxu0 0
      %2280 = vmatmul.mubr.bf16.gmra.mxu0 %v1779
      %v2281 = vpop.f32.mrf.mxu0
      %v2282 = vadd.f32 %v2161, %v2281
      %v2283 = vpop.f32.mrf.mxu0
      %v2284 = vpop.f32.mrf.mxu0
      %v2285 = vadd.f32 %v2161, %v2284
      %v2286 = vpop.f32.mrf.mxu0
      %2287 = vmatprep.mubr.bf16.mxu0 0
      %2288 = vmatmul.mubr.bf16.gmra.mxu0 %v1782
      %v2289 = vpop.f32.mrf.mxu0
      %v2290 = vadd.f32 %v2161, %v2289
      %v2291 = vpop.f32.mrf.mxu0
      %v2292 = vpop.f32.mrf.mxu0
      %v2293 = vadd.f32 %v2161, %v2292
      %v2294 = vpop.f32.mrf.mxu0
      %2295 = vmatprep.mubr.bf16.mxu0 0
      %2296 = vmatmul.mubr.bf16.gmra.mxu0 %v1785
      %v2297 = vpop.f32.mrf.mxu0
      %v2298 = vadd.f32 %v2161, %v2297
      %v2299 = vpop.f32.mrf.mxu0
      %v2300 = vpop.f32.mrf.mxu0
      %v2301 = vadd.f32 %v2161, %v2300
      %v2302 = vpop.f32.mrf.mxu0
      %2303 = vmatprep.mubr.bf16.mxu0 0
      %2304 = vmatmul.mubr.bf16.gmra.mxu0 %v1788
      %v2305 = vpop.f32.mrf.mxu0
      %v2306 = vadd.f32 %v2161, %v2305
      %v2307 = vpop.f32.mrf.mxu0
      %v2308 = vpop.f32.mrf.mxu0
      %v2309 = vadd.f32 %v2161, %v2308
      %v2310 = vpop.f32.mrf.mxu0
      %2311 = vmatprep.mubr.bf16.mxu0 0
      %2312 = vmatmul.mubr.bf16.gmra.mxu0 %v1791
      %v2313 = vpop.f32.mrf.mxu0
      %v2314 = vadd.f32 %v2161, %v2313
      %v2315 = vpop.f32.mrf.mxu0
      %v2316 = vpop.f32.mrf.mxu0
      %v2317 = vadd.f32 %v2161, %v2316
      %v2318 = vpop.f32.mrf.mxu0
      %2319 = vmatprep.mubr.bf16.mxu0 0
      %2320 = vmatmul.mubr.bf16.gmra.mxu0 %v1794
      %v2321 = vpop.f32.mrf.mxu0
      %v2322 = vadd.f32 %v2161, %v2321
      %v2323 = vpop.f32.mrf.mxu0
      %v2324 = vpop.f32.mrf.mxu0
      %v2325 = vadd.f32 %v2161, %v2324
      %v2326 = vpop.f32.mrf.mxu0
      %2327 = vmatprep.mubr.bf16.mxu0 0
      %2328 = vmatmul.mubr.bf16.gmra.mxu0 %v1797
      %v2329 = vpop.f32.mrf.mxu0
      %v2330 = vadd.f32 %v2161, %v2329
      %v2331 = vpop.f32.mrf.mxu0
      %v2332 = vpop.f32.mrf.mxu0
      %v2333 = vadd.f32 %v2161, %v2332
      %v2334 = vpop.f32.mrf.mxu0
      %2335 = vdwg.mxu0
      %v2336 = vxor.u32 %v2210, 2147483648
      %v2337 = vxor.u32 %v2213, 2147483648
      %v2338 = vxor.u32 %v2218, 2147483648
      %v2339 = vxor.u32 %v2221, 2147483648
      %v2340 = vxor.u32 %v2226, 2147483648
      %v2341 = vxor.u32 %v2229, 2147483648
      %v2342 = vxor.u32 %v2234, 2147483648
      %v2343 = vxor.u32 %v2237, 2147483648
      %v2344 = vxor.u32 %v2242, 2147483648
      %v2345 = vxor.u32 %v2245, 2147483648
      %v2346 = vxor.u32 %v2250, 2147483648
      %v2347 = vxor.u32 %v2253, 2147483648
      %v2348 = vxor.u32 %v2258, 2147483648
      %v2349 = vxor.u32 %v2261, 2147483648
      %v2350 = vxor.u32 %v2266, 2147483648
      %v2351 = vxor.u32 %v2269, 2147483648
      %v2352 = vxor.u32 %v2274, 2147483648
      %v2353 = vxor.u32 %v2277, 2147483648
      %v2354 = vxor.u32 %v2282, 2147483648
      %v2355 = vxor.u32 %v2285, 2147483648
      %v2356 = vxor.u32 %v2290, 2147483648
      %v2357 = vxor.u32 %v2293, 2147483648
      %v2358 = vxor.u32 %v2298, 2147483648
      %v2359 = vxor.u32 %v2301, 2147483648
      %v2360 = vxor.u32 %v2306, 2147483648
      %v2361 = vxor.u32 %v2309, 2147483648
      %v2362 = vxor.u32 %v2314, 2147483648
      %v2363 = vxor.u32 %v2317, 2147483648
      %v2364 = vxor.u32 %v2322, 2147483648
      %v2365 = vxor.u32 %v2325, 2147483648
      %v2366 = vxor.u32 %v2330, 2147483648
      %v2367 = vxor.u32 %v2333, 2147483648
      %v2368 = vmul.f32 %v2336, 1.442695
      %v2369 = vpow.pop %v2368
      %v2370 = vmul.f32 %v2337, 1.442695
      %v2371 = vpow.pop %v2370
      %v2372 = vmul.f32 %v2338, 1.442695
      %v2373 = vpow.pop %v2372
      %v2374 = vmul.f32 %v2339, 1.442695
      %v2375 = vpow.pop %v2374
      %v2376 = vmul.f32 %v2340, 1.442695
      %v2377 = vpow.pop %v2376
      %v2378 = vmul.f32 %v2341, 1.442695
      %v2379 = vpow.pop %v2378
      %v2380 = vmul.f32 %v2342, 1.442695
      %v2381 = vpow.pop %v2380
      %v2382 = vmul.f32 %v2343, 1.442695
      %v2383 = vpow.pop %v2382
      %v2384 = vmul.f32 %v2344, 1.442695
      %v2385 = vpow.pop %v2384
      %v2386 = vmul.f32 %v2345, 1.442695
      %v2387 = vpow.pop %v2386
      %v2388 = vmul.f32 %v2346, 1.442695
      %v2389 = vpow.pop %v2388
      %v2390 = vmul.f32 %v2347, 1.442695
      %v2391 = vpow.pop %v2390
      %v2392 = vmul.f32 %v2348, 1.442695
      %v2393 = vpow.pop %v2392
      %v2394 = vmul.f32 %v2349, 1.442695
      %v2395 = vpow.pop %v2394
      %v2396 = vmul.f32 %v2350, 1.442695
      %v2397 = vpow.pop %v2396
      %v2398 = vmul.f32 %v2351, 1.442695
      %v2399 = vpow.pop %v2398
      %v2400 = vmul.f32 %v2352, 1.442695
      %v2401 = vpow.pop %v2400
      %v2402 = vmul.f32 %v2353, 1.442695
      %v2403 = vpow.pop %v2402
      %v2404 = vmul.f32 %v2354, 1.442695
      %v2405 = vpow.pop %v2404
      %v2406 = vmul.f32 %v2355, 1.442695
      %v2407 = vpow.pop %v2406
      %v2408 = vmul.f32 %v2356, 1.442695
      %v2409 = vpow.pop %v2408
      %v2410 = vmul.f32 %v2357, 1.442695
      %v2411 = vpow.pop %v2410
      %v2412 = vmul.f32 %v2358, 1.442695
      %v2413 = vpow.pop %v2412
      %v2414 = vmul.f32 %v2359, 1.442695
      %v2415 = vpow.pop %v2414
      %v2416 = vmul.f32 %v2360, 1.442695
      %v2417 = vpow.pop %v2416
      %v2418 = vmul.f32 %v2361, 1.442695
      %v2419 = vpow.pop %v2418
      %v2420 = vmul.f32 %v2362, 1.442695
      %v2421 = vpow.pop %v2420
      %v2422 = vmul.f32 %v2363, 1.442695
      %v2423 = vpow.pop %v2422
      %v2424 = vmul.f32 %v2364, 1.442695
      %v2425 = vpow.pop %v2424
      %v2426 = vmul.f32 %v2365, 1.442695
      %v2427 = vpow.pop %v2426
      %v2428 = vmul.f32 %v2366, 1.442695
      %v2429 = vpow.pop %v2428
      %v2430 = vmul.f32 %v2367, 1.442695
      %v2431 = vpow.pop %v2430
      %v2432 = vadd.f32 %v2369, 1.0
      %v2433 = vadd.f32 %v2371, 1.0
      %v2434 = vadd.f32 %v2373, 1.0
      %v2435 = vadd.f32 %v2375, 1.0
      %v2436 = vadd.f32 %v2377, 1.0
      %v2437 = vadd.f32 %v2379, 1.0
      %v2438 = vadd.f32 %v2381, 1.0
      %v2439 = vadd.f32 %v2383, 1.0
      %v2440 = vadd.f32 %v2385, 1.0
      %v2441 = vadd.f32 %v2387, 1.0
      %v2442 = vadd.f32 %v2389, 1.0
      %v2443 = vadd.f32 %v2391, 1.0
      %v2444 = vadd.f32 %v2393, 1.0
      %v2445 = vadd.f32 %v2395, 1.0
      %v2446 = vadd.f32 %v2397, 1.0
      %v2447 = vadd.f32 %v2399, 1.0
      %v2448 = vadd.f32 %v2401, 1.0
      %v2449 = vadd.f32 %v2403, 1.0
      %v2450 = vadd.f32 %v2405, 1.0
      %v2451 = vadd.f32 %v2407, 1.0
      %v2452 = vadd.f32 %v2409, 1.0
      %v2453 = vadd.f32 %v2411, 1.0
      %v2454 = vadd.f32 %v2413, 1.0
      %v2455 = vadd.f32 %v2415, 1.0
      %v2456 = vadd.f32 %v2417, 1.0
      %v2457 = vadd.f32 %v2419, 1.0
      %v2458 = vadd.f32 %v2421, 1.0
      %v2459 = vadd.f32 %v2423, 1.0
      %v2460 = vadd.f32 %v2425, 1.0
      %v2461 = vadd.f32 %v2427, 1.0
      %v2462 = vadd.f32 %v2429, 1.0
      %v2463 = vadd.f32 %v2431, 1.0
      %v2464 = vrcp.pop %v2432
      %v2465 = vmul.f32 1.0, %v2464
      %v2466 = vrcp.pop %v2433
      %v2467 = vmul.f32 1.0, %v2466
      %v2468 = vrcp.pop %v2434
      %v2469 = vmul.f32 1.0, %v2468
      %v2470 = vrcp.pop %v2435
      %v2471 = vmul.f32 1.0, %v2470
      %v2472 = vrcp.pop %v2436
      %v2473 = vmul.f32 1.0, %v2472
      %v2474 = vrcp.pop %v2437
      %v2475 = vmul.f32 1.0, %v2474
      %v2476 = vrcp.pop %v2438
      %v2477 = vmul.f32 1.0, %v2476
      %v2478 = vrcp.pop %v2439
      %v2479 = vmul.f32 1.0, %v2478
      %v2480 = vrcp.pop %v2440
      %v2481 = vmul.f32 1.0, %v2480
      %v2482 = vrcp.pop %v2441
      %v2483 = vmul.f32 1.0, %v2482
      %v2484 = vrcp.pop %v2442
      %v2485 = vmul.f32 1.0, %v2484
      %v2486 = vrcp.pop %v2443
      %v2487 = vmul.f32 1.0, %v2486
      %v2488 = vrcp.pop %v2444
      %v2489 = vmul.f32 1.0, %v2488
      %v2490 = vrcp.pop %v2445
      %v2491 = vmul.f32 1.0, %v2490
      %v2492 = vrcp.pop %v2446
      %v2493 = vmul.f32 1.0, %v2492
      %v2494 = vrcp.pop %v2447
      %v2495 = vmul.f32 1.0, %v2494
      %v2496 = vrcp.pop %v2448
      %v2497 = vmul.f32 1.0, %v2496
      %v2498 = vrcp.pop %v2449
      %v2499 = vmul.f32 1.0, %v2498
      %v2500 = vrcp.pop %v2450
      %v2501 = vmul.f32 1.0, %v2500
      %v2502 = vrcp.pop %v2451
      %v2503 = vmul.f32 1.0, %v2502
      %v2504 = vrcp.pop %v2452
      %v2505 = vmul.f32 1.0, %v2504
      %v2506 = vrcp.pop %v2453
      %v2507 = vmul.f32 1.0, %v2506
      %v2508 = vrcp.pop %v2454
      %v2509 = vmul.f32 1.0, %v2508
      %v2510 = vrcp.pop %v2455
      %v2511 = vmul.f32 1.0, %v2510
      %v2512 = vrcp.pop %v2456
      %v2513 = vmul.f32 1.0, %v2512
      %v2514 = vrcp.pop %v2457
      %v2515 = vmul.f32 1.0, %v2514
      %v2516 = vrcp.pop %v2458
      %v2517 = vmul.f32 1.0, %v2516
      %v2518 = vrcp.pop %v2459
      %v2519 = vmul.f32 1.0, %v2518
      %v2520 = vrcp.pop %v2460
      %v2521 = vmul.f32 1.0, %v2520
      %v2522 = vrcp.pop %v2461
      %v2523 = vmul.f32 1.0, %v2522
      %v2524 = vrcp.pop %v2462
      %v2525 = vmul.f32 1.0, %v2524
      %v2526 = vrcp.pop %v2463
      %v2527 = vmul.f32 1.0, %v2526
      %v2528 = vld [vmem:[%s818] sm:$0xf]
      %v2529 = vld [vmem:[%s818 + $0x4] sm:$0xf]
      %v2530 = vld [vmem:[%s818 + $0x8] sm:$0xf]
      %v2531 = vld [vmem:[%s818 + $0xc] sm:$0xf]
      %v2532 = vld [vmem:[%s839] sm:$0x1]
      %v2534 = vlaneseq
      %v2535 = vshrl.u32 %v2534, 7
      %v2536 = vsub.s32 0, %v2535
      %v2537 = vrot.slane %v2532, %v2536
      %v2543 = vunpack.c.l.b16 %v2528
      %v2544 = vunpack.c.l.b16 %v2529
      %v2545 = vunpack.c.l.b16 %v2530
      %v2546 = vunpack.c.l.b16 %v2531
      %v2547 = vpack.c.b16 %v2544, %v2543
      %v2548 = vpack.c.b16 %v2546, %v2545
      %2551 = vmatprep.subr.bf16.mxu0 0
      %2552 = vmatpush1.bf16.msra.mxu0 0
      %2553 = vmatprep.subr.bf16.mxu0 0
      %2554 = vmatpush1.bf16.msra.mxu0 0
      %2555 = vmatprep.subr.bf16.mxu0 0
      %2556 = vmatpush1.bf16.msra.mxu0 0
      %2557 = vmatprep.subr.bf16.mxu0 0
      %2558 = vmatpush1.bf16.msra.mxu0 0
      %2559 = vmatprep.subr.bf16.mxu0 0
      %2560 = vmatpush1.bf16.msra.mxu0 0
      %2561 = vmatprep.subr.bf16.mxu0 0
      %2562 = vmatpush1.bf16.msra.mxu0 0
      %2563 = vmatprep.subr.bf16.mxu0 0
      %2564 = vmatpush1.bf16.msra.mxu0 %v2548
      %2565 = vmatprep.subr.bf16.mxu0 0
      %2566 = vmatpush1.bf16.msra.mxu0 %v2547
      %2567 = vmatprep.subr.bf16.mxu0 0
      %2568 = vmatpush2.bf16.msra.mxu0 0
      %2569 = vmatprep.subr.bf16.mxu0 0
      %2570 = vmatpush2.bf16.msra.mxu0 0
      %2571 = vmatprep.subr.bf16.mxu0 0
      %2572 = vmatpush2.bf16.msra.mxu0 0
      %2573 = vmatprep.subr.bf16.mxu0 0
      %2574 = vmatpush2.bf16.msra.mxu0 0
      %2575 = vmatprep.subr.bf16.mxu0 0
      %2576 = vmatpush2.bf16.msra.mxu0 0
      %2577 = vmatprep.subr.bf16.mxu0 0
      %2578 = vmatpush2.bf16.msra.mxu0 0
      %2579 = vmatprep.subr.bf16.mxu0 0
      %2580 = vmatpush2.bf16.msra.mxu0 0
      %2581 = vmatprep.subr.bf16.mxu0 0
      %2582 = vmatpush2.bf16.msra.mxu0 0
      %2583 = vmatprep.mubr.bf16.mxu0 0
      %2584 = vmatmul.mubr.bf16.gmra.mxu0 %v1752
      %v2585 = vpop.f32.mrf.mxu0
      %v2586 = vadd.f32 %v2537, %v2585
      %v2587 = vpop.f32.mrf.mxu0
      %v2588 = vpop.f32.mrf.mxu0
      %v2589 = vadd.f32 %v2537, %v2588
      %v2590 = vpop.f32.mrf.mxu0
      %2591 = vmatprep.mubr.bf16.mxu0 0
      %2592 = vmatmul.mubr.bf16.gmra.mxu0 %v1755
      %v2593 = vpop.f32.mrf.mxu0
      %v2594 = vadd.f32 %v2537, %v2593
      %v2595 = vpop.f32.mrf.mxu0
      %v2596 = vpop.f32.mrf.mxu0
      %v2597 = vadd.f32 %v2537, %v2596
      %v2598 = vpop.f32.mrf.mxu0
      %2599 = vmatprep.mubr.bf16.mxu0 0
      %2600 = vmatmul.mubr.bf16.gmra.mxu0 %v1758
      %v2601 = vpop.f32.mrf.mxu0
      %v2602 = vadd.f32 %v2537, %v2601
      %v2603 = vpop.f32.mrf.mxu0
      %v2604 = vpop.f32.mrf.mxu0
      %v2605 = vadd.f32 %v2537, %v2604
      %v2606 = vpop.f32.mrf.mxu0
      %2607 = vmatprep.mubr.bf16.mxu0 0
      %2608 = vmatmul.mubr.bf16.gmra.mxu0 %v1761
      %v2609 = vpop.f32.mrf.mxu0
      %v2610 = vadd.f32 %v2537, %v2609
      %v2611 = vpop.f32.mrf.mxu0
      %v2612 = vpop.f32.mrf.mxu0
      %v2613 = vadd.f32 %v2537, %v2612
      %v2614 = vpop.f32.mrf.mxu0
      %2615 = vmatprep.mubr.bf16.mxu0 0
      %2616 = vmatmul.mubr.bf16.gmra.mxu0 %v1764
      %v2617 = vpop.f32.mrf.mxu0
      %v2618 = vadd.f32 %v2537, %v2617
      %v2619 = vpop.f32.mrf.mxu0
      %v2620 = vpop.f32.mrf.mxu0
      %v2621 = vadd.f32 %v2537, %v2620
      %v2622 = vpop.f32.mrf.mxu0
      %2623 = vmatprep.mubr.bf16.mxu0 0
      %2624 = vmatmul.mubr.bf16.gmra.mxu0 %v1767
      %v2625 = vpop.f32.mrf.mxu0
      %v2626 = vadd.f32 %v2537, %v2625
      %v2627 = vpop.f32.mrf.mxu0
      %v2628 = vpop.f32.mrf.mxu0
      %v2629 = vadd.f32 %v2537, %v2628
      %v2630 = vpop.f32.mrf.mxu0
      %2631 = vmatprep.mubr.bf16.mxu0 0
      %2632 = vmatmul.mubr.bf16.gmra.mxu0 %v1770
      %v2633 = vpop.f32.mrf.mxu0
      %v2634 = vadd.f32 %v2537, %v2633
      %v2635 = vpop.f32.mrf.mxu0
      %v2636 = vpop.f32.mrf.mxu0
      %v2637 = vadd.f32 %v2537, %v2636
      %v2638 = vpop.f32.mrf.mxu0
      %2639 = vmatprep.mubr.bf16.mxu0 0
      %2640 = vmatmul.mubr.bf16.gmra.mxu0 %v1773
      %v2641 = vpop.f32.mrf.mxu0
      %v2642 = vadd.f32 %v2537, %v2641
      %v2643 = vpop.f32.mrf.mxu0
      %v2644 = vpop.f32.mrf.mxu0
      %v2645 = vadd.f32 %v2537, %v2644
      %v2646 = vpop.f32.mrf.mxu0
      %2647 = vmatprep.mubr.bf16.mxu0 0
      %2648 = vmatmul.mubr.bf16.gmra.mxu0 %v1776
      %v2649 = vpop.f32.mrf.mxu0
      %v2650 = vadd.f32 %v2537, %v2649
      %v2651 = vpop.f32.mrf.mxu0
      %v2652 = vpop.f32.mrf.mxu0
      %v2653 = vadd.f32 %v2537, %v2652
      %v2654 = vpop.f32.mrf.mxu0
      %2655 = vmatprep.mubr.bf16.mxu0 0
      %2656 = vmatmul.mubr.bf16.gmra.mxu0 %v1779
      %v2657 = vpop.f32.mrf.mxu0
      %v2658 = vadd.f32 %v2537, %v2657
      %v2659 = vpop.f32.mrf.mxu0
      %v2660 = vpop.f32.mrf.mxu0
      %v2661 = vadd.f32 %v2537, %v2660
      %v2662 = vpop.f32.mrf.mxu0
      %2663 = vmatprep.mubr.bf16.mxu0 0
      %2664 = vmatmul.mubr.bf16.gmra.mxu0 %v1782
      %v2665 = vpop.f32.mrf.mxu0
      %v2666 = vadd.f32 %v2537, %v2665
      %v2667 = vpop.f32.mrf.mxu0
      %v2668 = vpop.f32.mrf.mxu0
      %v2669 = vadd.f32 %v2537, %v2668
      %v2670 = vpop.f32.mrf.mxu0
      %2671 = vmatprep.mubr.bf16.mxu0 0
      %2672 = vmatmul.mubr.bf16.gmra.mxu0 %v1785
      %v2673 = vpop.f32.mrf.mxu0
      %v2674 = vadd.f32 %v2537, %v2673
      %v2675 = vpop.f32.mrf.mxu0
      %v2676 = vpop.f32.mrf.mxu0
      %v2677 = vadd.f32 %v2537, %v2676
      %v2678 = vpop.f32.mrf.mxu0
      %2679 = vmatprep.mubr.bf16.mxu0 0
      %2680 = vmatmul.mubr.bf16.gmra.mxu0 %v1788
      %v2681 = vpop.f32.mrf.mxu0
      %v2682 = vadd.f32 %v2537, %v2681
      %v2683 = vpop.f32.mrf.mxu0
      %v2684 = vpop.f32.mrf.mxu0
      %v2685 = vadd.f32 %v2537, %v2684
      %v2686 = vpop.f32.mrf.mxu0
      %2687 = vmatprep.mubr.bf16.mxu0 0
      %2688 = vmatmul.mubr.bf16.gmra.mxu0 %v1791
      %v2689 = vpop.f32.mrf.mxu0
      %v2690 = vadd.f32 %v2537, %v2689
      %v2691 = vpop.f32.mrf.mxu0
      %v2692 = vpop.f32.mrf.mxu0
      %v2693 = vadd.f32 %v2537, %v2692
      %v2694 = vpop.f32.mrf.mxu0
      %2695 = vmatprep.mubr.bf16.mxu0 0
      %2696 = vmatmul.mubr.bf16.gmra.mxu0 %v1794
      %v2697 = vpop.f32.mrf.mxu0
      %v2698 = vadd.f32 %v2537, %v2697
      %v2699 = vpop.f32.mrf.mxu0
      %v2700 = vpop.f32.mrf.mxu0
      %v2701 = vadd.f32 %v2537, %v2700
      %v2702 = vpop.f32.mrf.mxu0
      %2703 = vmatprep.mubr.bf16.mxu0 0
      %2704 = vmatmul.mubr.bf16.gmra.mxu0 %v1797
      %v2705 = vpop.f32.mrf.mxu0
      %v2706 = vadd.f32 %v2537, %v2705
      %v2707 = vpop.f32.mrf.mxu0
      %v2708 = vpop.f32.mrf.mxu0
      %v2709 = vadd.f32 %v2537, %v2708
      %v2710 = vpop.f32.mrf.mxu0
      %2711 = vdwg.mxu0
      %v2712 = vld [vmem:[%s846] sm:$0x1]
      %v2714 = vlaneseq
      %v2715 = vshrl.u32 %v2714, 7
      %v2716 = vsub.s32 0, %v2715
      %v2717 = vrot.slane %v2712, %v2716
      %v2719 = vmul.f32 %v2089, %v2717
      %v2720 = vmul.f32 %v2091, %v2717
      %v2721 = vmul.f32 %v2093, %v2717
      %v2722 = vmul.f32 %v2095, %v2717
      %v2723 = vmul.f32 %v2097, %v2717
      %v2724 = vmul.f32 %v2099, %v2717
      %v2725 = vmul.f32 %v2101, %v2717
      %v2726 = vmul.f32 %v2103, %v2717
      %v2727 = vmul.f32 %v2105, %v2717
      %v2728 = vmul.f32 %v2107, %v2717
      %v2729 = vmul.f32 %v2109, %v2717
      %v2730 = vmul.f32 %v2111, %v2717
      %v2731 = vmul.f32 %v2113, %v2717
      %v2732 = vmul.f32 %v2115, %v2717
      %v2733 = vmul.f32 %v2117, %v2717
      %v2734 = vmul.f32 %v2119, %v2717
      %v2735 = vmul.f32 %v2121, %v2717
      %v2736 = vmul.f32 %v2123, %v2717
      %v2737 = vmul.f32 %v2125, %v2717
      %v2738 = vmul.f32 %v2127, %v2717
      %v2739 = vmul.f32 %v2129, %v2717
      %v2740 = vmul.f32 %v2131, %v2717
      %v2741 = vmul.f32 %v2133, %v2717
      %v2742 = vmul.f32 %v2135, %v2717
      %v2743 = vmul.f32 %v2137, %v2717
      %v2744 = vmul.f32 %v2139, %v2717
      %v2745 = vmul.f32 %v2141, %v2717
      %v2746 = vmul.f32 %v2143, %v2717
      %v2747 = vmul.f32 %v2145, %v2717
      %v2748 = vmul.f32 %v2147, %v2717
      %v2749 = vmul.f32 %v2149, %v2717
      %v2750 = vmul.f32 %v2151, %v2717
      %v2751 = vadd.f32 %v2586, %v2719
      %v2752 = vadd.f32 %v2589, %v2720
      %v2753 = vadd.f32 %v2594, %v2721
      %v2754 = vadd.f32 %v2597, %v2722
      %v2755 = vadd.f32 %v2602, %v2723
      %v2756 = vadd.f32 %v2605, %v2724
      %v2757 = vadd.f32 %v2610, %v2725
      %v2758 = vadd.f32 %v2613, %v2726
      %v2759 = vadd.f32 %v2618, %v2727
      %v2760 = vadd.f32 %v2621, %v2728
      %v2761 = vadd.f32 %v2626, %v2729
      %v2762 = vadd.f32 %v2629, %v2730
      %v2763 = vadd.f32 %v2634, %v2731
      %v2764 = vadd.f32 %v2637, %v2732
      %v2765 = vadd.f32 %v2642, %v2733
      %v2766 = vadd.f32 %v2645, %v2734
      %v2767 = vadd.f32 %v2650, %v2735
      %v2768 = vadd.f32 %v2653, %v2736
      %v2769 = vadd.f32 %v2658, %v2737
      %v2770 = vadd.f32 %v2661, %v2738
      %v2771 = vadd.f32 %v2666, %v2739
      %v2772 = vadd.f32 %v2669, %v2740
      %v2773 = vadd.f32 %v2674, %v2741
      %v2774 = vadd.f32 %v2677, %v2742
      %v2775 = vadd.f32 %v2682, %v2743
      %v2776 = vadd.f32 %v2685, %v2744
      %v2777 = vadd.f32 %v2690, %v2745
      %v2778 = vadd.f32 %v2693, %v2746
      %v2779 = vadd.f32 %v2698, %v2747
      %v2780 = vadd.f32 %v2701, %v2748
      %v2781 = vadd.f32 %v2706, %v2749
      %v2782 = vadd.f32 %v2709, %v2750
      %v2783 = vtanh.pop %v2751
      %v2784 = vtanh.pop %v2752
      %v2785 = vtanh.pop %v2753
      %v2786 = vtanh.pop %v2754
      %v2787 = vtanh.pop %v2755
      %v2788 = vtanh.pop %v2756
      %v2789 = vtanh.pop %v2757
      %v2790 = vtanh.pop %v2758
      %v2791 = vtanh.pop %v2759
      %v2792 = vtanh.pop %v2760
      %v2793 = vtanh.pop %v2761
      %v2794 = vtanh.pop %v2762
      %v2795 = vtanh.pop %v2763
      %v2796 = vtanh.pop %v2764
      %v2797 = vtanh.pop %v2765
      %v2798 = vtanh.pop %v2766
      %v2799 = vtanh.pop %v2767
      %v2800 = vtanh.pop %v2768
      %v2801 = vtanh.pop %v2769
      %v2802 = vtanh.pop %v2770
      %v2803 = vtanh.pop %v2771
      %v2804 = vtanh.pop %v2772
      %v2805 = vtanh.pop %v2773
      %v2806 = vtanh.pop %v2774
      %v2807 = vtanh.pop %v2775
      %v2808 = vtanh.pop %v2776
      %v2809 = vtanh.pop %v2777
      %v2810 = vtanh.pop %v2778
      %v2811 = vtanh.pop %v2779
      %v2812 = vtanh.pop %v2780
      %v2813 = vtanh.pop %v2781
      %v2814 = vtanh.pop %v2782
      %v2815 = vsub.f32 1.0, %v2465
      %v2816 = vsub.f32 1.0, %v2467
      %v2817 = vsub.f32 1.0, %v2469
      %v2818 = vsub.f32 1.0, %v2471
      %v2819 = vsub.f32 1.0, %v2473
      %v2820 = vsub.f32 1.0, %v2475
      %v2821 = vsub.f32 1.0, %v2477
      %v2822 = vsub.f32 1.0, %v2479
      %v2823 = vsub.f32 1.0, %v2481
      %v2824 = vsub.f32 1.0, %v2483
      %v2825 = vsub.f32 1.0, %v2485
      %v2826 = vsub.f32 1.0, %v2487
      %v2827 = vsub.f32 1.0, %v2489
      %v2828 = vsub.f32 1.0, %v2491
      %v2829 = vsub.f32 1.0, %v2493
      %v2830 = vsub.f32 1.0, %v2495
      %v2831 = vsub.f32 1.0, %v2497
      %v2832 = vsub.f32 1.0, %v2499
      %v2833 = vsub.f32 1.0, %v2501
      %v2834 = vsub.f32 1.0, %v2503
      %v2835 = vsub.f32 1.0, %v2505
      %v2836 = vsub.f32 1.0, %v2507
      %v2837 = vsub.f32 1.0, %v2509
      %v2838 = vsub.f32 1.0, %v2511
      %v2839 = vsub.f32 1.0, %v2513
      %v2840 = vsub.f32 1.0, %v2515
      %v2841 = vsub.f32 1.0, %v2517
      %v2842 = vsub.f32 1.0, %v2519
      %v2843 = vsub.f32 1.0, %v2521
      %v2844 = vsub.f32 1.0, %v2523
      %v2845 = vsub.f32 1.0, %v2525
      %v2846 = vsub.f32 1.0, %v2527
      %v2847 = vmul.f32 %v2815, %v2783
      %v2848 = vmul.f32 %v2816, %v2784
      %v2849 = vmul.f32 %v2817, %v2785
      %v2850 = vmul.f32 %v2818, %v2786
      %v2851 = vmul.f32 %v2819, %v2787
      %v2852 = vmul.f32 %v2820, %v2788
      %v2853 = vmul.f32 %v2821, %v2789
      %v2854 = vmul.f32 %v2822, %v2790
      %v2855 = vmul.f32 %v2823, %v2791
      %v2856 = vmul.f32 %v2824, %v2792
      %v2857 = vmul.f32 %v2825, %v2793
      %v2858 = vmul.f32 %v2826, %v2794
      %v2859 = vmul.f32 %v2827, %v2795
      %v2860 = vmul.f32 %v2828, %v2796
      %v2861 = vmul.f32 %v2829, %v2797
      %v2862 = vmul.f32 %v2830, %v2798
      %v2863 = vmul.f32 %v2831, %v2799
      %v2864 = vmul.f32 %v2832, %v2800
      %v2865 = vmul.f32 %v2833, %v2801
      %v2866 = vmul.f32 %v2834, %v2802
      %v2867 = vmul.f32 %v2835, %v2803
      %v2868 = vmul.f32 %v2836, %v2804
      %v2869 = vmul.f32 %v2837, %v2805
      %v2870 = vmul.f32 %v2838, %v2806
      %v2871 = vmul.f32 %v2839, %v2807
      %v2872 = vmul.f32 %v2840, %v2808
      %v2873 = vmul.f32 %v2841, %v2809
      %v2874 = vmul.f32 %v2842, %v2810
      %v2875 = vmul.f32 %v2843, %v2811
      %v2876 = vmul.f32 %v2844, %v2812
      %v2877 = vmul.f32 %v2845, %v2813
      %v2878 = vmul.f32 %v2846, %v2814
      %v2879 = vtanh.pop %v2847
      %v2880 = vtanh.pop %v2848
      %v2881 = vtanh.pop %v2849
      %v2882 = vtanh.pop %v2850
      %v2883 = vtanh.pop %v2851
      %v2884 = vtanh.pop %v2852
      %v2885 = vtanh.pop %v2853
      %v2886 = vtanh.pop %v2854
      %v2887 = vtanh.pop %v2855
      %v2888 = vtanh.pop %v2856
      %v2889 = vtanh.pop %v2857
      %v2890 = vtanh.pop %v2858
      %v2891 = vtanh.pop %v2859
      %v2892 = vtanh.pop %v2860
      %v2893 = vtanh.pop %v2861
      %v2894 = vtanh.pop %v2862
      %v2895 = vtanh.pop %v2863
      %v2896 = vtanh.pop %v2864
      %v2897 = vtanh.pop %v2865
      %v2898 = vtanh.pop %v2866
      %v2899 = vtanh.pop %v2867
      %v2900 = vtanh.pop %v2868
      %v2901 = vtanh.pop %v2869
      %v2902 = vtanh.pop %v2870
      %v2903 = vtanh.pop %v2871
      %v2904 = vtanh.pop %v2872
      %v2905 = vtanh.pop %v2873
      %v2906 = vtanh.pop %v2874
      %v2907 = vtanh.pop %v2875
      %v2908 = vtanh.pop %v2876
      %v2909 = vtanh.pop %v2877
      %v2910 = vtanh.pop %v2878
      %vm2911 = vcmask 523264
      %2912 = vst.msk [vmem:[%s880] sm:$0xff] %vm2911, %v2907
      %2913 = vst.msk [vmem:[%s880 + $0x8] sm:$0xff] %vm2911, %v2908
      %2914 = vst.msk [vmem:[%s880 + $0x10] sm:$0xff] %vm2911, %v2909
      %2915 = vst.msk [vmem:[%s880 + $0x18] sm:$0xff] %vm2911, %v2910
      %v2916 = vpack.c.bf16 %v2880, %v2879
      %v2917 = vpack.c.bf16 %v2882, %v2881
      %v2918 = vpack.c.bf16 %v2884, %v2883
      %v2919 = vpack.c.bf16 %v2886, %v2885
      %v2920 = vpack.c.bf16 %v2888, %v2887
      %v2921 = vpack.c.bf16 %v2890, %v2889
      %v2922 = vpack.c.bf16 %v2892, %v2891
      %v2923 = vpack.c.bf16 %v2894, %v2893
      %v2924 = vpack.c.bf16 %v2896, %v2895
      %v2925 = vpack.c.bf16 %v2898, %v2897
      %v2926 = vpack.c.bf16 %v2900, %v2899
      %v2927 = vpack.c.bf16 %v2902, %v2901
      %v2928 = vpack.c.bf16 %v2904, %v2903
      %v2929 = vpack.c.bf16 %v2906, %v2905
      %v2930 = vpack.c.bf16 %v2908, %v2907
      %v2931 = vpack.c.bf16 %v2910, %v2909
      %v2932 = vld [vmem:[%s12] sm:$0xff]
      %v2933 = vld [vmem:[%s12 + $0x8] sm:$0xff]
      %v2934 = vld [vmem:[%s12 + $0x10] sm:$0xff]
      %v2935 = vld [vmem:[%s12 + $0x18] sm:$0xff]
      %v2936 = vld [vmem:[%s12 + $0x20] sm:$0xff]
      %v2937 = vld [vmem:[%s12 + $0x28] sm:$0xff]
      %v2938 = vld [vmem:[%s12 + $0x30] sm:$0xff]
      %v2939 = vld [vmem:[%s12 + $0x38] sm:$0xff]
      %v2940 = vld [vmem:[%s12 + $0x40] sm:$0xff]
      %v2941 = vld [vmem:[%s12 + $0x48] sm:$0xff]
      %v2942 = vld [vmem:[%s12 + $0x50] sm:$0xff]
      %v2943 = vld [vmem:[%s12 + $0x58] sm:$0xff]
      %v2944 = vld [vmem:[%s12 + $0x60] sm:$0xff]
      %v2945 = vld [vmem:[%s12 + $0x68] sm:$0xff]
      %v2946 = vld [vmem:[%s12 + $0x70] sm:$0xff]
      %v2947 = vld [vmem:[%s12 + $0x78] sm:$0xff]
      %v2948 = vld [vmem:[%s12 + $0x80] sm:$0xff]
      %v2949 = vld [vmem:[%s12 + $0x88] sm:$0xff]
      %v2950 = vld [vmem:[%s12 + $0x90] sm:$0xff]
      %v2951 = vld [vmem:[%s12 + $0x98] sm:$0xff]
      %v2952 = vld [vmem:[%s12 + $0xa0] sm:$0xff]
      %v2953 = vld [vmem:[%s12 + $0xa8] sm:$0xff]
      %v2954 = vld [vmem:[%s12 + $0xb0] sm:$0xff]
      %v2955 = vld [vmem:[%s12 + $0xb8] sm:$0xff]
      %v2956 = vld [vmem:[%s12 + $0xc0] sm:$0xff]
      %v2957 = vld [vmem:[%s12 + $0xc8] sm:$0xff]
      %v2958 = vld [vmem:[%s12 + $0xd0] sm:$0xff]
      %v2959 = vld [vmem:[%s12 + $0xd8] sm:$0xff]
      %v2960 = vld [vmem:[%s12 + $0xe0] sm:$0xff]
      %v2961 = vld [vmem:[%s12 + $0xe8] sm:$0xff]
      %v2962 = vld [vmem:[%s12 + $0xf0] sm:$0xff]
      %v2963 = vld [vmem:[%s12 + $0xf8] sm:$0xff]
      %v2964 = vld [vmem:[%s13] sm:$0xff]
      %v2965 = vld [vmem:[%s13 + $0x8] sm:$0xff]
      %v2966 = vld [vmem:[%s13 + $0x10] sm:$0xff]
      %v2967 = vld [vmem:[%s13 + $0x18] sm:$0xff]
      %v2968 = vld [vmem:[%s13 + $0x20] sm:$0xff]
      %v2969 = vld [vmem:[%s13 + $0x28] sm:$0xff]
      %v2970 = vld [vmem:[%s13 + $0x30] sm:$0xff]
      %v2971 = vld [vmem:[%s13 + $0x38] sm:$0xff]
      %v2972 = vld [vmem:[%s13 + $0x40] sm:$0xff]
      %v2973 = vld [vmem:[%s13 + $0x48] sm:$0xff]
      %v2974 = vld [vmem:[%s13 + $0x50] sm:$0xff]
      %v2975 = vld [vmem:[%s13 + $0x58] sm:$0xff]
      %v2976 = vld [vmem:[%s13 + $0x60] sm:$0xff]
      %v2977 = vld [vmem:[%s13 + $0x68] sm:$0xff]
      %v2978 = vld [vmem:[%s13 + $0x70] sm:$0xff]
      %v2979 = vld [vmem:[%s13 + $0x78] sm:$0xff]
      %v2980 = vld [vmem:[%s13 + $0x80] sm:$0xff]
      %v2981 = vld [vmem:[%s13 + $0x88] sm:$0xff]
      %v2982 = vld [vmem:[%s13 + $0x90] sm:$0xff]
      %v2983 = vld [vmem:[%s13 + $0x98] sm:$0xff]
      %v2984 = vld [vmem:[%s13 + $0xa0] sm:$0xff]
      %v2985 = vld [vmem:[%s13 + $0xa8] sm:$0xff]
      %v2986 = vld [vmem:[%s13 + $0xb0] sm:$0xff]
      %v2987 = vld [vmem:[%s13 + $0xb8] sm:$0xff]
      %v2988 = vld [vmem:[%s13 + $0xc0] sm:$0xff]
      %v2989 = vld [vmem:[%s13 + $0xc8] sm:$0xff]
      %v2990 = vld [vmem:[%s13 + $0xd0] sm:$0xff]
      %v2991 = vld [vmem:[%s13 + $0xd8] sm:$0xff]
      %v2992 = vld [vmem:[%s13 + $0xe0] sm:$0xff]
      %v2993 = vld [vmem:[%s13 + $0xe8] sm:$0xff]
      %v2994 = vld [vmem:[%s13 + $0xf0] sm:$0xff]
      %v2995 = vld [vmem:[%s13 + $0xf8] sm:$0xff]
      %v2996 = vld [vmem:[%s855] sm:$0xff]
      %v2997 = vld [vmem:[%s855 + $0x8] sm:$0xff]
      %v2998 = vld [vmem:[%s855 + $0x10] sm:$0xff]
      %v2999 = vld [vmem:[%s855 + $0x18] sm:$0xff]
      %v3000 = vld [vmem:[%s855 + $0x20] sm:$0xff]
      %v3001 = vld [vmem:[%s855 + $0x28] sm:$0xff]
      %v3002 = vld [vmem:[%s855 + $0x30] sm:$0xff]
      %v3003 = vld [vmem:[%s855 + $0x38] sm:$0xff]
      %v3004 = vld [vmem:[%s855 + $0x40] sm:$0xff]
      %v3005 = vld [vmem:[%s855 + $0x48] sm:$0xff]
      %v3006 = vld [vmem:[%s855 + $0x50] sm:$0xff]
      %v3007 = vld [vmem:[%s855 + $0x58] sm:$0xff]
      %v3008 = vld [vmem:[%s855 + $0x60] sm:$0xff]
      %v3009 = vld [vmem:[%s855 + $0x68] sm:$0xff]
      %v3010 = vld [vmem:[%s855 + $0x70] sm:$0xff]
      %v3011 = vld [vmem:[%s855 + $0x78] sm:$0xff]
      %v3012 = vld [vmem:[%s855 + $0x80] sm:$0xff]
      %v3013 = vld [vmem:[%s855 + $0x88] sm:$0xff]
      %v3014 = vld [vmem:[%s855 + $0x90] sm:$0xff]
      %v3015 = vld [vmem:[%s855 + $0x98] sm:$0xff]
      %v3016 = vld [vmem:[%s855 + $0xa0] sm:$0xff]
      %v3017 = vld [vmem:[%s855 + $0xa8] sm:$0xff]
      %v3018 = vld [vmem:[%s855 + $0xb0] sm:$0xff]
      %v3019 = vld [vmem:[%s855 + $0xb8] sm:$0xff]
      %v3020 = vld [vmem:[%s855 + $0xc0] sm:$0xff]
      %v3021 = vld [vmem:[%s855 + $0xc8] sm:$0xff]
      %v3022 = vld [vmem:[%s855 + $0xd0] sm:$0xff]
      %v3023 = vld [vmem:[%s855 + $0xd8] sm:$0xff]
      %v3024 = vld [vmem:[%s855 + $0xe0] sm:$0xff]
      %v3025 = vld [vmem:[%s855 + $0xe8] sm:$0xff]
      %v3026 = vld [vmem:[%s855 + $0xf0] sm:$0xff]
      %v3027 = vld [vmem:[%s855 + $0xf8] sm:$0xff]
      %v3060 = vunpack.c.l.b16 %v2932
      %v3061 = vunpack.c.h.b16 %v2932
      %v3062 = vunpack.c.l.b16 %v2933
      %v3063 = vunpack.c.h.b16 %v2933
      %v3064 = vunpack.c.l.b16 %v2934
      %v3065 = vunpack.c.h.b16 %v2934
      %v3066 = vunpack.c.l.b16 %v2935
      %v3067 = vunpack.c.h.b16 %v2935
      %v3068 = vunpack.c.l.b16 %v2936
      %v3069 = vunpack.c.h.b16 %v2936
      %v3070 = vunpack.c.l.b16 %v2937
      %v3071 = vunpack.c.h.b16 %v2937
      %v3072 = vunpack.c.l.b16 %v2938
      %v3073 = vunpack.c.h.b16 %v2938
      %v3074 = vunpack.c.l.b16 %v2939
      %v3075 = vunpack.c.h.b16 %v2939
      %v3076 = vunpack.c.l.b16 %v2940
      %v3077 = vunpack.c.h.b16 %v2940
      %v3078 = vunpack.c.l.b16 %v2941
      %v3079 = vunpack.c.h.b16 %v2941
      %v3080 = vunpack.c.l.b16 %v2942
      %v3081 = vunpack.c.h.b16 %v2942
      %v3082 = vunpack.c.l.b16 %v2943
      %v3083 = vunpack.c.h.b16 %v2943
      %v3084 = vunpack.c.l.b16 %v2944
      %v3085 = vunpack.c.h.b16 %v2944
      %v3086 = vunpack.c.l.b16 %v2945
      %v3087 = vunpack.c.h.b16 %v2945
      %v3088 = vunpack.c.l.b16 %v2946
      %v3089 = vunpack.c.h.b16 %v2946
      %v3090 = vunpack.c.l.b16 %v2947
      %v3091 = vunpack.c.h.b16 %v2947
      %v3092 = vunpack.c.l.b16 %v2948
      %v3093 = vunpack.c.h.b16 %v2948
      %v3094 = vunpack.c.l.b16 %v2949
      %v3095 = vunpack.c.h.b16 %v2949
      %v3096 = vunpack.c.l.b16 %v2950
      %v3097 = vunpack.c.h.b16 %v2950
      %v3098 = vunpack.c.l.b16 %v2951
      %v3099 = vunpack.c.h.b16 %v2951
      %v3100 = vunpack.c.l.b16 %v2952
      %v3101 = vunpack.c.h.b16 %v2952
      %v3102 = vunpack.c.l.b16 %v2953
      %v3103 = vunpack.c.h.b16 %v2953
      %v3104 = vunpack.c.l.b16 %v2954
      %v3105 = vunpack.c.h.b16 %v2954
      %v3106 = vunpack.c.l.b16 %v2955
      %v3107 = vunpack.c.h.b16 %v2955
      %v3108 = vunpack.c.l.b16 %v2956
      %v3109 = vunpack.c.h.b16 %v2956
      %v3110 = vunpack.c.l.b16 %v2957
      %v3111 = vunpack.c.h.b16 %v2957
      %v3112 = vunpack.c.l.b16 %v2958
      %v3113 = vunpack.c.h.b16 %v2958
      %v3114 = vunpack.c.l.b16 %v2959
      %v3115 = vunpack.c.h.b16 %v2959
      %v3116 = vunpack.c.l.b16 %v2960
      %v3117 = vunpack.c.h.b16 %v2960
      %v3118 = vunpack.c.l.b16 %v2961
      %v3119 = vunpack.c.h.b16 %v2961
      %v3120 = vunpack.c.l.b16 %v2962
      %v3121 = vunpack.c.h.b16 %v2962
      %v3122 = vunpack.c.l.b16 %v2963
      %v3123 = vunpack.c.h.b16 %v2963
      %v3124 = vpack.c.b16 %v3062, %v3060
      %v3125 = vpack.c.b16 %v3063, %v3061
      %v3126 = vpack.c.b16 %v3066, %v3064
      %v3127 = vpack.c.b16 %v3067, %v3065
      %v3128 = vpack.c.b16 %v3070, %v3068
      %v3129 = vpack.c.b16 %v3071, %v3069
      %v3130 = vpack.c.b16 %v3074, %v3072
      %v3131 = vpack.c.b16 %v3075, %v3073
      %v3132 = vpack.c.b16 %v3078, %v3076
      %v3133 = vpack.c.b16 %v3079, %v3077
      %v3134 = vpack.c.b16 %v3082, %v3080
      %v3135 = vpack.c.b16 %v3083, %v3081
      %v3136 = vpack.c.b16 %v3086, %v3084
      %v3137 = vpack.c.b16 %v3087, %v3085
      %v3138 = vpack.c.b16 %v3090, %v3088
      %v3139 = vpack.c.b16 %v3091, %v3089
      %v3140 = vpack.c.b16 %v3094, %v3092
      %v3141 = vpack.c.b16 %v3095, %v3093
      %v3142 = vpack.c.b16 %v3098, %v3096
      %v3143 = vpack.c.b16 %v3099, %v3097
      %v3144 = vpack.c.b16 %v3102, %v3100
      %v3145 = vpack.c.b16 %v3103, %v3101
      %v3146 = vpack.c.b16 %v3106, %v3104
      %v3147 = vpack.c.b16 %v3107, %v3105
      %v3148 = vpack.c.b16 %v3110, %v3108
      %v3149 = vpack.c.b16 %v3111, %v3109
      %v3150 = vpack.c.b16 %v3114, %v3112
      %v3151 = vpack.c.b16 %v3115, %v3113
      %v3152 = vpack.c.b16 %v3118, %v3116
      %v3153 = vpack.c.b16 %v3119, %v3117
      %v3154 = vpack.c.b16 %v3122, %v3120
      %v3155 = vpack.c.b16 %v3123, %v3121
      %3188 = vmatprep.subr.bf16.mxu0 0
      %3189 = vmatpush1.bf16.msra.mxu0 %v2923
      %3190 = vmatprep.subr.bf16.mxu0 0
      %3191 = vmatpush1.bf16.msra.mxu0 %v2922
      %3192 = vmatprep.subr.bf16.mxu0 0
      %3193 = vmatpush1.bf16.msra.mxu0 %v2921
      %3194 = vmatprep.subr.bf16.mxu0 0
      %3195 = vmatpush1.bf16.msra.mxu0 %v2920
      %3196 = vmatprep.subr.bf16.mxu0 0
      %3197 = vmatpush1.bf16.msra.mxu0 %v2919
      %3198 = vmatprep.subr.bf16.mxu0 0
      %3199 = vmatpush1.bf16.msra.mxu0 %v2918
      %3200 = vmatprep.subr.bf16.mxu0 0
      %3201 = vmatpush1.bf16.msra.mxu0 %v2917
      %3202 = vmatprep.subr.bf16.mxu0 0
      %3203 = vmatpush1.bf16.msra.mxu0 %v2916
      %3204 = vmatprep.subr.bf16.mxu0 0
      %3205 = vmatpush2.bf16.msra.mxu0 %v2931
      %3206 = vmatprep.subr.bf16.mxu0 0
      %3207 = vmatpush2.bf16.msra.mxu0 %v2930
      %3208 = vmatprep.subr.bf16.mxu0 0
      %3209 = vmatpush2.bf16.msra.mxu0 %v2929
      %3210 = vmatprep.subr.bf16.mxu0 0
      %3211 = vmatpush2.bf16.msra.mxu0 %v2928
      %3212 = vmatprep.subr.bf16.mxu0 0
      %3213 = vmatpush2.bf16.msra.mxu0 %v2927
      %3214 = vmatprep.subr.bf16.mxu0 0
      %3215 = vmatpush2.bf16.msra.mxu0 %v2926
      %3216 = vmatprep.subr.bf16.mxu0 0
      %3217 = vmatpush2.bf16.msra.mxu0 %v2925
      %3218 = vmatprep.subr.bf16.mxu0 0
      %3219 = vmatpush2.bf16.msra.mxu0 %v2924
      %3220 = vmatprep.mubr.bf16.mxu0 %v3125
      %3221 = vmatmul.mubr.bf16.gmra.mxu0 %v3124
      %v3222 = vpop.f32.mrf.mxu0
      %v3223 = vadd.f32 0.0, %v3222
      %v3224 = vpop.f32.mrf.mxu0
      %v3225 = vpop.f32.mrf.mxu0
      %v3226 = vadd.f32 0.0, %v3225
      %v3227 = vpop.f32.mrf.mxu0
      %3228 = vmatprep.mubr.bf16.mxu0 %v3127
      %3229 = vmatmul.mubr.bf16.gmra.mxu0 %v3126
      %v3230 = vpop.f32.mrf.mxu0
      %v3231 = vadd.f32 0.0, %v3230
      %v3232 = vpop.f32.mrf.mxu0
      %v3233 = vpop.f32.mrf.mxu0
      %v3234 = vadd.f32 0.0, %v3233
      %v3235 = vpop.f32.mrf.mxu0
      %3236 = vmatprep.mubr.bf16.mxu0 %v3129
      %3237 = vmatmul.mubr.bf16.gmra.mxu0 %v3128
      %v3238 = vpop.f32.mrf.mxu0
      %v3239 = vadd.f32 0.0, %v3238
      %v3240 = vpop.f32.mrf.mxu0
      %v3241 = vpop.f32.mrf.mxu0
      %v3242 = vadd.f32 0.0, %v3241
      %v3243 = vpop.f32.mrf.mxu0
      %3244 = vmatprep.mubr.bf16.mxu0 %v3131
      %3245 = vmatmul.mubr.bf16.gmra.mxu0 %v3130
      %v3246 = vpop.f32.mrf.mxu0
      %v3247 = vadd.f32 0.0, %v3246
      %v3248 = vpop.f32.mrf.mxu0
      %v3249 = vpop.f32.mrf.mxu0
      %v3250 = vadd.f32 0.0, %v3249
      %v3251 = vpop.f32.mrf.mxu0
      %3252 = vmatprep.mubr.bf16.mxu0 %v3133
      %3253 = vmatmul.mubr.bf16.gmra.mxu0 %v3132
      %v3254 = vpop.f32.mrf.mxu0
      %v3255 = vadd.f32 0.0, %v3254
      %v3256 = vpop.f32.mrf.mxu0
      %v3257 = vpop.f32.mrf.mxu0
      %v3258 = vadd.f32 0.0, %v3257
      %v3259 = vpop.f32.mrf.mxu0
      %3260 = vmatprep.mubr.bf16.mxu0 %v3135
      %3261 = vmatmul.mubr.bf16.gmra.mxu0 %v3134
      %v3262 = vpop.f32.mrf.mxu0
      %v3263 = vadd.f32 0.0, %v3262
      %v3264 = vpop.f32.mrf.mxu0
      %v3265 = vpop.f32.mrf.mxu0
      %v3266 = vadd.f32 0.0, %v3265
      %v3267 = vpop.f32.mrf.mxu0
      %3268 = vmatprep.mubr.bf16.mxu0 %v3137
      %3269 = vmatmul.mubr.bf16.gmra.mxu0 %v3136
      %v3270 = vpop.f32.mrf.mxu0
      %v3271 = vadd.f32 0.0, %v3270
      %v3272 = vpop.f32.mrf.mxu0
      %v3273 = vpop.f32.mrf.mxu0
      %v3274 = vadd.f32 0.0, %v3273
      %v3275 = vpop.f32.mrf.mxu0
      %3276 = vmatprep.mubr.bf16.mxu0 %v3139
      %3277 = vmatmul.mubr.bf16.gmra.mxu0 %v3138
      %v3278 = vpop.f32.mrf.mxu0
      %v3279 = vadd.f32 0.0, %v3278
      %v3280 = vpop.f32.mrf.mxu0
      %v3281 = vpop.f32.mrf.mxu0
      %v3282 = vadd.f32 0.0, %v3281
      %v3283 = vpop.f32.mrf.mxu0
      %3284 = vmatprep.mubr.bf16.mxu0 %v3141
      %3285 = vmatmul.mubr.bf16.gmra.mxu0 %v3140
      %v3286 = vpop.f32.mrf.mxu0
      %v3287 = vadd.f32 0.0, %v3286
      %v3288 = vpop.f32.mrf.mxu0
      %v3289 = vpop.f32.mrf.mxu0
      %v3290 = vadd.f32 0.0, %v3289
      %v3291 = vpop.f32.mrf.mxu0
      %3292 = vmatprep.mubr.bf16.mxu0 %v3143
      %3293 = vmatmul.mubr.bf16.gmra.mxu0 %v3142
      %v3294 = vpop.f32.mrf.mxu0
      %v3295 = vadd.f32 0.0, %v3294
      %v3296 = vpop.f32.mrf.mxu0
      %v3297 = vpop.f32.mrf.mxu0
      %v3298 = vadd.f32 0.0, %v3297
      %v3299 = vpop.f32.mrf.mxu0
      %3300 = vmatprep.mubr.bf16.mxu0 %v3145
      %3301 = vmatmul.mubr.bf16.gmra.mxu0 %v3144
      %v3302 = vpop.f32.mrf.mxu0
      %v3303 = vadd.f32 0.0, %v3302
      %v3304 = vpop.f32.mrf.mxu0
      %v3305 = vpop.f32.mrf.mxu0
      %v3306 = vadd.f32 0.0, %v3305
      %v3307 = vpop.f32.mrf.mxu0
      %3308 = vmatprep.mubr.bf16.mxu0 %v3147
      %3309 = vmatmul.mubr.bf16.gmra.mxu0 %v3146
      %v3310 = vpop.f32.mrf.mxu0
      %v3311 = vadd.f32 0.0, %v3310
      %v3312 = vpop.f32.mrf.mxu0
      %v3313 = vpop.f32.mrf.mxu0
      %v3314 = vadd.f32 0.0, %v3313
      %v3315 = vpop.f32.mrf.mxu0
      %3316 = vmatprep.mubr.bf16.mxu0 %v3149
      %3317 = vmatmul.mubr.bf16.gmra.mxu0 %v3148
      %v3318 = vpop.f32.mrf.mxu0
      %v3319 = vadd.f32 0.0, %v3318
      %v3320 = vpop.f32.mrf.mxu0
      %v3321 = vpop.f32.mrf.mxu0
      %v3322 = vadd.f32 0.0, %v3321
      %v3323 = vpop.f32.mrf.mxu0
      %3324 = vmatprep.mubr.bf16.mxu0 %v3151
      %3325 = vmatmul.mubr.bf16.gmra.mxu0 %v3150
      %v3326 = vpop.f32.mrf.mxu0
      %v3327 = vadd.f32 0.0, %v3326
      %v3328 = vpop.f32.mrf.mxu0
      %v3329 = vpop.f32.mrf.mxu0
      %v3330 = vadd.f32 0.0, %v3329
      %v3331 = vpop.f32.mrf.mxu0
      %3332 = vmatprep.mubr.bf16.mxu0 %v3153
      %3333 = vmatmul.mubr.bf16.gmra.mxu0 %v3152
      %v3334 = vpop.f32.mrf.mxu0
      %v3335 = vadd.f32 0.0, %v3334
      %v3336 = vpop.f32.mrf.mxu0
      %v3337 = vpop.f32.mrf.mxu0
      %v3338 = vadd.f32 0.0, %v3337
      %v3339 = vpop.f32.mrf.mxu0
      %3340 = vmatprep.mubr.bf16.mxu0 %v3155
      %3341 = vmatmul.mubr.bf16.gmra.mxu0 %v3154
      %v3342 = vpop.f32.mrf.mxu0
      %v3343 = vadd.f32 0.0, %v3342
      %v3344 = vpop.f32.mrf.mxu0
      %v3345 = vpop.f32.mrf.mxu0
      %v3346 = vadd.f32 0.0, %v3345
      %v3347 = vpop.f32.mrf.mxu0
      %3348 = vdwg.mxu0
      %v3349 = vpack.c.bf16 %v3226, %v3223
      %v3350 = vpack.c.bf16 %v3234, %v3231
      %v3351 = vpack.c.bf16 %v3242, %v3239
      %v3352 = vpack.c.bf16 %v3250, %v3247
      %v3353 = vpack.c.bf16 %v3258, %v3255
      %v3354 = vpack.c.bf16 %v3266, %v3263
      %v3355 = vpack.c.bf16 %v3274, %v3271
      %v3356 = vpack.c.bf16 %v3282, %v3279
      %v3357 = vpack.c.bf16 %v3290, %v3287
      %v3358 = vpack.c.bf16 %v3298, %v3295
      %v3359 = vpack.c.bf16 %v3306, %v3303
      %v3360 = vpack.c.bf16 %v3314, %v3311
      %v3361 = vpack.c.bf16 %v3322, %v3319
      %v3362 = vpack.c.bf16 %v3330, %v3327
      %v3363 = vpack.c.bf16 %v3338, %v3335
      %v3364 = vpack.c.bf16 %v3346, %v3343
      %3365 = vmatprep.subr.bf16.mxu0 0
      %3366 = vmatpush1.bf16.msra.mxu0 %v3356
      %3367 = vmatprep.subr.bf16.mxu0 0
      %3368 = vmatpush1.bf16.msra.mxu0 %v3355
      %3369 = vmatprep.subr.bf16.mxu0 0
      %3370 = vmatpush1.bf16.msra.mxu0 %v3354
      %3371 = vmatprep.subr.bf16.mxu0 0
      %3372 = vmatpush1.bf16.msra.mxu0 %v3353
      %3373 = vmatprep.subr.bf16.mxu0 0
      %3374 = vmatpush1.bf16.msra.mxu0 %v3352
      %3375 = vmatprep.subr.bf16.mxu0 0
      %3376 = vmatpush1.bf16.msra.mxu0 %v3351
      %3377 = vmatprep.subr.bf16.mxu0 0
      %3378 = vmatpush1.bf16.msra.mxu0 %v3350
      %3379 = vmatprep.subr.bf16.mxu0 0
      %3380 = vmatpush1.bf16.msra.mxu0 %v3349
      %3381 = vmatprep.subr.bf16.mxu0 0
      %3382 = vmatpush2.bf16.msra.mxu0 %v3364
      %3383 = vmatprep.subr.bf16.mxu0 0
      %3384 = vmatpush2.bf16.msra.mxu0 %v3363
      %3385 = vmatprep.subr.bf16.mxu0 0
      %3386 = vmatpush2.bf16.msra.mxu0 %v3362
      %3387 = vmatprep.subr.bf16.mxu0 0
      %3388 = vmatpush2.bf16.msra.mxu0 %v3361
      %3389 = vmatprep.subr.bf16.mxu0 0
      %3390 = vmatpush2.bf16.msra.mxu0 %v3360
      %3391 = vmatprep.subr.bf16.mxu0 0
      %3392 = vmatpush2.bf16.msra.mxu0 %v3359
      %3393 = vmatprep.subr.bf16.mxu0 0
      %3394 = vmatpush2.bf16.msra.mxu0 %v3358
      %3395 = vmatprep.subr.bf16.mxu0 0
      %3396 = vmatpush2.bf16.msra.mxu0 %v3357
      %3397 = vmatprep.mubr.bf16.mxu0 %v3125
      %3398 = vmatmul.mubr.bf16.gmra.mxu0 %v3124
      %v3399 = vpop.f32.mrf.mxu0
      %v3400 = vadd.f32 0.0, %v3399
      %v3401 = vpop.f32.mrf.mxu0
      %v3402 = vpop.f32.mrf.mxu0
      %v3403 = vadd.f32 0.0, %v3402
      %v3404 = vpop.f32.mrf.mxu0
      %3405 = vmatprep.mubr.bf16.mxu0 %v3127
      %3406 = vmatmul.mubr.bf16.gmra.mxu0 %v3126
      %v3407 = vpop.f32.mrf.mxu0
      %v3408 = vadd.f32 0.0, %v3407
      %v3409 = vpop.f32.mrf.mxu0
      %v3410 = vpop.f32.mrf.mxu0
      %v3411 = vadd.f32 0.0, %v3410
      %v3412 = vpop.f32.mrf.mxu0
      %3413 = vmatprep.mubr.bf16.mxu0 %v3129
      %3414 = vmatmul.mubr.bf16.gmra.mxu0 %v3128
      %v3415 = vpop.f32.mrf.mxu0
      %v3416 = vadd.f32 0.0, %v3415
      %v3417 = vpop.f32.mrf.mxu0
      %v3418 = vpop.f32.mrf.mxu0
      %v3419 = vadd.f32 0.0, %v3418
      %v3420 = vpop.f32.mrf.mxu0
      %3421 = vmatprep.mubr.bf16.mxu0 %v3131
      %3422 = vmatmul.mubr.bf16.gmra.mxu0 %v3130
      %v3423 = vpop.f32.mrf.mxu0
      %v3424 = vadd.f32 0.0, %v3423
      %v3425 = vpop.f32.mrf.mxu0
      %v3426 = vpop.f32.mrf.mxu0
      %v3427 = vadd.f32 0.0, %v3426
      %v3428 = vpop.f32.mrf.mxu0
      %3429 = vmatprep.mubr.bf16.mxu0 %v3133
      %3430 = vmatmul.mubr.bf16.gmra.mxu0 %v3132
      %v3431 = vpop.f32.mrf.mxu0
      %v3432 = vadd.f32 0.0, %v3431
      %v3433 = vpop.f32.mrf.mxu0
      %v3434 = vpop.f32.mrf.mxu0
      %v3435 = vadd.f32 0.0, %v3434
      %v3436 = vpop.f32.mrf.mxu0
      %3437 = vmatprep.mubr.bf16.mxu0 %v3135
      %3438 = vmatmul.mubr.bf16.gmra.mxu0 %v3134
      %v3439 = vpop.f32.mrf.mxu0
      %v3440 = vadd.f32 0.0, %v3439
      %v3441 = vpop.f32.mrf.mxu0
      %v3442 = vpop.f32.mrf.mxu0
      %v3443 = vadd.f32 0.0, %v3442
      %v3444 = vpop.f32.mrf.mxu0
      %3445 = vmatprep.mubr.bf16.mxu0 %v3137
      %3446 = vmatmul.mubr.bf16.gmra.mxu0 %v3136
      %v3447 = vpop.f32.mrf.mxu0
      %v3448 = vadd.f32 0.0, %v3447
      %v3449 = vpop.f32.mrf.mxu0
      %v3450 = vpop.f32.mrf.mxu0
      %v3451 = vadd.f32 0.0, %v3450
      %v3452 = vpop.f32.mrf.mxu0
      %3453 = vmatprep.mubr.bf16.mxu0 %v3139
      %3454 = vmatmul.mubr.bf16.gmra.mxu0 %v3138
      %v3455 = vpop.f32.mrf.mxu0
      %v3456 = vadd.f32 0.0, %v3455
      %v3457 = vpop.f32.mrf.mxu0
      %v3458 = vpop.f32.mrf.mxu0
      %v3459 = vadd.f32 0.0, %v3458
      %v3460 = vpop.f32.mrf.mxu0
      %3461 = vmatprep.mubr.bf16.mxu0 %v3141
      %3462 = vmatmul.mubr.bf16.gmra.mxu0 %v3140
      %v3463 = vpop.f32.mrf.mxu0
      %v3464 = vadd.f32 0.0, %v3463
      %v3465 = vpop.f32.mrf.mxu0
      %v3466 = vpop.f32.mrf.mxu0
      %v3467 = vadd.f32 0.0, %v3466
      %v3468 = vpop.f32.mrf.mxu0
      %3469 = vmatprep.mubr.bf16.mxu0 %v3143
      %3470 = vmatmul.mubr.bf16.gmra.mxu0 %v3142
      %v3471 = vpop.f32.mrf.mxu0
      %v3472 = vadd.f32 0.0, %v3471
      %v3473 = vpop.f32.mrf.mxu0
      %v3474 = vpop.f32.mrf.mxu0
      %v3475 = vadd.f32 0.0, %v3474
      %v3476 = vpop.f32.mrf.mxu0
      %3477 = vmatprep.mubr.bf16.mxu0 %v3145
      %3478 = vmatmul.mubr.bf16.gmra.mxu0 %v3144
      %v3479 = vpop.f32.mrf.mxu0
      %v3480 = vadd.f32 0.0, %v3479
      %v3481 = vpop.f32.mrf.mxu0
      %v3482 = vpop.f32.mrf.mxu0
      %v3483 = vadd.f32 0.0, %v3482
      %v3484 = vpop.f32.mrf.mxu0
      %3485 = vmatprep.mubr.bf16.mxu0 %v3147
      %3486 = vmatmul.mubr.bf16.gmra.mxu0 %v3146
      %v3487 = vpop.f32.mrf.mxu0
      %v3488 = vadd.f32 0.0, %v3487
      %v3489 = vpop.f32.mrf.mxu0
      %v3490 = vpop.f32.mrf.mxu0
      %v3491 = vadd.f32 0.0, %v3490
      %v3492 = vpop.f32.mrf.mxu0
      %3493 = vmatprep.mubr.bf16.mxu0 %v3149
      %3494 = vmatmul.mubr.bf16.gmra.mxu0 %v3148
      %v3495 = vpop.f32.mrf.mxu0
      %v3496 = vadd.f32 0.0, %v3495
      %v3497 = vpop.f32.mrf.mxu0
      %v3498 = vpop.f32.mrf.mxu0
      %v3499 = vadd.f32 0.0, %v3498
      %v3500 = vpop.f32.mrf.mxu0
      %3501 = vmatprep.mubr.bf16.mxu0 %v3151
      %3502 = vmatmul.mubr.bf16.gmra.mxu0 %v3150
      %v3503 = vpop.f32.mrf.mxu0
      %v3504 = vadd.f32 0.0, %v3503
      %v3505 = vpop.f32.mrf.mxu0
      %v3506 = vpop.f32.mrf.mxu0
      %v3507 = vadd.f32 0.0, %v3506
      %v3508 = vpop.f32.mrf.mxu0
      %3509 = vmatprep.mubr.bf16.mxu0 %v3153
      %3510 = vmatmul.mubr.bf16.gmra.mxu0 %v3152
      %v3511 = vpop.f32.mrf.mxu0
      %v3512 = vadd.f32 0.0, %v3511
      %v3513 = vpop.f32.mrf.mxu0
      %v3514 = vpop.f32.mrf.mxu0
      %v3515 = vadd.f32 0.0, %v3514
      %v3516 = vpop.f32.mrf.mxu0
      %3517 = vmatprep.mubr.bf16.mxu0 %v3155
      %3518 = vmatmul.mubr.bf16.gmra.mxu0 %v3154
      %v3519 = vpop.f32.mrf.mxu0
      %v3520 = vadd.f32 0.0, %v3519
      %v3521 = vpop.f32.mrf.mxu0
      %v3522 = vpop.f32.mrf.mxu0
      %v3523 = vadd.f32 0.0, %v3522
      %v3524 = vpop.f32.mrf.mxu0
      %3525 = vdwg.mxu0
      %v3526 = vpack.c.bf16 %v3403, %v3400
      %v3527 = vpack.c.bf16 %v3411, %v3408
      %v3528 = vpack.c.bf16 %v3419, %v3416
      %v3529 = vpack.c.bf16 %v3427, %v3424
      %v3530 = vpack.c.bf16 %v3435, %v3432
      %v3531 = vpack.c.bf16 %v3443, %v3440
      %v3532 = vpack.c.bf16 %v3451, %v3448
      %v3533 = vpack.c.bf16 %v3459, %v3456
      %v3534 = vpack.c.bf16 %v3467, %v3464
      %v3535 = vpack.c.bf16 %v3475, %v3472
      %v3536 = vpack.c.bf16 %v3483, %v3480
      %v3537 = vpack.c.bf16 %v3491, %v3488
      %v3538 = vpack.c.bf16 %v3499, %v3496
      %v3539 = vpack.c.bf16 %v3507, %v3504
      %v3540 = vpack.c.bf16 %v3515, %v3512
      %v3541 = vpack.c.bf16 %v3523, %v3520
      %v3574 = vunpack.c.l.b16 %v2964
      %v3575 = vunpack.c.h.b16 %v2964
      %v3576 = vunpack.c.l.b16 %v2965
      %v3577 = vunpack.c.h.b16 %v2965
      %v3578 = vunpack.c.l.b16 %v2966
      %v3579 = vunpack.c.h.b16 %v2966
      %v3580 = vunpack.c.l.b16 %v2967
      %v3581 = vunpack.c.h.b16 %v2967
      %v3582 = vunpack.c.l.b16 %v2968
      %v3583 = vunpack.c.h.b16 %v2968
      %v3584 = vunpack.c.l.b16 %v2969
      %v3585 = vunpack.c.h.b16 %v2969
      %v3586 = vunpack.c.l.b16 %v2970
      %v3587 = vunpack.c.h.b16 %v2970
      %v3588 = vunpack.c.l.b16 %v2971
      %v3589 = vunpack.c.h.b16 %v2971
      %v3590 = vunpack.c.l.b16 %v2972
      %v3591 = vunpack.c.h.b16 %v2972
      %v3592 = vunpack.c.l.b16 %v2973
      %v3593 = vunpack.c.h.b16 %v2973
      %v3594 = vunpack.c.l.b16 %v2974
      %v3595 = vunpack.c.h.b16 %v2974
      %v3596 = vunpack.c.l.b16 %v2975
      %v3597 = vunpack.c.h.b16 %v2975
      %v3598 = vunpack.c.l.b16 %v2976
      %v3599 = vunpack.c.h.b16 %v2976
      %v3600 = vunpack.c.l.b16 %v2977
      %v3601 = vunpack.c.h.b16 %v2977
      %v3602 = vunpack.c.l.b16 %v2978
      %v3603 = vunpack.c.h.b16 %v2978
      %v3604 = vunpack.c.l.b16 %v2979
      %v3605 = vunpack.c.h.b16 %v2979
      %v3606 = vunpack.c.l.b16 %v2980
      %v3607 = vunpack.c.h.b16 %v2980
      %v3608 = vunpack.c.l.b16 %v2981
      %v3609 = vunpack.c.h.b16 %v2981
      %v3610 = vunpack.c.l.b16 %v2982
      %v3611 = vunpack.c.h.b16 %v2982
      %v3612 = vunpack.c.l.b16 %v2983
      %v3613 = vunpack.c.h.b16 %v2983
      %v3614 = vunpack.c.l.b16 %v2984
      %v3615 = vunpack.c.h.b16 %v2984
      %v3616 = vunpack.c.l.b16 %v2985
      %v3617 = vunpack.c.h.b16 %v2985
      %v3618 = vunpack.c.l.b16 %v2986
      %v3619 = vunpack.c.h.b16 %v2986
      %v3620 = vunpack.c.l.b16 %v2987
      %v3621 = vunpack.c.h.b16 %v2987
      %v3622 = vunpack.c.l.b16 %v2988
      %v3623 = vunpack.c.h.b16 %v2988
      %v3624 = vunpack.c.l.b16 %v2989
      %v3625 = vunpack.c.h.b16 %v2989
      %v3626 = vunpack.c.l.b16 %v2990
      %v3627 = vunpack.c.h.b16 %v2990
      %v3628 = vunpack.c.l.b16 %v2991
      %v3629 = vunpack.c.h.b16 %v2991
      %v3630 = vunpack.c.l.b16 %v2992
      %v3631 = vunpack.c.h.b16 %v2992
      %v3632 = vunpack.c.l.b16 %v2993
      %v3633 = vunpack.c.h.b16 %v2993
      %v3634 = vunpack.c.l.b16 %v2994
      %v3635 = vunpack.c.h.b16 %v2994
      %v3636 = vunpack.c.l.b16 %v2995
      %v3637 = vunpack.c.h.b16 %v2995
      %v3638 = vpack.c.b16 %v3576, %v3574
      %v3639 = vpack.c.b16 %v3577, %v3575
      %v3640 = vpack.c.b16 %v3580, %v3578
      %v3641 = vpack.c.b16 %v3581, %v3579
      %v3642 = vpack.c.b16 %v3584, %v3582
      %v3643 = vpack.c.b16 %v3585, %v3583
      %v3644 = vpack.c.b16 %v3588, %v3586
      %v3645 = vpack.c.b16 %v3589, %v3587
      %v3646 = vpack.c.b16 %v3592, %v3590
      %v3647 = vpack.c.b16 %v3593, %v3591
      %v3648 = vpack.c.b16 %v3596, %v3594
      %v3649 = vpack.c.b16 %v3597, %v3595
      %v3650 = vpack.c.b16 %v3600, %v3598
      %v3651 = vpack.c.b16 %v3601, %v3599
      %v3652 = vpack.c.b16 %v3604, %v3602
      %v3653 = vpack.c.b16 %v3605, %v3603
      %v3654 = vpack.c.b16 %v3608, %v3606
      %v3655 = vpack.c.b16 %v3609, %v3607
      %v3656 = vpack.c.b16 %v3612, %v3610
      %v3657 = vpack.c.b16 %v3613, %v3611
      %v3658 = vpack.c.b16 %v3616, %v3614
      %v3659 = vpack.c.b16 %v3617, %v3615
      %v3660 = vpack.c.b16 %v3620, %v3618
      %v3661 = vpack.c.b16 %v3621, %v3619
      %v3662 = vpack.c.b16 %v3624, %v3622
      %v3663 = vpack.c.b16 %v3625, %v3623
      %v3664 = vpack.c.b16 %v3628, %v3626
      %v3665 = vpack.c.b16 %v3629, %v3627
      %v3666 = vpack.c.b16 %v3632, %v3630
      %v3667 = vpack.c.b16 %v3633, %v3631
      %v3668 = vpack.c.b16 %v3636, %v3634
      %v3669 = vpack.c.b16 %v3637, %v3635
      %3702 = vmatprep.subr.bf16.mxu0 0
      %3703 = vmatpush1.bf16.msra.mxu0 %v2923
      %3704 = vmatprep.subr.bf16.mxu0 0
      %3705 = vmatpush1.bf16.msra.mxu0 %v2922
      %3706 = vmatprep.subr.bf16.mxu0 0
      %3707 = vmatpush1.bf16.msra.mxu0 %v2921
      %3708 = vmatprep.subr.bf16.mxu0 0
      %3709 = vmatpush1.bf16.msra.mxu0 %v2920
      %3710 = vmatprep.subr.bf16.mxu0 0
      %3711 = vmatpush1.bf16.msra.mxu0 %v2919
      %3712 = vmatprep.subr.bf16.mxu0 0
      %3713 = vmatpush1.bf16.msra.mxu0 %v2918
      %3714 = vmatprep.subr.bf16.mxu0 0
      %3715 = vmatpush1.bf16.msra.mxu0 %v2917
      %3716 = vmatprep.subr.bf16.mxu0 0
      %3717 = vmatpush1.bf16.msra.mxu0 %v2916
      %3718 = vmatprep.subr.bf16.mxu0 0
      %3719 = vmatpush2.bf16.msra.mxu0 %v2931
      %3720 = vmatprep.subr.bf16.mxu0 0
      %3721 = vmatpush2.bf16.msra.mxu0 %v2930
      %3722 = vmatprep.subr.bf16.mxu0 0
      %3723 = vmatpush2.bf16.msra.mxu0 %v2929
      %3724 = vmatprep.subr.bf16.mxu0 0
      %3725 = vmatpush2.bf16.msra.mxu0 %v2928
      %3726 = vmatprep.subr.bf16.mxu0 0
      %3727 = vmatpush2.bf16.msra.mxu0 %v2927
      %3728 = vmatprep.subr.bf16.mxu0 0
      %3729 = vmatpush2.bf16.msra.mxu0 %v2926
      %3730 = vmatprep.subr.bf16.mxu0 0
      %3731 = vmatpush2.bf16.msra.mxu0 %v2925
      %3732 = vmatprep.subr.bf16.mxu0 0
      %3733 = vmatpush2.bf16.msra.mxu0 %v2924
      %3734 = vmatprep.mubr.bf16.mxu0 %v3639
      %3735 = vmatmul.mubr.bf16.gmra.mxu0 %v3638
      %v3736 = vpop.f32.mrf.mxu0
      %v3737 = vadd.f32 0.0, %v3736
      %v3738 = vpop.f32.mrf.mxu0
      %v3739 = vpop.f32.mrf.mxu0
      %v3740 = vadd.f32 0.0, %v3739
      %v3741 = vpop.f32.mrf.mxu0
      %3742 = vmatprep.mubr.bf16.mxu0 %v3641
      %3743 = vmatmul.mubr.bf16.gmra.mxu0 %v3640
      %v3744 = vpop.f32.mrf.mxu0
      %v3745 = vadd.f32 0.0, %v3744
      %v3746 = vpop.f32.mrf.mxu0
      %v3747 = vpop.f32.mrf.mxu0
      %v3748 = vadd.f32 0.0, %v3747
      %v3749 = vpop.f32.mrf.mxu0
      %3750 = vmatprep.mubr.bf16.mxu0 %v3643
      %3751 = vmatmul.mubr.bf16.gmra.mxu0 %v3642
      %v3752 = vpop.f32.mrf.mxu0
      %v3753 = vadd.f32 0.0, %v3752
      %v3754 = vpop.f32.mrf.mxu0
      %v3755 = vpop.f32.mrf.mxu0
      %v3756 = vadd.f32 0.0, %v3755
      %v3757 = vpop.f32.mrf.mxu0
      %3758 = vmatprep.mubr.bf16.mxu0 %v3645
      %3759 = vmatmul.mubr.bf16.gmra.mxu0 %v3644
      %v3760 = vpop.f32.mrf.mxu0
      %v3761 = vadd.f32 0.0, %v3760
      %v3762 = vpop.f32.mrf.mxu0
      %v3763 = vpop.f32.mrf.mxu0
      %v3764 = vadd.f32 0.0, %v3763
      %v3765 = vpop.f32.mrf.mxu0
      %3766 = vmatprep.mubr.bf16.mxu0 %v3647
      %3767 = vmatmul.mubr.bf16.gmra.mxu0 %v3646
      %v3768 = vpop.f32.mrf.mxu0
      %v3769 = vadd.f32 0.0, %v3768
      %v3770 = vpop.f32.mrf.mxu0
      %v3771 = vpop.f32.mrf.mxu0
      %v3772 = vadd.f32 0.0, %v3771
      %v3773 = vpop.f32.mrf.mxu0
      %3774 = vmatprep.mubr.bf16.mxu0 %v3649
      %3775 = vmatmul.mubr.bf16.gmra.mxu0 %v3648
      %v3776 = vpop.f32.mrf.mxu0
      %v3777 = vadd.f32 0.0, %v3776
      %v3778 = vpop.f32.mrf.mxu0
      %v3779 = vpop.f32.mrf.mxu0
      %v3780 = vadd.f32 0.0, %v3779
      %v3781 = vpop.f32.mrf.mxu0
      %3782 = vmatprep.mubr.bf16.mxu0 %v3651
      %3783 = vmatmul.mubr.bf16.gmra.mxu0 %v3650
      %v3784 = vpop.f32.mrf.mxu0
      %v3785 = vadd.f32 0.0, %v3784
      %v3786 = vpop.f32.mrf.mxu0
      %v3787 = vpop.f32.mrf.mxu0
      %v3788 = vadd.f32 0.0, %v3787
      %v3789 = vpop.f32.mrf.mxu0
      %3790 = vmatprep.mubr.bf16.mxu0 %v3653
      %3791 = vmatmul.mubr.bf16.gmra.mxu0 %v3652
      %v3792 = vpop.f32.mrf.mxu0
      %v3793 = vadd.f32 0.0, %v3792
      %v3794 = vpop.f32.mrf.mxu0
      %v3795 = vpop.f32.mrf.mxu0
      %v3796 = vadd.f32 0.0, %v3795
      %v3797 = vpop.f32.mrf.mxu0
      %3798 = vmatprep.mubr.bf16.mxu0 %v3655
      %3799 = vmatmul.mubr.bf16.gmra.mxu0 %v3654
      %v3800 = vpop.f32.mrf.mxu0
      %v3801 = vadd.f32 0.0, %v3800
      %v3802 = vpop.f32.mrf.mxu0
      %v3803 = vpop.f32.mrf.mxu0
      %v3804 = vadd.f32 0.0, %v3803
      %v3805 = vpop.f32.mrf.mxu0
      %3806 = vmatprep.mubr.bf16.mxu0 %v3657
      %3807 = vmatmul.mubr.bf16.gmra.mxu0 %v3656
      %v3808 = vpop.f32.mrf.mxu0
      %v3809 = vadd.f32 0.0, %v3808
      %v3810 = vpop.f32.mrf.mxu0
      %v3811 = vpop.f32.mrf.mxu0
      %v3812 = vadd.f32 0.0, %v3811
      %v3813 = vpop.f32.mrf.mxu0
      %3814 = vmatprep.mubr.bf16.mxu0 %v3659
      %3815 = vmatmul.mubr.bf16.gmra.mxu0 %v3658
      %v3816 = vpop.f32.mrf.mxu0
      %v3817 = vadd.f32 0.0, %v3816
      %v3818 = vpop.f32.mrf.mxu0
      %v3819 = vpop.f32.mrf.mxu0
      %v3820 = vadd.f32 0.0, %v3819
      %v3821 = vpop.f32.mrf.mxu0
      %3822 = vmatprep.mubr.bf16.mxu0 %v3661
      %3823 = vmatmul.mubr.bf16.gmra.mxu0 %v3660
      %v3824 = vpop.f32.mrf.mxu0
      %v3825 = vadd.f32 0.0, %v3824
      %v3826 = vpop.f32.mrf.mxu0
      %v3827 = vpop.f32.mrf.mxu0
      %v3828 = vadd.f32 0.0, %v3827
      %v3829 = vpop.f32.mrf.mxu0
      %3830 = vmatprep.mubr.bf16.mxu0 %v3663
      %3831 = vmatmul.mubr.bf16.gmra.mxu0 %v3662
      %v3832 = vpop.f32.mrf.mxu0
      %v3833 = vadd.f32 0.0, %v3832
      %v3834 = vpop.f32.mrf.mxu0
      %v3835 = vpop.f32.mrf.mxu0
      %v3836 = vadd.f32 0.0, %v3835
      %v3837 = vpop.f32.mrf.mxu0
      %3838 = vmatprep.mubr.bf16.mxu0 %v3665
      %3839 = vmatmul.mubr.bf16.gmra.mxu0 %v3664
      %v3840 = vpop.f32.mrf.mxu0
      %v3841 = vadd.f32 0.0, %v3840
      %v3842 = vpop.f32.mrf.mxu0
      %v3843 = vpop.f32.mrf.mxu0
      %v3844 = vadd.f32 0.0, %v3843
      %v3845 = vpop.f32.mrf.mxu0
      %3846 = vmatprep.mubr.bf16.mxu0 %v3667
      %3847 = vmatmul.mubr.bf16.gmra.mxu0 %v3666
      %v3848 = vpop.f32.mrf.mxu0
      %v3849 = vadd.f32 0.0, %v3848
      %v3850 = vpop.f32.mrf.mxu0
      %v3851 = vpop.f32.mrf.mxu0
      %v3852 = vadd.f32 0.0, %v3851
      %v3853 = vpop.f32.mrf.mxu0
      %3854 = vmatprep.mubr.bf16.mxu0 %v3669
      %3855 = vmatmul.mubr.bf16.gmra.mxu0 %v3668
      %v3856 = vpop.f32.mrf.mxu0
      %v3857 = vadd.f32 0.0, %v3856
      %v3858 = vpop.f32.mrf.mxu0
      %v3859 = vpop.f32.mrf.mxu0
      %v3860 = vadd.f32 0.0, %v3859
      %v3861 = vpop.f32.mrf.mxu0
      %3862 = vdwg.mxu0
      %v3863 = vpack.c.bf16 %v3740, %v3737
      %v3864 = vpack.c.bf16 %v3748, %v3745
      %v3865 = vpack.c.bf16 %v3756, %v3753
      %v3866 = vpack.c.bf16 %v3764, %v3761
      %v3867 = vpack.c.bf16 %v3772, %v3769
      %v3868 = vpack.c.bf16 %v3780, %v3777
      %v3869 = vpack.c.bf16 %v3788, %v3785
      %v3870 = vpack.c.bf16 %v3796, %v3793
      %v3871 = vpack.c.bf16 %v3804, %v3801
      %v3872 = vpack.c.bf16 %v3812, %v3809
      %v3873 = vpack.c.bf16 %v3820, %v3817
      %v3874 = vpack.c.bf16 %v3828, %v3825
      %v3875 = vpack.c.bf16 %v3836, %v3833
      %v3876 = vpack.c.bf16 %v3844, %v3841
      %v3877 = vpack.c.bf16 %v3852, %v3849
      %v3878 = vpack.c.bf16 %v3860, %v3857
      %3879 = vmatprep.subr.bf16.mxu0 0
      %3880 = vmatpush1.bf16.msra.mxu0 %v3870
      %3881 = vmatprep.subr.bf16.mxu0 0
      %3882 = vmatpush1.bf16.msra.mxu0 %v3869
      %3883 = vmatprep.subr.bf16.mxu0 0
      %3884 = vmatpush1.bf16.msra.mxu0 %v3868
      %3885 = vmatprep.subr.bf16.mxu0 0
      %3886 = vmatpush1.bf16.msra.mxu0 %v3867
      %3887 = vmatprep.subr.bf16.mxu0 0
      %3888 = vmatpush1.bf16.msra.mxu0 %v3866
      %3889 = vmatprep.subr.bf16.mxu0 0
      %3890 = vmatpush1.bf16.msra.mxu0 %v3865
      %3891 = vmatprep.subr.bf16.mxu0 0
      %3892 = vmatpush1.bf16.msra.mxu0 %v3864
      %3893 = vmatprep.subr.bf16.mxu0 0
      %3894 = vmatpush1.bf16.msra.mxu0 %v3863
      %3895 = vmatprep.subr.bf16.mxu0 0
      %3896 = vmatpush2.bf16.msra.mxu0 %v3878
      %3897 = vmatprep.subr.bf16.mxu0 0
      %3898 = vmatpush2.bf16.msra.mxu0 %v3877
      %3899 = vmatprep.subr.bf16.mxu0 0
      %3900 = vmatpush2.bf16.msra.mxu0 %v3876
      %3901 = vmatprep.subr.bf16.mxu0 0
      %3902 = vmatpush2.bf16.msra.mxu0 %v3875
      %3903 = vmatprep.subr.bf16.mxu0 0
      %3904 = vmatpush2.bf16.msra.mxu0 %v3874
      %3905 = vmatprep.subr.bf16.mxu0 0
      %3906 = vmatpush2.bf16.msra.mxu0 %v3873
      %3907 = vmatprep.subr.bf16.mxu0 0
      %3908 = vmatpush2.bf16.msra.mxu0 %v3872
      %3909 = vmatprep.subr.bf16.mxu0 0
      %3910 = vmatpush2.bf16.msra.mxu0 %v3871
      %3911 = vmatprep.mubr.bf16.mxu0 %v3639
      %3912 = vmatmul.mubr.bf16.gmra.mxu0 %v3638
      %v3913 = vpop.f32.mrf.mxu0
      %v3914 = vadd.f32 0.0, %v3913
      %v3915 = vpop.f32.mrf.mxu0
      %v3916 = vpop.f32.mrf.mxu0
      %v3917 = vadd.f32 0.0, %v3916
      %v3918 = vpop.f32.mrf.mxu0
      %3919 = vmatprep.mubr.bf16.mxu0 %v3641
      %3920 = vmatmul.mubr.bf16.gmra.mxu0 %v3640
      %v3921 = vpop.f32.mrf.mxu0
      %v3922 = vadd.f32 0.0, %v3921
      %v3923 = vpop.f32.mrf.mxu0
      %v3924 = vpop.f32.mrf.mxu0
      %v3925 = vadd.f32 0.0, %v3924
      %v3926 = vpop.f32.mrf.mxu0
      %3927 = vmatprep.mubr.bf16.mxu0 %v3643
      %3928 = vmatmul.mubr.bf16.gmra.mxu0 %v3642
      %v3929 = vpop.f32.mrf.mxu0
      %v3930 = vadd.f32 0.0, %v3929
      %v3931 = vpop.f32.mrf.mxu0
      %v3932 = vpop.f32.mrf.mxu0
      %v3933 = vadd.f32 0.0, %v3932
      %v3934 = vpop.f32.mrf.mxu0
      %3935 = vmatprep.mubr.bf16.mxu0 %v3645
      %3936 = vmatmul.mubr.bf16.gmra.mxu0 %v3644
      %v3937 = vpop.f32.mrf.mxu0
      %v3938 = vadd.f32 0.0, %v3937
      %v3939 = vpop.f32.mrf.mxu0
      %v3940 = vpop.f32.mrf.mxu0
      %v3941 = vadd.f32 0.0, %v3940
      %v3942 = vpop.f32.mrf.mxu0
      %3943 = vmatprep.mubr.bf16.mxu0 %v3647
      %3944 = vmatmul.mubr.bf16.gmra.mxu0 %v3646
      %v3945 = vpop.f32.mrf.mxu0
      %v3946 = vadd.f32 0.0, %v3945
      %v3947 = vpop.f32.mrf.mxu0
      %v3948 = vpop.f32.mrf.mxu0
      %v3949 = vadd.f32 0.0, %v3948
      %v3950 = vpop.f32.mrf.mxu0
      %3951 = vmatprep.mubr.bf16.mxu0 %v3649
      %3952 = vmatmul.mubr.bf16.gmra.mxu0 %v3648
      %v3953 = vpop.f32.mrf.mxu0
      %v3954 = vadd.f32 0.0, %v3953
      %v3955 = vpop.f32.mrf.mxu0
      %v3956 = vpop.f32.mrf.mxu0
      %v3957 = vadd.f32 0.0, %v3956
      %v3958 = vpop.f32.mrf.mxu0
      %3959 = vmatprep.mubr.bf16.mxu0 %v3651
      %3960 = vmatmul.mubr.bf16.gmra.mxu0 %v3650
      %v3961 = vpop.f32.mrf.mxu0
      %v3962 = vadd.f32 0.0, %v3961
      %v3963 = vpop.f32.mrf.mxu0
      %v3964 = vpop.f32.mrf.mxu0
      %v3965 = vadd.f32 0.0, %v3964
      %v3966 = vpop.f32.mrf.mxu0
      %3967 = vmatprep.mubr.bf16.mxu0 %v3653
      %3968 = vmatmul.mubr.bf16.gmra.mxu0 %v3652
      %v3969 = vpop.f32.mrf.mxu0
      %v3970 = vadd.f32 0.0, %v3969
      %v3971 = vpop.f32.mrf.mxu0
      %v3972 = vpop.f32.mrf.mxu0
      %v3973 = vadd.f32 0.0, %v3972
      %v3974 = vpop.f32.mrf.mxu0
      %3975 = vmatprep.mubr.bf16.mxu0 %v3655
      %3976 = vmatmul.mubr.bf16.gmra.mxu0 %v3654
      %v3977 = vpop.f32.mrf.mxu0
      %v3978 = vadd.f32 0.0, %v3977
      %v3979 = vpop.f32.mrf.mxu0
      %v3980 = vpop.f32.mrf.mxu0
      %v3981 = vadd.f32 0.0, %v3980
      %v3982 = vpop.f32.mrf.mxu0
      %3983 = vmatprep.mubr.bf16.mxu0 %v3657
      %3984 = vmatmul.mubr.bf16.gmra.mxu0 %v3656
      %v3985 = vpop.f32.mrf.mxu0
      %v3986 = vadd.f32 0.0, %v3985
      %v3987 = vpop.f32.mrf.mxu0
      %v3988 = vpop.f32.mrf.mxu0
      %v3989 = vadd.f32 0.0, %v3988
      %v3990 = vpop.f32.mrf.mxu0
      %3991 = vmatprep.mubr.bf16.mxu0 %v3659
      %3992 = vmatmul.mubr.bf16.gmra.mxu0 %v3658
      %v3993 = vpop.f32.mrf.mxu0
      %v3994 = vadd.f32 0.0, %v3993
      %v3995 = vpop.f32.mrf.mxu0
      %v3996 = vpop.f32.mrf.mxu0
      %v3997 = vadd.f32 0.0, %v3996
      %v3998 = vpop.f32.mrf.mxu0
      %3999 = vmatprep.mubr.bf16.mxu0 %v3661
      %4000 = vmatmul.mubr.bf16.gmra.mxu0 %v3660
      %v4001 = vpop.f32.mrf.mxu0
      %v4002 = vadd.f32 0.0, %v4001
      %v4003 = vpop.f32.mrf.mxu0
      %v4004 = vpop.f32.mrf.mxu0
      %v4005 = vadd.f32 0.0, %v4004
      %v4006 = vpop.f32.mrf.mxu0
      %4007 = vmatprep.mubr.bf16.mxu0 %v3663
      %4008 = vmatmul.mubr.bf16.gmra.mxu0 %v3662
      %v4009 = vpop.f32.mrf.mxu0
      %v4010 = vadd.f32 0.0, %v4009
      %v4011 = vpop.f32.mrf.mxu0
      %v4012 = vpop.f32.mrf.mxu0
      %v4013 = vadd.f32 0.0, %v4012
      %v4014 = vpop.f32.mrf.mxu0
      %4015 = vmatprep.mubr.bf16.mxu0 %v3665
      %4016 = vmatmul.mubr.bf16.gmra.mxu0 %v3664
      %v4017 = vpop.f32.mrf.mxu0
      %v4018 = vadd.f32 0.0, %v4017
      %v4019 = vpop.f32.mrf.mxu0
      %v4020 = vpop.f32.mrf.mxu0
      %v4021 = vadd.f32 0.0, %v4020
      %v4022 = vpop.f32.mrf.mxu0
      %4023 = vmatprep.mubr.bf16.mxu0 %v3667
      %4024 = vmatmul.mubr.bf16.gmra.mxu0 %v3666
      %v4025 = vpop.f32.mrf.mxu0
      %v4026 = vadd.f32 0.0, %v4025
      %v4027 = vpop.f32.mrf.mxu0
      %v4028 = vpop.f32.mrf.mxu0
      %v4029 = vadd.f32 0.0, %v4028
      %v4030 = vpop.f32.mrf.mxu0
      %4031 = vmatprep.mubr.bf16.mxu0 %v3669
      %4032 = vmatmul.mubr.bf16.gmra.mxu0 %v3668
      %v4033 = vpop.f32.mrf.mxu0
      %v4034 = vadd.f32 0.0, %v4033
      %v4035 = vpop.f32.mrf.mxu0
      %v4036 = vpop.f32.mrf.mxu0
      %v4037 = vadd.f32 0.0, %v4036
      %v4038 = vpop.f32.mrf.mxu0
      %4039 = vdwg.mxu0
      %v4040 = vpack.c.bf16 %v3917, %v3914
      %v4041 = vpack.c.bf16 %v3925, %v3922
      %v4042 = vpack.c.bf16 %v3933, %v3930
      %v4043 = vpack.c.bf16 %v3941, %v3938
      %v4044 = vpack.c.bf16 %v3949, %v3946
      %v4045 = vpack.c.bf16 %v3957, %v3954
      %v4046 = vpack.c.bf16 %v3965, %v3962
      %v4047 = vpack.c.bf16 %v3973, %v3970
      %v4048 = vpack.c.bf16 %v3981, %v3978
      %v4049 = vpack.c.bf16 %v3989, %v3986
      %v4050 = vpack.c.bf16 %v3997, %v3994
      %v4051 = vpack.c.bf16 %v4005, %v4002
      %v4052 = vpack.c.bf16 %v4013, %v4010
      %v4053 = vpack.c.bf16 %v4021, %v4018
      %v4054 = vpack.c.bf16 %v4029, %v4026
      %v4055 = vpack.c.bf16 %v4037, %v4034
      %v4088 = vunpack.c.l.b16 %v2996
      %v4089 = vunpack.c.h.b16 %v2996
      %v4090 = vunpack.c.l.b16 %v2997
      %v4091 = vunpack.c.h.b16 %v2997
      %v4092 = vunpack.c.l.b16 %v2998
      %v4093 = vunpack.c.h.b16 %v2998
      %v4094 = vunpack.c.l.b16 %v2999
      %v4095 = vunpack.c.h.b16 %v2999
      %v4096 = vunpack.c.l.b16 %v3000
      %v4097 = vunpack.c.h.b16 %v3000
      %v4098 = vunpack.c.l.b16 %v3001
      %v4099 = vunpack.c.h.b16 %v3001
      %v4100 = vunpack.c.l.b16 %v3002
      %v4101 = vunpack.c.h.b16 %v3002
      %v4102 = vunpack.c.l.b16 %v3003
      %v4103 = vunpack.c.h.b16 %v3003
      %v4104 = vunpack.c.l.b16 %v3004
      %v4105 = vunpack.c.h.b16 %v3004
      %v4106 = vunpack.c.l.b16 %v3005
      %v4107 = vunpack.c.h.b16 %v3005
      %v4108 = vunpack.c.l.b16 %v3006
      %v4109 = vunpack.c.h.b16 %v3006
      %v4110 = vunpack.c.l.b16 %v3007
      %v4111 = vunpack.c.h.b16 %v3007
      %v4112 = vunpack.c.l.b16 %v3008
      %v4113 = vunpack.c.h.b16 %v3008
      %v4114 = vunpack.c.l.b16 %v3009
      %v4115 = vunpack.c.h.b16 %v3009
      %v4116 = vunpack.c.l.b16 %v3010
      %v4117 = vunpack.c.h.b16 %v3010
      %v4118 = vunpack.c.l.b16 %v3011
      %v4119 = vunpack.c.h.b16 %v3011
      %v4120 = vunpack.c.l.b16 %v3012
      %v4121 = vunpack.c.h.b16 %v3012
      %v4122 = vunpack.c.l.b16 %v3013
      %v4123 = vunpack.c.h.b16 %v3013
      %v4124 = vunpack.c.l.b16 %v3014
      %v4125 = vunpack.c.h.b16 %v3014
      %v4126 = vunpack.c.l.b16 %v3015
      %v4127 = vunpack.c.h.b16 %v3015
      %v4128 = vunpack.c.l.b16 %v3016
      %v4129 = vunpack.c.h.b16 %v3016
      %v4130 = vunpack.c.l.b16 %v3017
      %v4131 = vunpack.c.h.b16 %v3017
      %v4132 = vunpack.c.l.b16 %v3018
      %v4133 = vunpack.c.h.b16 %v3018
      %v4134 = vunpack.c.l.b16 %v3019
      %v4135 = vunpack.c.h.b16 %v3019
      %v4136 = vunpack.c.l.b16 %v3020
      %v4137 = vunpack.c.h.b16 %v3020
      %v4138 = vunpack.c.l.b16 %v3021
      %v4139 = vunpack.c.h.b16 %v3021
      %v4140 = vunpack.c.l.b16 %v3022
      %v4141 = vunpack.c.h.b16 %v3022
      %v4142 = vunpack.c.l.b16 %v3023
      %v4143 = vunpack.c.h.b16 %v3023
      %v4144 = vunpack.c.l.b16 %v3024
      %v4145 = vunpack.c.h.b16 %v3024
      %v4146 = vunpack.c.l.b16 %v3025
      %v4147 = vunpack.c.h.b16 %v3025
      %v4148 = vunpack.c.l.b16 %v3026
      %v4149 = vunpack.c.h.b16 %v3026
      %v4150 = vunpack.c.l.b16 %v3027
      %v4151 = vunpack.c.h.b16 %v3027
      %v4152 = vpack.c.b16 %v4090, %v4088
      %v4153 = vpack.c.b16 %v4091, %v4089
      %v4154 = vpack.c.b16 %v4094, %v4092
      %v4155 = vpack.c.b16 %v4095, %v4093
      %v4156 = vpack.c.b16 %v4098, %v4096
      %v4157 = vpack.c.b16 %v4099, %v4097
      %v4158 = vpack.c.b16 %v4102, %v4100
      %v4159 = vpack.c.b16 %v4103, %v4101
      %v4160 = vpack.c.b16 %v4106, %v4104
      %v4161 = vpack.c.b16 %v4107, %v4105
      %v4162 = vpack.c.b16 %v4110, %v4108
      %v4163 = vpack.c.b16 %v4111, %v4109
      %v4164 = vpack.c.b16 %v4114, %v4112
      %v4165 = vpack.c.b16 %v4115, %v4113
      %v4166 = vpack.c.b16 %v4118, %v4116
      %v4167 = vpack.c.b16 %v4119, %v4117
      %v4168 = vpack.c.b16 %v4122, %v4120
      %v4169 = vpack.c.b16 %v4123, %v4121
      %v4170 = vpack.c.b16 %v4126, %v4124
      %v4171 = vpack.c.b16 %v4127, %v4125
      %v4172 = vpack.c.b16 %v4130, %v4128
      %v4173 = vpack.c.b16 %v4131, %v4129
      %v4174 = vpack.c.b16 %v4134, %v4132
      %v4175 = vpack.c.b16 %v4135, %v4133
      %v4176 = vpack.c.b16 %v4138, %v4136
      %v4177 = vpack.c.b16 %v4139, %v4137
      %v4178 = vpack.c.b16 %v4142, %v4140
      %v4179 = vpack.c.b16 %v4143, %v4141
      %v4180 = vpack.c.b16 %v4146, %v4144
      %v4181 = vpack.c.b16 %v4147, %v4145
      %v4182 = vpack.c.b16 %v4150, %v4148
      %v4183 = vpack.c.b16 %v4151, %v4149
      %4216 = vmatprep.subr.bf16.mxu0 0
      %4217 = vmatpush1.bf16.msra.mxu0 %v2923
      %4218 = vmatprep.subr.bf16.mxu0 0
      %4219 = vmatpush1.bf16.msra.mxu0 %v2922
      %4220 = vmatprep.subr.bf16.mxu0 0
      %4221 = vmatpush1.bf16.msra.mxu0 %v2921
      %4222 = vmatprep.subr.bf16.mxu0 0
      %4223 = vmatpush1.bf16.msra.mxu0 %v2920
      %4224 = vmatprep.subr.bf16.mxu0 0
      %4225 = vmatpush1.bf16.msra.mxu0 %v2919
      %4226 = vmatprep.subr.bf16.mxu0 0
      %4227 = vmatpush1.bf16.msra.mxu0 %v2918
      %4228 = vmatprep.subr.bf16.mxu0 0
      %4229 = vmatpush1.bf16.msra.mxu0 %v2917
      %4230 = vmatprep.subr.bf16.mxu0 0
      %4231 = vmatpush1.bf16.msra.mxu0 %v2916
      %4232 = vmatprep.subr.bf16.mxu0 0
      %4233 = vmatpush2.bf16.msra.mxu0 %v2931
      %4234 = vmatprep.subr.bf16.mxu0 0
      %4235 = vmatpush2.bf16.msra.mxu0 %v2930
      %4236 = vmatprep.subr.bf16.mxu0 0
      %4237 = vmatpush2.bf16.msra.mxu0 %v2929
      %4238 = vmatprep.subr.bf16.mxu0 0
      %4239 = vmatpush2.bf16.msra.mxu0 %v2928
      %4240 = vmatprep.subr.bf16.mxu0 0
      %4241 = vmatpush2.bf16.msra.mxu0 %v2927
      %4242 = vmatprep.subr.bf16.mxu0 0
      %4243 = vmatpush2.bf16.msra.mxu0 %v2926
      %4244 = vmatprep.subr.bf16.mxu0 0
      %4245 = vmatpush2.bf16.msra.mxu0 %v2925
      %4246 = vmatprep.subr.bf16.mxu0 0
      %4247 = vmatpush2.bf16.msra.mxu0 %v2924
      %4248 = vmatprep.mubr.bf16.mxu0 %v4153
      %4249 = vmatmul.mubr.bf16.gmra.mxu0 %v4152
      %v4250 = vpop.f32.mrf.mxu0
      %v4251 = vadd.f32 0.0, %v4250
      %v4252 = vpop.f32.mrf.mxu0
      %v4253 = vpop.f32.mrf.mxu0
      %v4254 = vadd.f32 0.0, %v4253
      %v4255 = vpop.f32.mrf.mxu0
      %4256 = vmatprep.mubr.bf16.mxu0 %v4155
      %4257 = vmatmul.mubr.bf16.gmra.mxu0 %v4154
      %v4258 = vpop.f32.mrf.mxu0
      %v4259 = vadd.f32 0.0, %v4258
      %v4260 = vpop.f32.mrf.mxu0
      %v4261 = vpop.f32.mrf.mxu0
      %v4262 = vadd.f32 0.0, %v4261
      %v4263 = vpop.f32.mrf.mxu0
      %4264 = vmatprep.mubr.bf16.mxu0 %v4157
      %4265 = vmatmul.mubr.bf16.gmra.mxu0 %v4156
      %v4266 = vpop.f32.mrf.mxu0
      %v4267 = vadd.f32 0.0, %v4266
      %v4268 = vpop.f32.mrf.mxu0
      %v4269 = vpop.f32.mrf.mxu0
      %v4270 = vadd.f32 0.0, %v4269
      %v4271 = vpop.f32.mrf.mxu0
      %4272 = vmatprep.mubr.bf16.mxu0 %v4159
      %4273 = vmatmul.mubr.bf16.gmra.mxu0 %v4158
      %v4274 = vpop.f32.mrf.mxu0
      %v4275 = vadd.f32 0.0, %v4274
      %v4276 = vpop.f32.mrf.mxu0
      %v4277 = vpop.f32.mrf.mxu0
      %v4278 = vadd.f32 0.0, %v4277
      %v4279 = vpop.f32.mrf.mxu0
      %4280 = vmatprep.mubr.bf16.mxu0 %v4161
      %4281 = vmatmul.mubr.bf16.gmra.mxu0 %v4160
      %v4282 = vpop.f32.mrf.mxu0
      %v4283 = vadd.f32 0.0, %v4282
      %v4284 = vpop.f32.mrf.mxu0
      %v4285 = vpop.f32.mrf.mxu0
      %v4286 = vadd.f32 0.0, %v4285
      %v4287 = vpop.f32.mrf.mxu0
      %4288 = vmatprep.mubr.bf16.mxu0 %v4163
      %4289 = vmatmul.mubr.bf16.gmra.mxu0 %v4162
      %v4290 = vpop.f32.mrf.mxu0
      %v4291 = vadd.f32 0.0, %v4290
      %v4292 = vpop.f32.mrf.mxu0
      %v4293 = vpop.f32.mrf.mxu0
      %v4294 = vadd.f32 0.0, %v4293
      %v4295 = vpop.f32.mrf.mxu0
      %4296 = vmatprep.mubr.bf16.mxu0 %v4165
      %4297 = vmatmul.mubr.bf16.gmra.mxu0 %v4164
      %v4298 = vpop.f32.mrf.mxu0
      %v4299 = vadd.f32 0.0, %v4298
      %v4300 = vpop.f32.mrf.mxu0
      %v4301 = vpop.f32.mrf.mxu0
      %v4302 = vadd.f32 0.0, %v4301
      %v4303 = vpop.f32.mrf.mxu0
      %4304 = vmatprep.mubr.bf16.mxu0 %v4167
      %4305 = vmatmul.mubr.bf16.gmra.mxu0 %v4166
      %v4306 = vpop.f32.mrf.mxu0
      %v4307 = vadd.f32 0.0, %v4306
      %v4308 = vpop.f32.mrf.mxu0
      %v4309 = vpop.f32.mrf.mxu0
      %v4310 = vadd.f32 0.0, %v4309
      %v4311 = vpop.f32.mrf.mxu0
      %4312 = vmatprep.mubr.bf16.mxu0 %v4169
      %4313 = vmatmul.mubr.bf16.gmra.mxu0 %v4168
      %v4314 = vpop.f32.mrf.mxu0
      %v4315 = vadd.f32 0.0, %v4314
      %v4316 = vpop.f32.mrf.mxu0
      %v4317 = vpop.f32.mrf.mxu0
      %v4318 = vadd.f32 0.0, %v4317
      %v4319 = vpop.f32.mrf.mxu0
      %4320 = vmatprep.mubr.bf16.mxu0 %v4171
      %4321 = vmatmul.mubr.bf16.gmra.mxu0 %v4170
      %v4322 = vpop.f32.mrf.mxu0
      %v4323 = vadd.f32 0.0, %v4322
      %v4324 = vpop.f32.mrf.mxu0
      %v4325 = vpop.f32.mrf.mxu0
      %v4326 = vadd.f32 0.0, %v4325
      %v4327 = vpop.f32.mrf.mxu0
      %4328 = vmatprep.mubr.bf16.mxu0 %v4173
      %4329 = vmatmul.mubr.bf16.gmra.mxu0 %v4172
      %v4330 = vpop.f32.mrf.mxu0
      %v4331 = vadd.f32 0.0, %v4330
      %v4332 = vpop.f32.mrf.mxu0
      %v4333 = vpop.f32.mrf.mxu0
      %v4334 = vadd.f32 0.0, %v4333
      %v4335 = vpop.f32.mrf.mxu0
      %4336 = vmatprep.mubr.bf16.mxu0 %v4175
      %4337 = vmatmul.mubr.bf16.gmra.mxu0 %v4174
      %v4338 = vpop.f32.mrf.mxu0
      %v4339 = vadd.f32 0.0, %v4338
      %v4340 = vpop.f32.mrf.mxu0
      %v4341 = vpop.f32.mrf.mxu0
      %v4342 = vadd.f32 0.0, %v4341
      %v4343 = vpop.f32.mrf.mxu0
      %4344 = vmatprep.mubr.bf16.mxu0 %v4177
      %4345 = vmatmul.mubr.bf16.gmra.mxu0 %v4176
      %v4346 = vpop.f32.mrf.mxu0
      %v4347 = vadd.f32 0.0, %v4346
      %v4348 = vpop.f32.mrf.mxu0
      %v4349 = vpop.f32.mrf.mxu0
      %v4350 = vadd.f32 0.0, %v4349
      %v4351 = vpop.f32.mrf.mxu0
      %4352 = vmatprep.mubr.bf16.mxu0 %v4179
      %4353 = vmatmul.mubr.bf16.gmra.mxu0 %v4178
      %v4354 = vpop.f32.mrf.mxu0
      %v4355 = vadd.f32 0.0, %v4354
      %v4356 = vpop.f32.mrf.mxu0
      %v4357 = vpop.f32.mrf.mxu0
      %v4358 = vadd.f32 0.0, %v4357
      %v4359 = vpop.f32.mrf.mxu0
      %4360 = vmatprep.mubr.bf16.mxu0 %v4181
      %4361 = vmatmul.mubr.bf16.gmra.mxu0 %v4180
      %v4362 = vpop.f32.mrf.mxu0
      %v4363 = vadd.f32 0.0, %v4362
      %v4364 = vpop.f32.mrf.mxu0
      %v4365 = vpop.f32.mrf.mxu0
      %v4366 = vadd.f32 0.0, %v4365
      %v4367 = vpop.f32.mrf.mxu0
      %4368 = vmatprep.mubr.bf16.mxu0 %v4183
      %4369 = vmatmul.mubr.bf16.gmra.mxu0 %v4182
      %v4370 = vpop.f32.mrf.mxu0
      %v4371 = vadd.f32 0.0, %v4370
      %v4372 = vpop.f32.mrf.mxu0
      %v4373 = vpop.f32.mrf.mxu0
      %v4374 = vadd.f32 0.0, %v4373
      %v4375 = vpop.f32.mrf.mxu0
      %4376 = vdwg.mxu0
      %v4377 = vpack.c.bf16 %v4254, %v4251
      %v4378 = vpack.c.bf16 %v4262, %v4259
      %v4379 = vpack.c.bf16 %v4270, %v4267
      %v4380 = vpack.c.bf16 %v4278, %v4275
      %v4381 = vpack.c.bf16 %v4286, %v4283
      %v4382 = vpack.c.bf16 %v4294, %v4291
      %v4383 = vpack.c.bf16 %v4302, %v4299
      %v4384 = vpack.c.bf16 %v4310, %v4307
      %v4385 = vpack.c.bf16 %v4318, %v4315
      %v4386 = vpack.c.bf16 %v4326, %v4323
      %v4387 = vpack.c.bf16 %v4334, %v4331
      %v4388 = vpack.c.bf16 %v4342, %v4339
      %v4389 = vpack.c.bf16 %v4350, %v4347
      %v4390 = vpack.c.bf16 %v4358, %v4355
      %v4391 = vpack.c.bf16 %v4366, %v4363
      %v4392 = vpack.c.bf16 %v4374, %v4371
      %4393 = vmatprep.subr.bf16.mxu0 0
      %4394 = vmatpush1.bf16.msra.mxu0 %v4384
      %4395 = vmatprep.subr.bf16.mxu0 0
      %4396 = vmatpush1.bf16.msra.mxu0 %v4383
      %4397 = vmatprep.subr.bf16.mxu0 0
      %4398 = vmatpush1.bf16.msra.mxu0 %v4382
      %4399 = vmatprep.subr.bf16.mxu0 0
      %4400 = vmatpush1.bf16.msra.mxu0 %v4381
      %4401 = vmatprep.subr.bf16.mxu0 0
      %4402 = vmatpush1.bf16.msra.mxu0 %v4380
      %4403 = vmatprep.subr.bf16.mxu0 0
      %4404 = vmatpush1.bf16.msra.mxu0 %v4379
      %4405 = vmatprep.subr.bf16.mxu0 0
      %4406 = vmatpush1.bf16.msra.mxu0 %v4378
      %4407 = vmatprep.subr.bf16.mxu0 0
      %4408 = vmatpush1.bf16.msra.mxu0 %v4377
      %4409 = vmatprep.subr.bf16.mxu0 0
      %4410 = vmatpush2.bf16.msra.mxu0 %v4392
      %4411 = vmatprep.subr.bf16.mxu0 0
      %4412 = vmatpush2.bf16.msra.mxu0 %v4391
      %4413 = vmatprep.subr.bf16.mxu0 0
      %4414 = vmatpush2.bf16.msra.mxu0 %v4390
      %4415 = vmatprep.subr.bf16.mxu0 0
      %4416 = vmatpush2.bf16.msra.mxu0 %v4389
      %4417 = vmatprep.subr.bf16.mxu0 0
      %4418 = vmatpush2.bf16.msra.mxu0 %v4388
      %4419 = vmatprep.subr.bf16.mxu0 0
      %4420 = vmatpush2.bf16.msra.mxu0 %v4387
      %4421 = vmatprep.subr.bf16.mxu0 0
      %4422 = vmatpush2.bf16.msra.mxu0 %v4386
      %4423 = vmatprep.subr.bf16.mxu0 0
      %4424 = vmatpush2.bf16.msra.mxu0 %v4385
      %4425 = vmatprep.mubr.bf16.mxu0 %v4153
      %4426 = vmatmul.mubr.bf16.gmra.mxu0 %v4152
      %v4427 = vpop.f32.mrf.mxu0
      %v4428 = vadd.f32 0.0, %v4427
      %v4429 = vpop.f32.mrf.mxu0
      %v4430 = vpop.f32.mrf.mxu0
      %v4431 = vadd.f32 0.0, %v4430
      %v4432 = vpop.f32.mrf.mxu0
      %4433 = vmatprep.mubr.bf16.mxu0 %v4155
      %4434 = vmatmul.mubr.bf16.gmra.mxu0 %v4154
      %v4435 = vpop.f32.mrf.mxu0
      %v4436 = vadd.f32 0.0, %v4435
      %v4437 = vpop.f32.mrf.mxu0
      %v4438 = vpop.f32.mrf.mxu0
      %v4439 = vadd.f32 0.0, %v4438
      %v4440 = vpop.f32.mrf.mxu0
      %4441 = vmatprep.mubr.bf16.mxu0 %v4157
      %4442 = vmatmul.mubr.bf16.gmra.mxu0 %v4156
      %v4443 = vpop.f32.mrf.mxu0
      %v4444 = vadd.f32 0.0, %v4443
      %v4445 = vpop.f32.mrf.mxu0
      %v4446 = vpop.f32.mrf.mxu0
      %v4447 = vadd.f32 0.0, %v4446
      %v4448 = vpop.f32.mrf.mxu0
      %4449 = vmatprep.mubr.bf16.mxu0 %v4159
      %4450 = vmatmul.mubr.bf16.gmra.mxu0 %v4158
      %v4451 = vpop.f32.mrf.mxu0
      %v4452 = vadd.f32 0.0, %v4451
      %v4453 = vpop.f32.mrf.mxu0
      %v4454 = vpop.f32.mrf.mxu0
      %v4455 = vadd.f32 0.0, %v4454
      %v4456 = vpop.f32.mrf.mxu0
      %4457 = vmatprep.mubr.bf16.mxu0 %v4161
      %4458 = vmatmul.mubr.bf16.gmra.mxu0 %v4160
      %v4459 = vpop.f32.mrf.mxu0
      %v4460 = vadd.f32 0.0, %v4459
      %v4461 = vpop.f32.mrf.mxu0
      %v4462 = vpop.f32.mrf.mxu0
      %v4463 = vadd.f32 0.0, %v4462
      %v4464 = vpop.f32.mrf.mxu0
      %4465 = vmatprep.mubr.bf16.mxu0 %v4163
      %4466 = vmatmul.mubr.bf16.gmra.mxu0 %v4162
      %v4467 = vpop.f32.mrf.mxu0
      %v4468 = vadd.f32 0.0, %v4467
      %v4469 = vpop.f32.mrf.mxu0
      %v4470 = vpop.f32.mrf.mxu0
      %v4471 = vadd.f32 0.0, %v4470
      %v4472 = vpop.f32.mrf.mxu0
      %4473 = vmatprep.mubr.bf16.mxu0 %v4165
      %4474 = vmatmul.mubr.bf16.gmra.mxu0 %v4164
      %v4475 = vpop.f32.mrf.mxu0
      %v4476 = vadd.f32 0.0, %v4475
      %v4477 = vpop.f32.mrf.mxu0
      %v4478 = vpop.f32.mrf.mxu0
      %v4479 = vadd.f32 0.0, %v4478
      %v4480 = vpop.f32.mrf.mxu0
      %4481 = vmatprep.mubr.bf16.mxu0 %v4167
      %4482 = vmatmul.mubr.bf16.gmra.mxu0 %v4166
      %v4483 = vpop.f32.mrf.mxu0
      %v4484 = vadd.f32 0.0, %v4483
      %v4485 = vpop.f32.mrf.mxu0
      %v4486 = vpop.f32.mrf.mxu0
      %v4487 = vadd.f32 0.0, %v4486
      %v4488 = vpop.f32.mrf.mxu0
      %4489 = vmatprep.mubr.bf16.mxu0 %v4169
      %4490 = vmatmul.mubr.bf16.gmra.mxu0 %v4168
      %v4491 = vpop.f32.mrf.mxu0
      %v4492 = vadd.f32 0.0, %v4491
      %v4493 = vpop.f32.mrf.mxu0
      %v4494 = vpop.f32.mrf.mxu0
      %v4495 = vadd.f32 0.0, %v4494
      %v4496 = vpop.f32.mrf.mxu0
      %4497 = vmatprep.mubr.bf16.mxu0 %v4171
      %4498 = vmatmul.mubr.bf16.gmra.mxu0 %v4170
      %v4499 = vpop.f32.mrf.mxu0
      %v4500 = vadd.f32 0.0, %v4499
      %v4501 = vpop.f32.mrf.mxu0
      %v4502 = vpop.f32.mrf.mxu0
      %v4503 = vadd.f32 0.0, %v4502
      %v4504 = vpop.f32.mrf.mxu0
      %4505 = vmatprep.mubr.bf16.mxu0 %v4173
      %4506 = vmatmul.mubr.bf16.gmra.mxu0 %v4172
      %v4507 = vpop.f32.mrf.mxu0
      %v4508 = vadd.f32 0.0, %v4507
      %v4509 = vpop.f32.mrf.mxu0
      %v4510 = vpop.f32.mrf.mxu0
      %v4511 = vadd.f32 0.0, %v4510
      %v4512 = vpop.f32.mrf.mxu0
      %4513 = vmatprep.mubr.bf16.mxu0 %v4175
      %4514 = vmatmul.mubr.bf16.gmra.mxu0 %v4174
      %v4515 = vpop.f32.mrf.mxu0
      %v4516 = vadd.f32 0.0, %v4515
      %v4517 = vpop.f32.mrf.mxu0
      %v4518 = vpop.f32.mrf.mxu0
      %v4519 = vadd.f32 0.0, %v4518
      %v4520 = vpop.f32.mrf.mxu0
      %4521 = vmatprep.mubr.bf16.mxu0 %v4177
      %4522 = vmatmul.mubr.bf16.gmra.mxu0 %v4176
      %v4523 = vpop.f32.mrf.mxu0
      %v4524 = vadd.f32 0.0, %v4523
      %v4525 = vpop.f32.mrf.mxu0
      %v4526 = vpop.f32.mrf.mxu0
      %v4527 = vadd.f32 0.0, %v4526
      %v4528 = vpop.f32.mrf.mxu0
      %4529 = vmatprep.mubr.bf16.mxu0 %v4179
      %4530 = vmatmul.mubr.bf16.gmra.mxu0 %v4178
      %v4531 = vpop.f32.mrf.mxu0
      %v4532 = vadd.f32 0.0, %v4531
      %v4533 = vpop.f32.mrf.mxu0
      %v4534 = vpop.f32.mrf.mxu0
      %v4535 = vadd.f32 0.0, %v4534
      %v4536 = vpop.f32.mrf.mxu0
      %4537 = vmatprep.mubr.bf16.mxu0 %v4181
      %4538 = vmatmul.mubr.bf16.gmra.mxu0 %v4180
      %v4539 = vpop.f32.mrf.mxu0
      %v4540 = vadd.f32 0.0, %v4539
      %v4541 = vpop.f32.mrf.mxu0
      %v4542 = vpop.f32.mrf.mxu0
      %v4543 = vadd.f32 0.0, %v4542
      %v4544 = vpop.f32.mrf.mxu0
      %4545 = vmatprep.mubr.bf16.mxu0 %v4183
      %4546 = vmatmul.mubr.bf16.gmra.mxu0 %v4182
      %v4547 = vpop.f32.mrf.mxu0
      %v4548 = vadd.f32 0.0, %v4547
      %v4549 = vpop.f32.mrf.mxu0
      %v4550 = vpop.f32.mrf.mxu0
      %v4551 = vadd.f32 0.0, %v4550
      %v4552 = vpop.f32.mrf.mxu0
      %4553 = vdwg.mxu0
      %v4554 = vpack.c.bf16 %v4431, %v4428
      %v4555 = vpack.c.bf16 %v4439, %v4436
      %v4556 = vpack.c.bf16 %v4447, %v4444
      %v4557 = vpack.c.bf16 %v4455, %v4452
      %v4558 = vpack.c.bf16 %v4463, %v4460
      %v4559 = vpack.c.bf16 %v4471, %v4468
      %v4560 = vpack.c.bf16 %v4479, %v4476
      %v4561 = vpack.c.bf16 %v4487, %v4484
      %v4562 = vpack.c.bf16 %v4495, %v4492
      %v4563 = vpack.c.bf16 %v4503, %v4500
      %v4564 = vpack.c.bf16 %v4511, %v4508
      %v4565 = vpack.c.bf16 %v4519, %v4516
      %v4566 = vpack.c.bf16 %v4527, %v4524
      %v4567 = vpack.c.bf16 %v4535, %v4532
      %v4568 = vpack.c.bf16 %v4543, %v4540
      %v4569 = vpack.c.bf16 %v4551, %v4548
      %4586 = vrot.lane.b32.xlu0 %v3349, 64
      %v4587 = vpop.permute.xlu0 %4586
      %4588 = vrot.lane.b32.xlu0 %v3350, 64
      %v4589 = vpop.permute.xlu0 %4588
      %4590 = vrot.lane.b32.xlu0 %v3351, 64
      %v4591 = vpop.permute.xlu0 %4590
      %4592 = vrot.lane.b32.xlu0 %v3352, 64
      %v4593 = vpop.permute.xlu0 %4592
      %4594 = vrot.lane.b32.xlu0 %v3353, 64
      %v4595 = vpop.permute.xlu0 %4594
      %4596 = vrot.lane.b32.xlu0 %v3354, 64
      %v4597 = vpop.permute.xlu0 %4596
      %4598 = vrot.lane.b32.xlu0 %v3355, 64
      %v4599 = vpop.permute.xlu0 %4598
      %4600 = vrot.lane.b32.xlu0 %v3356, 64
      %v4601 = vpop.permute.xlu0 %4600
      %4602 = vrot.lane.b32.xlu0 %v3357, 64
      %v4603 = vpop.permute.xlu0 %4602
      %4604 = vrot.lane.b32.xlu0 %v3358, 64
      %v4605 = vpop.permute.xlu0 %4604
      %4606 = vrot.lane.b32.xlu0 %v3359, 64
      %v4607 = vpop.permute.xlu0 %4606
      %4608 = vrot.lane.b32.xlu0 %v3360, 64
      %v4609 = vpop.permute.xlu0 %4608
      %4610 = vrot.lane.b32.xlu0 %v3361, 64
      %v4611 = vpop.permute.xlu0 %4610
      %4612 = vrot.lane.b32.xlu0 %v3362, 64
      %v4613 = vpop.permute.xlu0 %4612
      %4614 = vrot.lane.b32.xlu0 %v3363, 64
      %v4615 = vpop.permute.xlu0 %4614
      %4616 = vrot.lane.b32.xlu0 %v3364, 64
      %v4617 = vpop.permute.xlu0 %4616
      %4634 = vrot.lane.b32.xlu0 %v3863, 64
      %v4635 = vpop.permute.xlu0 %4634
      %4636 = vrot.lane.b32.xlu0 %v3864, 64
      %v4637 = vpop.permute.xlu0 %4636
      %4638 = vrot.lane.b32.xlu0 %v3865, 64
      %v4639 = vpop.permute.xlu0 %4638
      %4640 = vrot.lane.b32.xlu0 %v3866, 64
      %v4641 = vpop.permute.xlu0 %4640
      %4642 = vrot.lane.b32.xlu0 %v3867, 64
      %v4643 = vpop.permute.xlu0 %4642
      %4644 = vrot.lane.b32.xlu0 %v3868, 64
      %v4645 = vpop.permute.xlu0 %4644
      %4646 = vrot.lane.b32.xlu0 %v3869, 64
      %v4647 = vpop.permute.xlu0 %4646
      %4648 = vrot.lane.b32.xlu0 %v3870, 64
      %v4649 = vpop.permute.xlu0 %4648
      %4650 = vrot.lane.b32.xlu0 %v3871, 64
      %v4651 = vpop.permute.xlu0 %4650
      %4652 = vrot.lane.b32.xlu0 %v3872, 64
      %v4653 = vpop.permute.xlu0 %4652
      %4654 = vrot.lane.b32.xlu0 %v3873, 64
      %v4655 = vpop.permute.xlu0 %4654
      %4656 = vrot.lane.b32.xlu0 %v3874, 64
      %v4657 = vpop.permute.xlu0 %4656
      %4658 = vrot.lane.b32.xlu0 %v3875, 64
      %v4659 = vpop.permute.xlu0 %4658
      %4660 = vrot.lane.b32.xlu0 %v3876, 64
      %v4661 = vpop.permute.xlu0 %4660
      %4662 = vrot.lane.b32.xlu0 %v3877, 64
      %v4663 = vpop.permute.xlu0 %4662
      %4664 = vrot.lane.b32.xlu0 %v3878, 64
      %v4665 = vpop.permute.xlu0 %4664
      %4682 = vrot.lane.b32.xlu0 %v4377, 64
      %v4683 = vpop.permute.xlu0 %4682
      %4684 = vrot.lane.b32.xlu0 %v4378, 64
      %v4685 = vpop.permute.xlu0 %4684
      %4686 = vrot.lane.b32.xlu0 %v4379, 64
      %v4687 = vpop.permute.xlu0 %4686
      %4688 = vrot.lane.b32.xlu0 %v4380, 64
      %v4689 = vpop.permute.xlu0 %4688
      %4690 = vrot.lane.b32.xlu0 %v4381, 64
      %v4691 = vpop.permute.xlu0 %4690
      %4692 = vrot.lane.b32.xlu0 %v4382, 64
      %v4693 = vpop.permute.xlu0 %4692
      %4694 = vrot.lane.b32.xlu0 %v4383, 64
      %v4695 = vpop.permute.xlu0 %4694
      %4696 = vrot.lane.b32.xlu0 %v4384, 64
      %v4697 = vpop.permute.xlu0 %4696
      %4698 = vrot.lane.b32.xlu0 %v4385, 64
      %v4699 = vpop.permute.xlu0 %4698
      %4700 = vrot.lane.b32.xlu0 %v4386, 64
      %v4701 = vpop.permute.xlu0 %4700
      %4702 = vrot.lane.b32.xlu0 %v4387, 64
      %v4703 = vpop.permute.xlu0 %4702
      %4704 = vrot.lane.b32.xlu0 %v4388, 64
      %v4705 = vpop.permute.xlu0 %4704
      %4706 = vrot.lane.b32.xlu0 %v4389, 64
      %v4707 = vpop.permute.xlu0 %4706
      %4708 = vrot.lane.b32.xlu0 %v4390, 64
      %v4709 = vpop.permute.xlu0 %4708
      %4710 = vrot.lane.b32.xlu0 %v4391, 64
      %v4711 = vpop.permute.xlu0 %4710
      %4712 = vrot.lane.b32.xlu0 %v4392, 64
      %v4713 = vpop.permute.xlu0 %4712
      %v4716 = vsel %vm2911, %v2916, %v4587
      %v4720 = vsel %vm2911, %v2917, %v4589
      %v4724 = vsel %vm2911, %v2918, %v4591
      %v4728 = vsel %vm2911, %v2919, %v4593
      %v4732 = vsel %vm2911, %v2920, %v4595
      %v4736 = vsel %vm2911, %v2921, %v4597
      %v4740 = vsel %vm2911, %v2922, %v4599
      %v4744 = vsel %vm2911, %v2923, %v4601
      %v4748 = vsel %vm2911, %v2924, %v4603
      %v4752 = vsel %vm2911, %v2925, %v4605
      %v4756 = vsel %vm2911, %v2926, %v4607
      %v4760 = vsel %vm2911, %v2927, %v4609
      %v4764 = vsel %vm2911, %v2928, %v4611
      %v4768 = vsel %vm2911, %v2929, %v4613
      %v4772 = vsel %vm2911, %v2930, %v4615
      %v4776 = vsel %vm2911, %v2931, %v4617
      %v4780 = vsel %vm2911, %v3526, %v4635
      %v4784 = vsel %vm2911, %v3527, %v4637
      %v4788 = vsel %vm2911, %v3528, %v4639
      %v4792 = vsel %vm2911, %v3529, %v4641
      %v4796 = vsel %vm2911, %v3530, %v4643
      %v4800 = vsel %vm2911, %v3531, %v4645
      %v4804 = vsel %vm2911, %v3532, %v4647
      %v4808 = vsel %vm2911, %v3533, %v4649
      %v4812 = vsel %vm2911, %v3534, %v4651
      %v4816 = vsel %vm2911, %v3535, %v4653
      %v4820 = vsel %vm2911, %v3536, %v4655
      %v4824 = vsel %vm2911, %v3537, %v4657
      %v4828 = vsel %vm2911, %v3538, %v4659
      %v4832 = vsel %vm2911, %v3539, %v4661
      %v4836 = vsel %vm2911, %v3540, %v4663
      %v4840 = vsel %vm2911, %v3541, %v4665
      %v4844 = vsel %vm2911, %v4040, %v4683
      %v4848 = vsel %vm2911, %v4041, %v4685
      %v4852 = vsel %vm2911, %v4042, %v4687
      %v4856 = vsel %vm2911, %v4043, %v4689
      %v4860 = vsel %vm2911, %v4044, %v4691
      %v4864 = vsel %vm2911, %v4045, %v4693
      %v4868 = vsel %vm2911, %v4046, %v4695
      %v4872 = vsel %vm2911, %v4047, %v4697
      %v4876 = vsel %vm2911, %v4048, %v4699
      %v4880 = vsel %vm2911, %v4049, %v4701
      %v4884 = vsel %vm2911, %v4050, %v4703
      %v4888 = vsel %vm2911, %v4051, %v4705
      %v4892 = vsel %vm2911, %v4052, %v4707
      %v4896 = vsel %vm2911, %v4053, %v4709
      %v4900 = vsel %vm2911, %v4054, %v4711
      %v4904 = vsel %vm2911, %v4055, %v4713
      %v4906 = vld [vmem:[%s864] sm:$0xf]
      %v4907 = vld [vmem:[%s864 + $0x4] sm:$0xf]
      %v4908 = vld [vmem:[%s864 + $0x8] sm:$0xf]
      %v4909 = vld [vmem:[%s864 + $0xc] sm:$0xf]
      %v4910 = vld [vmem:[%s864 + $0x10] sm:$0xf]
      %v4911 = vld [vmem:[%s864 + $0x14] sm:$0xf]
      %v4912 = vld [vmem:[%s864 + $0x18] sm:$0xf]
      %v4913 = vld [vmem:[%s864 + $0x1c] sm:$0xf]
      %v4914 = vld [vmem:[%s864 + $0x20] sm:$0xf]
      %v4915 = vld [vmem:[%s864 + $0x24] sm:$0xf]
      %v4916 = vld [vmem:[%s864 + $0x28] sm:$0xf]
      %v4917 = vld [vmem:[%s864 + $0x2c] sm:$0xf]
      %v4918 = vld [vmem:[%s864 + $0x30] sm:$0xf]
      %v4919 = vld [vmem:[%s864 + $0x34] sm:$0xf]
      %v4920 = vld [vmem:[%s864 + $0x38] sm:$0xf]
      %v4921 = vld [vmem:[%s864 + $0x3c] sm:$0xf]
      %v4922 = vld [vmem:[%s864 + $0x40] sm:$0xf]
      %v4923 = vld [vmem:[%s864 + $0x44] sm:$0xf]
      %v4924 = vld [vmem:[%s864 + $0x48] sm:$0xf]
      %v4925 = vld [vmem:[%s864 + $0x4c] sm:$0xf]
      %v4926 = vld [vmem:[%s864 + $0x50] sm:$0xf]
      %v4927 = vld [vmem:[%s864 + $0x54] sm:$0xf]
      %v4928 = vld [vmem:[%s864 + $0x58] sm:$0xf]
      %v4929 = vld [vmem:[%s864 + $0x5c] sm:$0xf]
      %v4930 = vld [vmem:[%s864 + $0x60] sm:$0xf]
      %v4931 = vld [vmem:[%s864 + $0x64] sm:$0xf]
      %v4932 = vld [vmem:[%s864 + $0x68] sm:$0xf]
      %v4933 = vld [vmem:[%s864 + $0x6c] sm:$0xf]
      %v4934 = vld [vmem:[%s864 + $0x70] sm:$0xf]
      %v4935 = vld [vmem:[%s864 + $0x74] sm:$0xf]
      %v4936 = vld [vmem:[%s864 + $0x78] sm:$0xf]
      %v4937 = vld [vmem:[%s864 + $0x7c] sm:$0xf]
      %v4938 = vld [vmem:[%s864 + $0x80] sm:$0xf]
      %v4939 = vld [vmem:[%s864 + $0x84] sm:$0xf]
      %v4940 = vld [vmem:[%s864 + $0x88] sm:$0xf]
      %v4941 = vld [vmem:[%s864 + $0x8c] sm:$0xf]
      %v4942 = vld [vmem:[%s864 + $0x90] sm:$0xf]
      %v4943 = vld [vmem:[%s864 + $0x94] sm:$0xf]
      %v4944 = vld [vmem:[%s864 + $0x98] sm:$0xf]
      %v4945 = vld [vmem:[%s864 + $0x9c] sm:$0xf]
      %v4946 = vld [vmem:[%s864 + $0xa0] sm:$0xf]
      %v4947 = vld [vmem:[%s864 + $0xa4] sm:$0xf]
      %v4948 = vld [vmem:[%s864 + $0xa8] sm:$0xf]
      %v4949 = vld [vmem:[%s864 + $0xac] sm:$0xf]
      %v4950 = vld [vmem:[%s864 + $0xb0] sm:$0xf]
      %v4951 = vld [vmem:[%s864 + $0xb4] sm:$0xf]
      %v4952 = vld [vmem:[%s864 + $0xb8] sm:$0xf]
      %v4953 = vld [vmem:[%s864 + $0xbc] sm:$0xf]
      %v4954 = vld [vmem:[%s864 + $0xc0] sm:$0xf]
      %v4955 = vld [vmem:[%s864 + $0xc4] sm:$0xf]
      %v4956 = vld [vmem:[%s864 + $0xc8] sm:$0xf]
      %v4957 = vld [vmem:[%s864 + $0xcc] sm:$0xf]
      %v4958 = vld [vmem:[%s864 + $0xd0] sm:$0xf]
      %v4959 = vld [vmem:[%s864 + $0xd4] sm:$0xf]
      %v4960 = vld [vmem:[%s864 + $0xd8] sm:$0xf]
      %v4961 = vld [vmem:[%s864 + $0xdc] sm:$0xf]
      %v4962 = vld [vmem:[%s871] sm:$0x1]
      %v4964 = vlaneseq
      %v4965 = vshrl.u32 %v4964, 7
      %v4966 = vsub.s32 0, %v4965
      %v4967 = vrot.slane %v4962, %v4966
      %v5025 = vunpack.c.l.b16 %v4906
      %v5026 = vunpack.c.l.b16 %v4907
      %v5027 = vunpack.c.l.b16 %v4908
      %v5028 = vunpack.c.l.b16 %v4909
      %v5029 = vunpack.c.l.b16 %v4910
      %v5030 = vunpack.c.l.b16 %v4911
      %v5031 = vunpack.c.l.b16 %v4912
      %v5032 = vunpack.c.l.b16 %v4913
      %v5033 = vunpack.c.l.b16 %v4914
      %v5034 = vunpack.c.l.b16 %v4915
      %v5035 = vunpack.c.l.b16 %v4916
      %v5036 = vunpack.c.l.b16 %v4917
      %v5037 = vunpack.c.l.b16 %v4918
      %v5038 = vunpack.c.l.b16 %v4919
      %v5039 = vunpack.c.l.b16 %v4920
      %v5040 = vunpack.c.l.b16 %v4921
      %v5041 = vunpack.c.l.b16 %v4922
      %v5042 = vunpack.c.l.b16 %v4923
      %v5043 = vunpack.c.l.b16 %v4924
      %v5044 = vunpack.c.l.b16 %v4925
      %v5045 = vunpack.c.l.b16 %v4926
      %v5046 = vunpack.c.l.b16 %v4927
      %v5047 = vunpack.c.l.b16 %v4928
      %v5048 = vunpack.c.l.b16 %v4929
      %v5049 = vunpack.c.l.b16 %v4930
      %v5050 = vunpack.c.l.b16 %v4931
      %v5051 = vunpack.c.l.b16 %v4932
      %v5052 = vunpack.c.l.b16 %v4933
      %v5053 = vunpack.c.l.b16 %v4934
      %v5054 = vunpack.c.l.b16 %v4935
      %v5055 = vunpack.c.l.b16 %v4936
      %v5056 = vunpack.c.l.b16 %v4937
      %v5057 = vunpack.c.l.b16 %v4938
      %v5058 = vunpack.c.l.b16 %v4939
      %v5059 = vunpack.c.l.b16 %v4940
      %v5060 = vunpack.c.l.b16 %v4941
      %v5061 = vunpack.c.l.b16 %v4942
      %v5062 = vunpack.c.l.b16 %v4943
      %v5063 = vunpack.c.l.b16 %v4944
      %v5064 = vunpack.c.l.b16 %v4945
      %v5065 = vunpack.c.l.b16 %v4946
      %v5066 = vunpack.c.l.b16 %v4947
      %v5067 = vunpack.c.l.b16 %v4948
      %v5068 = vunpack.c.l.b16 %v4949
      %v5069 = vunpack.c.l.b16 %v4950
      %v5070 = vunpack.c.l.b16 %v4951
      %v5071 = vunpack.c.l.b16 %v4952
      %v5072 = vunpack.c.l.b16 %v4953
      %v5073 = vunpack.c.l.b16 %v4954
      %v5074 = vunpack.c.l.b16 %v4955
      %v5075 = vunpack.c.l.b16 %v4956
      %v5076 = vunpack.c.l.b16 %v4957
      %v5077 = vunpack.c.l.b16 %v4958
      %v5078 = vunpack.c.l.b16 %v4959
      %v5079 = vunpack.c.l.b16 %v4960
      %v5080 = vunpack.c.l.b16 %v4961
      %v5081 = vpack.c.b16 %v5026, %v5025
      %v5082 = vpack.c.b16 %v5028, %v5027
      %v5083 = vpack.c.b16 %v5030, %v5029
      %v5084 = vpack.c.b16 %v5032, %v5031
      %v5085 = vpack.c.b16 %v5034, %v5033
      %v5086 = vpack.c.b16 %v5036, %v5035
      %v5087 = vpack.c.b16 %v5038, %v5037
      %v5088 = vpack.c.b16 %v5040, %v5039
      %v5089 = vpack.c.b16 %v5042, %v5041
      %v5090 = vpack.c.b16 %v5044, %v5043
      %v5091 = vpack.c.b16 %v5046, %v5045
      %v5092 = vpack.c.b16 %v5048, %v5047
      %v5093 = vpack.c.b16 %v5050, %v5049
      %v5094 = vpack.c.b16 %v5052, %v5051
      %v5095 = vpack.c.b16 %v5054, %v5053
      %v5096 = vpack.c.b16 %v5056, %v5055
      %v5097 = vpack.c.b16 %v5058, %v5057
      %v5098 = vpack.c.b16 %v5060, %v5059
      %v5099 = vpack.c.b16 %v5062, %v5061
      %v5100 = vpack.c.b16 %v5064, %v5063
      %v5101 = vpack.c.b16 %v5066, %v5065
      %v5102 = vpack.c.b16 %v5068, %v5067
      %v5103 = vpack.c.b16 %v5070, %v5069
      %v5104 = vpack.c.b16 %v5072, %v5071
      %v5105 = vpack.c.b16 %v5074, %v5073
      %v5106 = vpack.c.b16 %v5076, %v5075
      %v5107 = vpack.c.b16 %v5078, %v5077
      %v5108 = vpack.c.b16 %v5080, %v5079
      %v5138 = vsel %vm2911, %v4554, 0
      %v5141 = vsel %vm2911, %v4555, 0
      %v5144 = vsel %vm2911, %v4556, 0
      %v5147 = vsel %vm2911, %v4557, 0
      %v5150 = vsel %vm2911, %v4558, 0
      %v5153 = vsel %vm2911, %v4559, 0
      %v5156 = vsel %vm2911, %v4560, 0
      %v5159 = vsel %vm2911, %v4561, 0
      %v5162 = vsel %vm2911, %v4562, 0
      %v5165 = vsel %vm2911, %v4563, 0
      %v5168 = vsel %vm2911, %v4564, 0
      %v5171 = vsel %vm2911, %v4565, 0
      %v5174 = vsel %vm2911, %v4566, 0
      %v5177 = vsel %vm2911, %v4567, 0
      %v5180 = vsel %vm2911, %v4568, 0
      %v5183 = vsel %vm2911, %v4569, 0
      %5185 = vmatprep.subr.bf16.mxu0 0
      %5186 = vmatpush1.bf16.msra.mxu0 %v5088
      %5187 = vmatprep.subr.bf16.mxu0 0
      %5188 = vmatpush1.bf16.msra.mxu0 %v5087
      %5189 = vmatprep.subr.bf16.mxu0 0
      %5190 = vmatpush1.bf16.msra.mxu0 %v5086
      %5191 = vmatprep.subr.bf16.mxu0 0
      %5192 = vmatpush1.bf16.msra.mxu0 %v5085
      %5193 = vmatprep.subr.bf16.mxu0 0
      %5194 = vmatpush1.bf16.msra.mxu0 %v5084
      %5195 = vmatprep.subr.bf16.mxu0 0
      %5196 = vmatpush1.bf16.msra.mxu0 %v5083
      %5197 = vmatprep.subr.bf16.mxu0 0
      %5198 = vmatpush1.bf16.msra.mxu0 %v5082
      %5199 = vmatprep.subr.bf16.mxu0 0
      %5200 = vmatpush1.bf16.msra.mxu0 %v5081
      %5201 = vmatprep.subr.bf16.mxu0 0
      %5202 = vmatpush2.bf16.msra.mxu0 %v5096
      %5203 = vmatprep.subr.bf16.mxu0 0
      %5204 = vmatpush2.bf16.msra.mxu0 %v5095
      %5205 = vmatprep.subr.bf16.mxu0 0
      %5206 = vmatpush2.bf16.msra.mxu0 %v5094
      %5207 = vmatprep.subr.bf16.mxu0 0
      %5208 = vmatpush2.bf16.msra.mxu0 %v5093
      %5209 = vmatprep.subr.bf16.mxu0 0
      %5210 = vmatpush2.bf16.msra.mxu0 %v5092
      %5211 = vmatprep.subr.bf16.mxu0 0
      %5212 = vmatpush2.bf16.msra.mxu0 %v5091
      %5213 = vmatprep.subr.bf16.mxu0 0
      %5214 = vmatpush2.bf16.msra.mxu0 %v5090
      %5215 = vmatprep.subr.bf16.mxu0 0
      %5216 = vmatpush2.bf16.msra.mxu0 %v5089
      %5217 = vmatprep.mubr.bf16.mxu0 %v4780
      %5218 = vmatmul.mubr.bf16.gmra.mxu0 %v4716
      %v5219 = vpop.f32.mrf.mxu0
      %v5220 = vadd.f32 %v4967, %v5219
      %v5221 = vpop.f32.mrf.mxu0
      %v5222 = vpop.f32.mrf.mxu0
      %v5223 = vadd.f32 %v4967, %v5222
      %v5224 = vpop.f32.mrf.mxu0
      %5225 = vmatprep.mubr.bf16.mxu0 %v4784
      %5226 = vmatmul.mubr.bf16.gmra.mxu0 %v4720
      %v5227 = vpop.f32.mrf.mxu0
      %v5228 = vadd.f32 %v4967, %v5227
      %v5229 = vpop.f32.mrf.mxu0
      %v5230 = vpop.f32.mrf.mxu0
      %v5231 = vadd.f32 %v4967, %v5230
      %v5232 = vpop.f32.mrf.mxu0
      %5233 = vmatprep.mubr.bf16.mxu0 %v4788
      %5234 = vmatmul.mubr.bf16.gmra.mxu0 %v4724
      %v5235 = vpop.f32.mrf.mxu0
      %v5236 = vadd.f32 %v4967, %v5235
      %v5237 = vpop.f32.mrf.mxu0
      %v5238 = vpop.f32.mrf.mxu0
      %v5239 = vadd.f32 %v4967, %v5238
      %v5240 = vpop.f32.mrf.mxu0
      %5241 = vmatprep.mubr.bf16.mxu0 %v4792
      %5242 = vmatmul.mubr.bf16.gmra.mxu0 %v4728
      %v5243 = vpop.f32.mrf.mxu0
      %v5244 = vadd.f32 %v4967, %v5243
      %v5245 = vpop.f32.mrf.mxu0
      %v5246 = vpop.f32.mrf.mxu0
      %v5247 = vadd.f32 %v4967, %v5246
      %v5248 = vpop.f32.mrf.mxu0
      %5249 = vmatprep.mubr.bf16.mxu0 %v4796
      %5250 = vmatmul.mubr.bf16.gmra.mxu0 %v4732
      %v5251 = vpop.f32.mrf.mxu0
      %v5252 = vadd.f32 %v4967, %v5251
      %v5253 = vpop.f32.mrf.mxu0
      %v5254 = vpop.f32.mrf.mxu0
      %v5255 = vadd.f32 %v4967, %v5254
      %v5256 = vpop.f32.mrf.mxu0
      %5257 = vmatprep.mubr.bf16.mxu0 %v4800
      %5258 = vmatmul.mubr.bf16.gmra.mxu0 %v4736
      %v5259 = vpop.f32.mrf.mxu0
      %v5260 = vadd.f32 %v4967, %v5259
      %v5261 = vpop.f32.mrf.mxu0
      %v5262 = vpop.f32.mrf.mxu0
      %v5263 = vadd.f32 %v4967, %v5262
      %v5264 = vpop.f32.mrf.mxu0
      %5265 = vmatprep.mubr.bf16.mxu0 %v4804
      %5266 = vmatmul.mubr.bf16.gmra.mxu0 %v4740
      %v5267 = vpop.f32.mrf.mxu0
      %v5268 = vadd.f32 %v4967, %v5267
      %v5269 = vpop.f32.mrf.mxu0
      %v5270 = vpop.f32.mrf.mxu0
      %v5271 = vadd.f32 %v4967, %v5270
      %v5272 = vpop.f32.mrf.mxu0
      %5273 = vmatprep.mubr.bf16.mxu0 %v4808
      %5274 = vmatmul.mubr.bf16.gmra.mxu0 %v4744
      %v5275 = vpop.f32.mrf.mxu0
      %v5276 = vadd.f32 %v4967, %v5275
      %v5277 = vpop.f32.mrf.mxu0
      %v5278 = vpop.f32.mrf.mxu0
      %v5279 = vadd.f32 %v4967, %v5278
      %v5280 = vpop.f32.mrf.mxu0
      %5281 = vmatprep.mubr.bf16.mxu0 %v4812
      %5282 = vmatmul.mubr.bf16.gmra.mxu0 %v4748
      %v5283 = vpop.f32.mrf.mxu0
      %v5284 = vadd.f32 %v4967, %v5283
      %v5285 = vpop.f32.mrf.mxu0
      %v5286 = vpop.f32.mrf.mxu0
      %v5287 = vadd.f32 %v4967, %v5286
      %v5288 = vpop.f32.mrf.mxu0
      %5289 = vmatprep.mubr.bf16.mxu0 %v4816
      %5290 = vmatmul.mubr.bf16.gmra.mxu0 %v4752
      %v5291 = vpop.f32.mrf.mxu0
      %v5292 = vadd.f32 %v4967, %v5291
      %v5293 = vpop.f32.mrf.mxu0
      %v5294 = vpop.f32.mrf.mxu0
      %v5295 = vadd.f32 %v4967, %v5294
      %v5296 = vpop.f32.mrf.mxu0
      %5297 = vmatprep.mubr.bf16.mxu0 %v4820
      %5298 = vmatmul.mubr.bf16.gmra.mxu0 %v4756
      %v5299 = vpop.f32.mrf.mxu0
      %v5300 = vadd.f32 %v4967, %v5299
      %v5301 = vpop.f32.mrf.mxu0
      %v5302 = vpop.f32.mrf.mxu0
      %v5303 = vadd.f32 %v4967, %v5302
      %v5304 = vpop.f32.mrf.mxu0
      %5305 = vmatprep.mubr.bf16.mxu0 %v4824
      %5306 = vmatmul.mubr.bf16.gmra.mxu0 %v4760
      %v5307 = vpop.f32.mrf.mxu0
      %v5308 = vadd.f32 %v4967, %v5307
      %v5309 = vpop.f32.mrf.mxu0
      %v5310 = vpop.f32.mrf.mxu0
      %v5311 = vadd.f32 %v4967, %v5310
      %v5312 = vpop.f32.mrf.mxu0
      %5313 = vmatprep.mubr.bf16.mxu0 %v4828
      %5314 = vmatmul.mubr.bf16.gmra.mxu0 %v4764
      %v5315 = vpop.f32.mrf.mxu0
      %v5316 = vadd.f32 %v4967, %v5315
      %v5317 = vpop.f32.mrf.mxu0
      %v5318 = vpop.f32.mrf.mxu0
      %v5319 = vadd.f32 %v4967, %v5318
      %v5320 = vpop.f32.mrf.mxu0
      %5321 = vmatprep.mubr.bf16.mxu0 %v4832
      %5322 = vmatmul.mubr.bf16.gmra.mxu0 %v4768
      %v5323 = vpop.f32.mrf.mxu0
      %v5324 = vadd.f32 %v4967, %v5323
      %v5325 = vpop.f32.mrf.mxu0
      %v5326 = vpop.f32.mrf.mxu0
      %v5327 = vadd.f32 %v4967, %v5326
      %v5328 = vpop.f32.mrf.mxu0
      %5329 = vmatprep.mubr.bf16.mxu0 %v4836
      %5330 = vmatmul.mubr.bf16.gmra.mxu0 %v4772
      %v5331 = vpop.f32.mrf.mxu0
      %v5332 = vadd.f32 %v4967, %v5331
      %v5333 = vpop.f32.mrf.mxu0
      %v5334 = vpop.f32.mrf.mxu0
      %v5335 = vadd.f32 %v4967, %v5334
      %v5336 = vpop.f32.mrf.mxu0
      %5337 = vmatprep.mubr.bf16.mxu0 %v4840
      %5338 = vmatmul.mubr.bf16.gmra.mxu0 %v4776
      %v5339 = vpop.f32.mrf.mxu0
      %v5340 = vadd.f32 %v4967, %v5339
      %v5341 = vpop.f32.mrf.mxu0
      %v5342 = vpop.f32.mrf.mxu0
      %v5343 = vadd.f32 %v4967, %v5342
      %v5344 = vpop.f32.mrf.mxu0
      %5345 = vdwg.mxu0
      %5346 = vmatprep.subr.bf16.mxu0 0
      %5347 = vmatpush1.bf16.msra.mxu0 %v5104
      %5348 = vmatprep.subr.bf16.mxu0 0
      %5349 = vmatpush1.bf16.msra.mxu0 %v5103
      %5350 = vmatprep.subr.bf16.mxu0 0
      %5351 = vmatpush1.bf16.msra.mxu0 %v5102
      %5352 = vmatprep.subr.bf16.mxu0 0
      %5353 = vmatpush1.bf16.msra.mxu0 %v5101
      %5354 = vmatprep.subr.bf16.mxu0 0
      %5355 = vmatpush1.bf16.msra.mxu0 %v5100
      %5356 = vmatprep.subr.bf16.mxu0 0
      %5357 = vmatpush1.bf16.msra.mxu0 %v5099
      %5358 = vmatprep.subr.bf16.mxu0 0
      %5359 = vmatpush1.bf16.msra.mxu0 %v5098
      %5360 = vmatprep.subr.bf16.mxu0 0
      %5361 = vmatpush1.bf16.msra.mxu0 %v5097
      %5362 = vmatprep.subr.bf16.mxu0 0
      %5363 = vmatpush2.bf16.msra.mxu0 0
      %5364 = vmatprep.subr.bf16.mxu0 0
      %5365 = vmatpush2.bf16.msra.mxu0 0
      %5366 = vmatprep.subr.bf16.mxu0 0
      %5367 = vmatpush2.bf16.msra.mxu0 0
      %5368 = vmatprep.subr.bf16.mxu0 0
      %5369 = vmatpush2.bf16.msra.mxu0 0
      %5370 = vmatprep.subr.bf16.mxu0 0
      %5371 = vmatpush2.bf16.msra.mxu0 %v5108
      %5372 = vmatprep.subr.bf16.mxu0 0
      %5373 = vmatpush2.bf16.msra.mxu0 %v5107
      %5374 = vmatprep.subr.bf16.mxu0 0
      %5375 = vmatpush2.bf16.msra.mxu0 %v5106
      %5376 = vmatprep.subr.bf16.mxu0 0
      %5377 = vmatpush2.bf16.msra.mxu0 %v5105
      %5378 = vmatprep.mubr.bf16.mxu0 %v5138
      %5379 = vmatmul.mubr.bf16.gmra.mxu0 %v4844
      %v5380 = vpop.f32.mrf.mxu0
      %v5381 = vadd.f32 %v5220, %v5380
      %v5382 = vpop.f32.mrf.mxu0
      %v5383 = vpop.f32.mrf.mxu0
      %v5384 = vadd.f32 %v5223, %v5383
      %v5385 = vpop.f32.mrf.mxu0
      %5386 = vmatprep.mubr.bf16.mxu0 %v5141
      %5387 = vmatmul.mubr.bf16.gmra.mxu0 %v4848
      %v5388 = vpop.f32.mrf.mxu0
      %v5389 = vadd.f32 %v5228, %v5388
      %v5390 = vpop.f32.mrf.mxu0
      %v5391 = vpop.f32.mrf.mxu0
      %v5392 = vadd.f32 %v5231, %v5391
      %v5393 = vpop.f32.mrf.mxu0
      %5394 = vmatprep.mubr.bf16.mxu0 %v5144
      %5395 = vmatmul.mubr.bf16.gmra.mxu0 %v4852
      %v5396 = vpop.f32.mrf.mxu0
      %v5397 = vadd.f32 %v5236, %v5396
      %v5398 = vpop.f32.mrf.mxu0
      %v5399 = vpop.f32.mrf.mxu0
      %v5400 = vadd.f32 %v5239, %v5399
      %v5401 = vpop.f32.mrf.mxu0
      %5402 = vmatprep.mubr.bf16.mxu0 %v5147
      %5403 = vmatmul.mubr.bf16.gmra.mxu0 %v4856
      %v5404 = vpop.f32.mrf.mxu0
      %v5405 = vadd.f32 %v5244, %v5404
      %v5406 = vpop.f32.mrf.mxu0
      %v5407 = vpop.f32.mrf.mxu0
      %v5408 = vadd.f32 %v5247, %v5407
      %v5409 = vpop.f32.mrf.mxu0
      %5410 = vmatprep.mubr.bf16.mxu0 %v5150
      %5411 = vmatmul.mubr.bf16.gmra.mxu0 %v4860
      %v5412 = vpop.f32.mrf.mxu0
      %v5413 = vadd.f32 %v5252, %v5412
      %v5414 = vpop.f32.mrf.mxu0
      %v5415 = vpop.f32.mrf.mxu0
      %v5416 = vadd.f32 %v5255, %v5415
      %v5417 = vpop.f32.mrf.mxu0
      %5418 = vmatprep.mubr.bf16.mxu0 %v5153
      %5419 = vmatmul.mubr.bf16.gmra.mxu0 %v4864
      %v5420 = vpop.f32.mrf.mxu0
      %v5421 = vadd.f32 %v5260, %v5420
      %v5422 = vpop.f32.mrf.mxu0
      %v5423 = vpop.f32.mrf.mxu0
      %v5424 = vadd.f32 %v5263, %v5423
      %v5425 = vpop.f32.mrf.mxu0
      %5426 = vmatprep.mubr.bf16.mxu0 %v5156
      %5427 = vmatmul.mubr.bf16.gmra.mxu0 %v4868
      %v5428 = vpop.f32.mrf.mxu0
      %v5429 = vadd.f32 %v5268, %v5428
      %v5430 = vpop.f32.mrf.mxu0
      %v5431 = vpop.f32.mrf.mxu0
      %v5432 = vadd.f32 %v5271, %v5431
      %v5433 = vpop.f32.mrf.mxu0
      %5434 = vmatprep.mubr.bf16.mxu0 %v5159
      %5435 = vmatmul.mubr.bf16.gmra.mxu0 %v4872
      %v5436 = vpop.f32.mrf.mxu0
      %v5437 = vadd.f32 %v5276, %v5436
      %v5438 = vpop.f32.mrf.mxu0
      %v5439 = vpop.f32.mrf.mxu0
      %v5440 = vadd.f32 %v5279, %v5439
      %v5441 = vpop.f32.mrf.mxu0
      %5442 = vmatprep.mubr.bf16.mxu0 %v5162
      %5443 = vmatmul.mubr.bf16.gmra.mxu0 %v4876
      %v5444 = vpop.f32.mrf.mxu0
      %v5445 = vadd.f32 %v5284, %v5444
      %v5446 = vpop.f32.mrf.mxu0
      %v5447 = vpop.f32.mrf.mxu0
      %v5448 = vadd.f32 %v5287, %v5447
      %v5449 = vpop.f32.mrf.mxu0
      %5450 = vmatprep.mubr.bf16.mxu0 %v5165
      %5451 = vmatmul.mubr.bf16.gmra.mxu0 %v4880
      %v5452 = vpop.f32.mrf.mxu0
      %v5453 = vadd.f32 %v5292, %v5452
      %v5454 = vpop.f32.mrf.mxu0
      %v5455 = vpop.f32.mrf.mxu0
      %v5456 = vadd.f32 %v5295, %v5455
      %v5457 = vpop.f32.mrf.mxu0
      %5458 = vmatprep.mubr.bf16.mxu0 %v5168
      %5459 = vmatmul.mubr.bf16.gmra.mxu0 %v4884
      %v5460 = vpop.f32.mrf.mxu0
      %v5461 = vadd.f32 %v5300, %v5460
      %v5462 = vpop.f32.mrf.mxu0
      %v5463 = vpop.f32.mrf.mxu0
      %v5464 = vadd.f32 %v5303, %v5463
      %v5465 = vpop.f32.mrf.mxu0
      %5466 = vmatprep.mubr.bf16.mxu0 %v5171
      %5467 = vmatmul.mubr.bf16.gmra.mxu0 %v4888
      %v5468 = vpop.f32.mrf.mxu0
      %v5469 = vadd.f32 %v5308, %v5468
      %v5470 = vpop.f32.mrf.mxu0
      %v5471 = vpop.f32.mrf.mxu0
      %v5472 = vadd.f32 %v5311, %v5471
      %v5473 = vpop.f32.mrf.mxu0
      %5474 = vmatprep.mubr.bf16.mxu0 %v5174
      %5475 = vmatmul.mubr.bf16.gmra.mxu0 %v4892
      %v5476 = vpop.f32.mrf.mxu0
      %v5477 = vadd.f32 %v5316, %v5476
      %v5478 = vpop.f32.mrf.mxu0
      %v5479 = vpop.f32.mrf.mxu0
      %v5480 = vadd.f32 %v5319, %v5479
      %v5481 = vpop.f32.mrf.mxu0
      %5482 = vmatprep.mubr.bf16.mxu0 %v5177
      %5483 = vmatmul.mubr.bf16.gmra.mxu0 %v4896
      %v5484 = vpop.f32.mrf.mxu0
      %v5485 = vadd.f32 %v5324, %v5484
      %v5486 = vpop.f32.mrf.mxu0
      %v5487 = vpop.f32.mrf.mxu0
      %v5488 = vadd.f32 %v5327, %v5487
      %v5489 = vpop.f32.mrf.mxu0
      %5490 = vmatprep.mubr.bf16.mxu0 %v5180
      %5491 = vmatmul.mubr.bf16.gmra.mxu0 %v4900
      %v5492 = vpop.f32.mrf.mxu0
      %v5493 = vadd.f32 %v5332, %v5492
      %v5494 = vpop.f32.mrf.mxu0
      %v5495 = vpop.f32.mrf.mxu0
      %v5496 = vadd.f32 %v5335, %v5495
      %v5497 = vpop.f32.mrf.mxu0
      %5498 = vmatprep.mubr.bf16.mxu0 %v5183
      %5499 = vmatmul.mubr.bf16.gmra.mxu0 %v4904
      %v5500 = vpop.f32.mrf.mxu0
      %v5501 = vadd.f32 %v5340, %v5500
      %v5502 = vpop.f32.mrf.mxu0
      %v5503 = vpop.f32.mrf.mxu0
      %v5504 = vadd.f32 %v5343, %v5503
      %v5505 = vpop.f32.mrf.mxu0
      %5506 = vdwg.mxu0
      %v5507 = vtanh.pop %v5381
      %v5508 = vtanh.pop %v5384
      %v5509 = vtanh.pop %v5389
      %v5510 = vtanh.pop %v5392
      %v5511 = vtanh.pop %v5397
      %v5512 = vtanh.pop %v5400
      %v5513 = vtanh.pop %v5405
      %v5514 = vtanh.pop %v5408
      %v5515 = vtanh.pop %v5413
      %v5516 = vtanh.pop %v5416
      %v5517 = vtanh.pop %v5421
      %v5518 = vtanh.pop %v5424
      %v5519 = vtanh.pop %v5429
      %v5520 = vtanh.pop %v5432
      %v5521 = vtanh.pop %v5437
      %v5522 = vtanh.pop %v5440
      %v5523 = vtanh.pop %v5445
      %v5524 = vtanh.pop %v5448
      %v5525 = vtanh.pop %v5453
      %v5526 = vtanh.pop %v5456
      %v5527 = vtanh.pop %v5461
      %v5528 = vtanh.pop %v5464
      %v5529 = vtanh.pop %v5469
      %v5530 = vtanh.pop %v5472
      %v5531 = vtanh.pop %v5477
      %v5532 = vtanh.pop %v5480
      %v5533 = vtanh.pop %v5485
      %v5534 = vtanh.pop %v5488
      %v5535 = vtanh.pop %v5493
      %v5536 = vtanh.pop %v5496
      %v5537 = vtanh.pop %v5501
      %v5538 = vtanh.pop %v5504
      %5539 = vst.msk [vmem:[#allocation2] sm:$0xff] %vm1750, %v5507
      %5540 = vst.msk [vmem:[#allocation2 + $0x8] sm:$0xff] %vm1750, %v5508
      %5541 = vst.msk [vmem:[#allocation2 + $0x10] sm:$0xff] %vm1750, %v5509
      %5542 = vst.msk [vmem:[#allocation2 + $0x18] sm:$0xff] %vm1750, %v5510
      %5543 = vst.msk [vmem:[#allocation2 + $0x20] sm:$0xff] %vm1750, %v5511
      %5544 = vst.msk [vmem:[#allocation2 + $0x28] sm:$0xff] %vm1750, %v5512
      %5545 = vst.msk [vmem:[#allocation2 + $0x30] sm:$0xff] %vm1750, %v5513
      %5546 = vst.msk [vmem:[#allocation2 + $0x38] sm:$0xff] %vm1750, %v5514
      %5547 = vst.msk [vmem:[#allocation2 + $0x40] sm:$0xff] %vm1750, %v5515
      %5548 = vst.msk [vmem:[#allocation2 + $0x48] sm:$0xff] %vm1750, %v5516
      %5549 = vst.msk [vmem:[#allocation2 + $0x50] sm:$0xff] %vm1750, %v5517
      %5550 = vst.msk [vmem:[#allocation2 + $0x58] sm:$0xff] %vm1750, %v5518
      %5551 = vst.msk [vmem:[#allocation2 + $0x60] sm:$0xff] %vm1750, %v5519
      %5552 = vst.msk [vmem:[#allocation2 + $0x68] sm:$0xff] %vm1750, %v5520
      %5553 = vst.msk [vmem:[#allocation2 + $0x70] sm:$0xff] %vm1750, %v5521
      %5554 = vst.msk [vmem:[#allocation2 + $0x78] sm:$0xff] %vm1750, %v5522
      %5555 = vst.msk [vmem:[#allocation2 + $0x80] sm:$0xff] %vm1750, %v5523
      %5556 = vst.msk [vmem:[#allocation2 + $0x88] sm:$0xff] %vm1750, %v5524
      %5557 = vst.msk [vmem:[#allocation2 + $0x90] sm:$0xff] %vm1750, %v5525
      %5558 = vst.msk [vmem:[#allocation2 + $0x98] sm:$0xff] %vm1750, %v5526
      %5559 = vst.msk [vmem:[#allocation2 + $0xa0] sm:$0xff] %vm1750, %v5527
      %5560 = vst.msk [vmem:[#allocation2 + $0xa8] sm:$0xff] %vm1750, %v5528
      %5561 = vst.msk [vmem:[#allocation2 + $0xb0] sm:$0xff] %vm1750, %v5529
      %5562 = vst.msk [vmem:[#allocation2 + $0xb8] sm:$0xff] %vm1750, %v5530
      %5563 = vst.msk [vmem:[#allocation2 + $0xc0] sm:$0xff] %vm1750, %v5531
      %5564 = vst.msk [vmem:[#allocation2 + $0xc8] sm:$0xff] %vm1750, %v5532
      %5565 = vst.msk [vmem:[#allocation2 + $0xd0] sm:$0xff] %vm1750, %v5533
      %5566 = vst.msk [vmem:[#allocation2 + $0xd8] sm:$0xff] %vm1750, %v5534
      %5567 = vst.msk [vmem:[#allocation2 + $0xe0] sm:$0xff] %vm1750, %v5535
      %5568 = vst.msk [vmem:[#allocation2 + $0xe8] sm:$0xff] %vm1750, %v5536
      %5569 = vst.msk [vmem:[#allocation2 + $0xf0] sm:$0xff] %vm1750, %v5537
      %5570 = vst.msk [vmem:[#allocation2 + $0xf8] sm:$0xff] %vm1750, %v5538
      %p5571 = scmp.lt.s32.totalorder %s32, 1
      %s5572 = scalar_select %p5571, %s32, 1
      %p5573 = scmp.lt.s32.totalorder %s33, 1
      %s5574 = scalar_select %p5573, %s33, 1
      %s5575 = smul.addr %s5574, 4
      %s5576 = smul.addr %s5572, 8
      %s5577 = sadd.s32 %s5575, %s5576
      %s5578 = smul.addr %s5577, 8
      %s5579 = scalar_lea.vmem %s17, %s5578
      // Predicated region
      $region93: #{encoder_forward.2} parent=87 // pred_check
        %p5580 = pneg %p492
      $region94: #{encoder_forward.2} parent=87 // pred_check_branch
        %5582 = sbr.rel (%p5580) target = $region96
      $region95: #{encoder_forward.2} parent=87 // pred_region
        _
      $region96: #{encoder_forward.2} parent=87 // pred_fallthru
        _
    $region88: #{encoder_forward.2} parent=5 // pred_fallthru
      _
    %p5583 = scmp.le.s32.totalorder 2, %s23
    // Predicated region
    $region97: #{encoder_forward.2} parent=5 // pred_check
      %p5584 = pneg %p5583
    $region98: #{encoder_forward.2} parent=5 // pred_check_branch
      %5586 = sbr.rel (%p5584) target = $region100
    $region99: #{encoder_forward.2} parent=5 // pred_region
      %s5587 = ssub.s32 %s23, 2
      // Predicated region
      $region101: #{encoder_forward.2} parent=99 // pred_check
        %p5588 = pneg %p498
      $region102: #{encoder_forward.2} parent=99 // pred_check_branch
        %5590 = sbr.rel (%p5588) target = $region104
      $region103: #{encoder_forward.2} parent=99 // pred_region
        %p5591 = scmp.lt.s32.totalorder %s34, 1
        %s5592 = scalar_select %p5591, %s34, 1
        %p5593 = scmp.lt.s32.totalorder %s35, 1
        %s5594 = scalar_select %p5593, %s35, 1
        %s5595 = smul.addr %s5594, 4
        %s5596 = smul.addr %s5592, 8
        %s5597 = sadd.s32 %s5595, %s5596
        %s5598 = smul.addr %s5597, 8
        %s5599 = scalar_lea.vmem %s17, %s5598
      $region104: #{encoder_forward.2} parent=99 // pred_fallthru
        _
    $region100: #{encoder_forward.2} parent=5 // pred_fallthru
      _
  $region6: #{encoder_forward.2} parent=0 // loop_footer
    %s27 = sadd.s32 1, %s23
  $region7: #{encoder_forward.2} parent=0 // loop_footer_branch
    %22 = sbr.rel target = $region3
  $region8: #{encoder_forward.2} parent=0 // loop_exit
    _

// kernel: encoder_forward.3
$region0: #{encoder_forward.3}
  #allocation0 [shape = 'u32[]', space=smem, size = 0x4, offset = 0x4, fixed_abs, tag = 'smem constant byte address 0x4 - core index']
  #allocation1 [shape = 'u32[144,128]{1,0:T(1,128)}', space=vmem, size = 0x12000, scoped, tag = 'internal scratch']
  %s0 = inlined_call_operand.vmem [shape: f32[64,128], index: 0, kind: input, shape index: {}]
  %s1 = inlined_call_operand.vmem [shape: f32[128,256], index: 1, kind: input, shape index: {}]
  %s2 = inlined_call_operand.vmem [shape: f32[1,256], index: 2, kind: input, shape index: {}]
  %s3 = inlined_call_operand.vmem [shape: f32[256,64], index: 3, kind: input, shape index: {}]
  %s4 = inlined_call_operand.vmem [shape: f32[1,64], index: 4, kind: input, shape index: {}]
  %s5 = inlined_call_operand.hbm [shape: f32[64,64], index: 5, kind: output, shape index: {}]
  %s6 = sld [smem:[#allocation0]]
  $region30: #{encoder_forward.3} parent=0
    _
  %s8 = ssub.s32 1, %s6
  %s9 = scalar_select 0, %s8, %s6
  $region1: #{encoder_forward.3} parent=0
    #allocation2 [shape = 'u8[32768]{0}', space=vmem, size = 0x8000, scoped, tag = 'output window, operand 0, single buffered']
    #allocation3 [shape = 's32[1]{0}', space=sflag, size = 0x4, scoped, tag = 'scoped memory for encoder_forward.3']
    %10 = vsyncpa [#allocation3], 0
    // Predicated region
    $region2: #{encoder_forward.3} parent=1 // pred_check
      _
    $region3: #{encoder_forward.3} parent=1 // pred_check_branch
      %12 = sbr.rel (0) target = $region5
    $region4: #{encoder_forward.3} parent=1 // pred_region
      _
    $region5: #{encoder_forward.3} parent=1 // pred_fallthru
      _
    // Predicated region
    $region6: #{encoder_forward.3} parent=1 // pred_check
      _
    $region7: #{encoder_forward.3} parent=1 // pred_check_branch
      %14 = sbr.rel (0) target = $region9
    $region8: #{encoder_forward.3} parent=1 // pred_region
      _
    $region9: #{encoder_forward.3} parent=1 // pred_fallthru
      _
    // Predicated region
    $region10: #{encoder_forward.3} parent=1 // pred_check
      _
    $region11: #{encoder_forward.3} parent=1 // pred_check_branch
      %16 = sbr.rel (0) target = $region13
    $region12: #{encoder_forward.3} parent=1 // pred_region
      _
    $region13: #{encoder_forward.3} parent=1 // pred_fallthru
      _
    // Predicated region
    $region14: #{encoder_forward.3} parent=1 // pred_check
      _
    $region15: #{encoder_forward.3} parent=1 // pred_check_branch
      %18 = sbr.rel (0) target = $region17
    $region16: #{encoder_forward.3} parent=1 // pred_region
      _
    $region17: #{encoder_forward.3} parent=1 // pred_fallthru
      _
    // Predicated region
    $region18: #{encoder_forward.3} parent=1 // pred_check
      _
    $region19: #{encoder_forward.3} parent=1 // pred_check_branch
      %20 = sbr.rel (0) target = $region21
    $region20: #{encoder_forward.3} parent=1 // pred_region
      _
    $region21: #{encoder_forward.3} parent=1 // pred_fallthru
      _
    %v21 = vld [vmem:[%s0] sm:$0xff]
    %v22 = vld [vmem:[%s0 + $0x8] sm:$0xff]
    %v23 = vld [vmem:[%s0 + $0x10] sm:$0xff]
    %v24 = vld [vmem:[%s0 + $0x18] sm:$0xff]
    %v25 = vld [vmem:[%s0 + $0x20] sm:$0xff]
    %v26 = vld [vmem:[%s0 + $0x28] sm:$0xff]
    %v27 = vld [vmem:[%s0 + $0x30] sm:$0xff]
    %v28 = vld [vmem:[%s0 + $0x38] sm:$0xff]
    %v29 = vld [vmem:[%s1] sm:$0xff]
    %v30 = vld [vmem:[%s1 + $0x8] sm:$0xff]
    %v31 = vld [vmem:[%s1 + $0x10] sm:$0xff]
    %v32 = vld [vmem:[%s1 + $0x18] sm:$0xff]
    %v33 = vld [vmem:[%s1 + $0x20] sm:$0xff]
    %v34 = vld [vmem:[%s1 + $0x28] sm:$0xff]
    %v35 = vld [vmem:[%s1 + $0x30] sm:$0xff]
    %v36 = vld [vmem:[%s1 + $0x38] sm:$0xff]
    %v37 = vld [vmem:[%s1 + $0x40] sm:$0xff]
    %v38 = vld [vmem:[%s1 + $0x48] sm:$0xff]
    %v39 = vld [vmem:[%s1 + $0x50] sm:$0xff]
    %v40 = vld [vmem:[%s1 + $0x58] sm:$0xff]
    %v41 = vld [vmem:[%s1 + $0x60] sm:$0xff]
    %v42 = vld [vmem:[%s1 + $0x68] sm:$0xff]
    %v43 = vld [vmem:[%s1 + $0x70] sm:$0xff]
    %v44 = vld [vmem:[%s1 + $0x78] sm:$0xff]
    %v45 = vld [vmem:[%s1 + $0x80] sm:$0xff]
    %v46 = vld [vmem:[%s1 + $0x88] sm:$0xff]
    %v47 = vld [vmem:[%s1 + $0x90] sm:$0xff]
    %v48 = vld [vmem:[%s1 + $0x98] sm:$0xff]
    %v49 = vld [vmem:[%s1 + $0xa0] sm:$0xff]
    %v50 = vld [vmem:[%s1 + $0xa8] sm:$0xff]
    %v51 = vld [vmem:[%s1 + $0xb0] sm:$0xff]
    %v52 = vld [vmem:[%s1 + $0xb8] sm:$0xff]
    %v53 = vld [vmem:[%s1 + $0xc0] sm:$0xff]
    %v54 = vld [vmem:[%s1 + $0xc8] sm:$0xff]
    %v55 = vld [vmem:[%s1 + $0xd0] sm:$0xff]
    %v56 = vld [vmem:[%s1 + $0xd8] sm:$0xff]
    %v57 = vld [vmem:[%s1 + $0xe0] sm:$0xff]
    %v58 = vld [vmem:[%s1 + $0xe8] sm:$0xff]
    %v59 = vld [vmem:[%s1 + $0xf0] sm:$0xff]
    %v60 = vld [vmem:[%s1 + $0xf8] sm:$0xff]
    %v61 = vld [vmem:[%s2] sm:$0x3]
    %v63 = vlaneseq
    %v64 = vshrl.u32 %v63, 7
    %v65 = vsub.s32 0, %v64
    %v66 = vrot.slane %v61, %v65
    %v67 = vlaneseq
    %v68 = vshrl.u32 %v67, 7
    %v69 = vsub.s32 1, %v68
    %v70 = vrot.slane %v61, %v69
    %73 = vmatprep.subr.mxu0 %v60
    %74 = vmatpush1.msra.mxu0 %v59
    %75 = vmatprep.subr.mxu0 %v58
    %76 = vmatpush1.msra.mxu0 %v57
    %77 = vmatprep.subr.mxu0 %v56
    %78 = vmatpush1.msra.mxu0 %v55
    %79 = vmatprep.subr.mxu0 %v54
    %80 = vmatpush1.msra.mxu0 %v53
    %81 = vmatprep.subr.mxu0 %v52
    %82 = vmatpush1.msra.mxu0 %v51
    %83 = vmatprep.subr.mxu0 %v50
    %84 = vmatpush1.msra.mxu0 %v49
    %85 = vmatprep.subr.mxu0 %v48
    %86 = vmatpush1.msra.mxu0 %v47
    %87 = vmatprep.subr.mxu0 %v46
    %88 = vmatpush1.msra.mxu0 %v45
    %89 = vmatprep.subr.mxu0 %v44
    %90 = vmatpush1.msra.mxu0 %v43
    %91 = vmatprep.subr.mxu0 %v42
    %92 = vmatpush1.msra.mxu0 %v41
    %93 = vmatprep.subr.mxu0 %v40
    %94 = vmatpush1.msra.mxu0 %v39
    %95 = vmatprep.subr.mxu0 %v38
    %96 = vmatpush1.msra.mxu0 %v37
    %97 = vmatprep.subr.mxu0 %v36
    %98 = vmatpush1.msra.mxu0 %v35
    %99 = vmatprep.subr.mxu0 %v34
    %100 = vmatpush1.msra.mxu0 %v33
    %101 = vmatprep.subr.mxu0 %v32
    %102 = vmatpush1.msra.mxu0 %v31
    %103 = vmatprep.subr.mxu0 %v30
    %104 = vmatpush1.msra.mxu0 %v29
    %105 = vmatprep.subr.mxu0 0.0
    %106 = vmatpush2.msra.mxu0 0.0
    %107 = vmatprep.subr.mxu0 0.0
    %108 = vmatpush2.msra.mxu0 0.0
    %109 = vmatprep.subr.mxu0 0.0
    %110 = vmatpush2.msra.mxu0 0.0
    %111 = vmatprep.subr.mxu0 0.0
    %112 = vmatpush2.msra.mxu0 0.0
    %113 = vmatprep.subr.mxu0 0.0
    %114 = vmatpush2.msra.mxu0 0.0
    %115 = vmatprep.subr.mxu0 0.0
    %116 = vmatpush2.msra.mxu0 0.0
    %117 = vmatprep.subr.mxu0 0.0
    %118 = vmatpush2.msra.mxu0 0.0
    %119 = vmatprep.subr.mxu0 0.0
    %120 = vmatpush2.msra.mxu0 0.0
    %121 = vmatprep.subr.mxu0 0.0
    %122 = vmatpush2.msra.mxu0 0.0
    %123 = vmatprep.subr.mxu0 0.0
    %124 = vmatpush2.msra.mxu0 0.0
    %125 = vmatprep.subr.mxu0 0.0
    %126 = vmatpush2.msra.mxu0 0.0
    %127 = vmatprep.subr.mxu0 0.0
    %128 = vmatpush2.msra.mxu0 0.0
    %129 = vmatprep.subr.mxu0 0.0
    %130 = vmatpush2.msra.mxu0 0.0
    %131 = vmatprep.subr.mxu0 0.0
    %132 = vmatpush2.msra.mxu0 0.0
    %133 = vmatprep.subr.mxu0 0.0
    %134 = vmatpush2.msra.mxu0 0.0
    %135 = vmatprep.subr.mxu0 0.0
    %136 = vmatpush2.msra.mxu0 0.0
    %137 = vmatprep.mubr.f32.mxu0 0.0
    %138 = vmatmul.mubr.f32.gmra.mxu0 %v21
    %v139 = vpop.f32.mrf.mxu0
    %v140 = vadd.f32 %v66, %v139
    %v141 = vpop.f32.mrf.mxu0
    %v142 = vadd.f32 %v70, %v141
    %143 = vmatprep.mubr.f32.mxu0 0.0
    %144 = vmatmul.mubr.f32.gmra.mxu0 %v22
    %v145 = vpop.f32.mrf.mxu0
    %v146 = vadd.f32 %v66, %v145
    %v147 = vpop.f32.mrf.mxu0
    %v148 = vadd.f32 %v70, %v147
    %149 = vmatprep.mubr.f32.mxu0 0.0
    %150 = vmatmul.mubr.f32.gmra.mxu0 %v23
    %v151 = vpop.f32.mrf.mxu0
    %v152 = vadd.f32 %v66, %v151
    %v153 = vpop.f32.mrf.mxu0
    %v154 = vadd.f32 %v70, %v153
    %155 = vmatprep.mubr.f32.mxu0 0.0
    %156 = vmatmul.mubr.f32.gmra.mxu0 %v24
    %v157 = vpop.f32.mrf.mxu0
    %v158 = vadd.f32 %v66, %v157
    %v159 = vpop.f32.mrf.mxu0
    %v160 = vadd.f32 %v70, %v159
    %161 = vmatprep.mubr.f32.mxu0 0.0
    %162 = vmatmul.mubr.f32.gmra.mxu0 %v25
    %v163 = vpop.f32.mrf.mxu0
    %v164 = vadd.f32 %v66, %v163
    %v165 = vpop.f32.mrf.mxu0
    %v166 = vadd.f32 %v70, %v165
    %167 = vmatprep.mubr.f32.mxu0 0.0
    %168 = vmatmul.mubr.f32.gmra.mxu0 %v26
    %v169 = vpop.f32.mrf.mxu0
    %v170 = vadd.f32 %v66, %v169
    %v171 = vpop.f32.mrf.mxu0
    %v172 = vadd.f32 %v70, %v171
    %173 = vmatprep.mubr.f32.mxu0 0.0
    %174 = vmatmul.mubr.f32.gmra.mxu0 %v27
    %v175 = vpop.f32.mrf.mxu0
    %v176 = vadd.f32 %v66, %v175
    %v177 = vpop.f32.mrf.mxu0
    %v178 = vadd.f32 %v70, %v177
    %179 = vmatprep.mubr.f32.mxu0 0.0
    %180 = vmatmul.mubr.f32.gmra.mxu0 %v28
    %v181 = vpop.f32.mrf.mxu0
    %v182 = vadd.f32 %v66, %v181
    %v183 = vpop.f32.mrf.mxu0
    %v184 = vadd.f32 %v70, %v183
    %185 = vdwg.mxu0
    %v186 = vmax.f32 %v140, 0.0
    %v187 = vmax.f32 %v142, 0.0
    %v188 = vmax.f32 %v146, 0.0
    %v189 = vmax.f32 %v148, 0.0
    %v190 = vmax.f32 %v152, 0.0
    %v191 = vmax.f32 %v154, 0.0
    %v192 = vmax.f32 %v158, 0.0
    %v193 = vmax.f32 %v160, 0.0
    %v194 = vmax.f32 %v164, 0.0
    %v195 = vmax.f32 %v166, 0.0
    %v196 = vmax.f32 %v170, 0.0
    %v197 = vmax.f32 %v172, 0.0
    %v198 = vmax.f32 %v176, 0.0
    %v199 = vmax.f32 %v178, 0.0
    %v200 = vmax.f32 %v182, 0.0
    %v201 = vmax.f32 %v184, 0.0
    %v202 = vld [vmem:[%s3] sm:$0xff]
    %v203 = vld [vmem:[%s3 + $0x8] sm:$0xff]
    %v204 = vld [vmem:[%s3 + $0x10] sm:$0xff]
    %v205 = vld [vmem:[%s3 + $0x18] sm:$0xff]
    %v206 = vld [vmem:[%s3 + $0x20] sm:$0xff]
    %v207 = vld [vmem:[%s3 + $0x28] sm:$0xff]
    %v208 = vld [vmem:[%s3 + $0x30] sm:$0xff]
    %v209 = vld [vmem:[%s3 + $0x38] sm:$0xff]
    %v210 = vld [vmem:[%s3 + $0x40] sm:$0xff]
    %v211 = vld [vmem:[%s3 + $0x48] sm:$0xff]
    %v212 = vld [vmem:[%s3 + $0x50] sm:$0xff]
    %v213 = vld [vmem:[%s3 + $0x58] sm:$0xff]
    %v214 = vld [vmem:[%s3 + $0x60] sm:$0xff]
    %v215 = vld [vmem:[%s3 + $0x68] sm:$0xff]
    %v216 = vld [vmem:[%s3 + $0x70] sm:$0xff]
    %v217 = vld [vmem:[%s3 + $0x78] sm:$0xff]
    %v218 = vld [vmem:[%s3 + $0x80] sm:$0xff]
    %v219 = vld [vmem:[%s3 + $0x88] sm:$0xff]
    %v220 = vld [vmem:[%s3 + $0x90] sm:$0xff]
    %v221 = vld [vmem:[%s3 + $0x98] sm:$0xff]
    %v222 = vld [vmem:[%s3 + $0xa0] sm:$0xff]
    %v223 = vld [vmem:[%s3 + $0xa8] sm:$0xff]
    %v224 = vld [vmem:[%s3 + $0xb0] sm:$0xff]
    %v225 = vld [vmem:[%s3 + $0xb8] sm:$0xff]
    %v226 = vld [vmem:[%s3 + $0xc0] sm:$0xff]
    %v227 = vld [vmem:[%s3 + $0xc8] sm:$0xff]
    %v228 = vld [vmem:[%s3 + $0xd0] sm:$0xff]
    %v229 = vld [vmem:[%s3 + $0xd8] sm:$0xff]
    %v230 = vld [vmem:[%s3 + $0xe0] sm:$0xff]
    %v231 = vld [vmem:[%s3 + $0xe8] sm:$0xff]
    %v232 = vld [vmem:[%s3 + $0xf0] sm:$0xff]
    %v233 = vld [vmem:[%s3 + $0xf8] sm:$0xff]
    %v234 = vld [vmem:[%s4] sm:$0x1]
    %v236 = vlaneseq
    %v237 = vshrl.u32 %v236, 7
    %v238 = vsub.s32 0, %v237
    %v239 = vrot.slane %v234, %v238
    %241 = vmatprep.subr.mxu0 0.0
    %242 = vmatpush1.msra.mxu0 %v217
    %243 = vmatprep.subr.mxu0 0.0
    %244 = vmatpush1.msra.mxu0 %v216
    %245 = vmatprep.subr.mxu0 0.0
    %246 = vmatpush1.msra.mxu0 %v215
    %247 = vmatprep.subr.mxu0 0.0
    %248 = vmatpush1.msra.mxu0 %v214
    %249 = vmatprep.subr.mxu0 0.0
    %250 = vmatpush1.msra.mxu0 %v213
    %251 = vmatprep.subr.mxu0 0.0
    %252 = vmatpush1.msra.mxu0 %v212
    %253 = vmatprep.subr.mxu0 0.0
    %254 = vmatpush1.msra.mxu0 %v211
    %255 = vmatprep.subr.mxu0 0.0
    %256 = vmatpush1.msra.mxu0 %v210
    %257 = vmatprep.subr.mxu0 0.0
    %258 = vmatpush1.msra.mxu0 %v209
    %259 = vmatprep.subr.mxu0 0.0
    %260 = vmatpush1.msra.mxu0 %v208
    %261 = vmatprep.subr.mxu0 0.0
    %262 = vmatpush1.msra.mxu0 %v207
    %263 = vmatprep.subr.mxu0 0.0
    %264 = vmatpush1.msra.mxu0 %v206
    %265 = vmatprep.subr.mxu0 0.0
    %266 = vmatpush1.msra.mxu0 %v205
    %267 = vmatprep.subr.mxu0 0.0
    %268 = vmatpush1.msra.mxu0 %v204
    %269 = vmatprep.subr.mxu0 0.0
    %270 = vmatpush1.msra.mxu0 %v203
    %271 = vmatprep.subr.mxu0 0.0
    %272 = vmatpush1.msra.mxu0 %v202
    %273 = vmatprep.subr.mxu0 0.0
    %274 = vmatpush2.msra.mxu0 %v233
    %275 = vmatprep.subr.mxu0 0.0
    %276 = vmatpush2.msra.mxu0 %v232
    %277 = vmatprep.subr.mxu0 0.0
    %278 = vmatpush2.msra.mxu0 %v231
    %279 = vmatprep.subr.mxu0 0.0
    %280 = vmatpush2.msra.mxu0 %v230
    %281 = vmatprep.subr.mxu0 0.0
    %282 = vmatpush2.msra.mxu0 %v229
    %283 = vmatprep.subr.mxu0 0.0
    %284 = vmatpush2.msra.mxu0 %v228
    %285 = vmatprep.subr.mxu0 0.0
    %286 = vmatpush2.msra.mxu0 %v227
    %287 = vmatprep.subr.mxu0 0.0
    %288 = vmatpush2.msra.mxu0 %v226
    %289 = vmatprep.subr.mxu0 0.0
    %290 = vmatpush2.msra.mxu0 %v225
    %291 = vmatprep.subr.mxu0 0.0
    %292 = vmatpush2.msra.mxu0 %v224
    %293 = vmatprep.subr.mxu0 0.0
    %294 = vmatpush2.msra.mxu0 %v223
    %295 = vmatprep.subr.mxu0 0.0
    %296 = vmatpush2.msra.mxu0 %v222
    %297 = vmatprep.subr.mxu0 0.0
    %298 = vmatpush2.msra.mxu0 %v221
    %299 = vmatprep.subr.mxu0 0.0
    %300 = vmatpush2.msra.mxu0 %v220
    %301 = vmatprep.subr.mxu0 0.0
    %302 = vmatpush2.msra.mxu0 %v219
    %303 = vmatprep.subr.mxu0 0.0
    %304 = vmatpush2.msra.mxu0 %v218
    %305 = vmatprep.mubr.f32.mxu0 %v187
    %306 = vmatmul.mubr.f32.gmra.mxu0 %v186
    %v307 = vpop.f32.mrf.mxu0
    %v308 = vadd.f32 %v239, %v307
    %v309 = vpop.f32.mrf.mxu0
    %310 = vmatprep.mubr.f32.mxu0 %v189
    %311 = vmatmul.mubr.f32.gmra.mxu0 %v188
    %v312 = vpop.f32.mrf.mxu0
    %v313 = vadd.f32 %v239, %v312
    %v314 = vpop.f32.mrf.mxu0
    %315 = vmatprep.mubr.f32.mxu0 %v191
    %316 = vmatmul.mubr.f32.gmra.mxu0 %v190
    %v317 = vpop.f32.mrf.mxu0
    %v318 = vadd.f32 %v239, %v317
    %v319 = vpop.f32.mrf.mxu0
    %320 = vmatprep.mubr.f32.mxu0 %v193
    %321 = vmatmul.mubr.f32.gmra.mxu0 %v192
    %v322 = vpop.f32.mrf.mxu0
    %v323 = vadd.f32 %v239, %v322
    %v324 = vpop.f32.mrf.mxu0
    %325 = vmatprep.mubr.f32.mxu0 %v195
    %326 = vmatmul.mubr.f32.gmra.mxu0 %v194
    %v327 = vpop.f32.mrf.mxu0
    %v328 = vadd.f32 %v239, %v327
    %v329 = vpop.f32.mrf.mxu0
    %330 = vmatprep.mubr.f32.mxu0 %v197
    %331 = vmatmul.mubr.f32.gmra.mxu0 %v196
    %v332 = vpop.f32.mrf.mxu0
    %v333 = vadd.f32 %v239, %v332
    %v334 = vpop.f32.mrf.mxu0
    %335 = vmatprep.mubr.f32.mxu0 %v199
    %336 = vmatmul.mubr.f32.gmra.mxu0 %v198
    %v337 = vpop.f32.mrf.mxu0
    %v338 = vadd.f32 %v239, %v337
    %v339 = vpop.f32.mrf.mxu0
    %340 = vmatprep.mubr.f32.mxu0 %v201
    %341 = vmatmul.mubr.f32.gmra.mxu0 %v200
    %v342 = vpop.f32.mrf.mxu0
    %v343 = vadd.f32 %v239, %v342
    %v344 = vpop.f32.mrf.mxu0
    %345 = vdwg.mxu0
    %vm346 = vcmask 523264
    %347 = vst.msk [vmem:[#allocation2] sm:$0xff] %vm346, %v308
    %348 = vst.msk [vmem:[#allocation2 + $0x8] sm:$0xff] %vm346, %v313
    %349 = vst.msk [vmem:[#allocation2 + $0x10] sm:$0xff] %vm346, %v318
    %350 = vst.msk [vmem:[#allocation2 + $0x18] sm:$0xff] %vm346, %v323
    %351 = vst.msk [vmem:[#allocation2 + $0x20] sm:$0xff] %vm346, %v328
    %352 = vst.msk [vmem:[#allocation2 + $0x28] sm:$0xff] %vm346, %v333
    %353 = vst.msk [vmem:[#allocation2 + $0x30] sm:$0xff] %vm346, %v338
    %354 = vst.msk [vmem:[#allocation2 + $0x38] sm:$0xff] %vm346, %v343
    // Predicated region
    $region22: #{encoder_forward.3} parent=1 // pred_check
      _
    $region23: #{encoder_forward.3} parent=1 // pred_check_branch
      %356 = sbr.rel (0) target = $region25
    $region24: #{encoder_forward.3} parent=1 // pred_region
      %s358 = ssub.s32 1024, 1024
      %359 = vsyncadd [#allocation3], %s358
      %s360 = sshll.u32 [#allocation2], 4
      %s361 = int_to_ptr.vmem [resolvable:$true] %s360
      %366 = dma.vmem_to_hbm [thread:$0]  %s361, 1024, %s5, [#allocation3], 128, 128, 8
    $region25: #{encoder_forward.3} parent=1 // pred_fallthru
      _
    // Predicated region
    $region26: #{encoder_forward.3} parent=1 // pred_check
      _
    $region27: #{encoder_forward.3} parent=1 // pred_check_branch
      %368 = sbr.rel (0) target = $region29
    $region28: #{encoder_forward.3} parent=1 // pred_region
      %369 = dma.done [#allocation3], 1024
    $region29: #{encoder_forward.3} parent=1 // pred_fallthru
      _
    %370 = vsyncpa [#allocation3], 1

</llo_original>
